<compile_context>
chip_gen: v7x
topology: tpu7x:2x2x1
jax: 0.10.0
libtpu: 0.0.40
codegen_flags: <defaults>
</compile_context>

<pallas_src>
import functools

import jax
import jax.numpy as jnp
from jax.experimental import pallas as pl
from jax.experimental.pallas import tpu as pltpu


# ------------------------------ shape helpers ---------------------------------

def _conv_out(n, k, s):
    return (n - k) // s + 1


def _network_dims(image_input_dims):
    _, H, W = image_input_dims
    h1, w1 = _conv_out(H, 8, 4), _conv_out(W, 8, 4)
    h2, w2 = _conv_out(h1, 4, 2), _conv_out(w1, 4, 2)
    h3, w3 = _conv_out(h2, 3, 1), _conv_out(w2, 3, 1)
    return (h1, w1), (h2, w2), (h3, w3)


# --------------------- host-side im2col (conv1 only) ---------------------------
# Runs inside the same jax.jit as the fused kernel.  Emits the patches directly in
# their final 2D (B*oh*ow, kh*kw*C) layout: one NHWC transpose of the raw image and
# a lane-axis concat of strided slices.  Column order (kh, kw, c) matches the "w1"
# layout produced by prepare_params.

def im2col(x, kh, kw, sh, sw):
    B, C, H, W = x.shape
    oh = _conv_out(H, kh, sh)
    ow = _conv_out(W, kw, sw)
    xc = x.transpose(0, 2, 3, 1)                                   # (B, H, W, C)
    cols = [xc[:, i:i + sh * (oh - 1) + 1:sh, j:j + sw * (ow - 1) + 1:sw, :]
            for i in range(kh) for j in range(kw)]                 # each (B, oh, ow, C)
    patches = jnp.concatenate(cols, axis=-1)                       # (B, oh, ow, kh*kw*C)
    return patches.reshape(B * oh * ow, kh * kw * C)


# ----------------------- in-kernel strided patch gather ------------------------

def _gather_patches(src_ref, patch_ref, *, TB, IH, IW, OH, OW, KH, KW, SH, SW, Cin):
    """src_ref:   (TB*IH*IW, Cin) activation rows in (b, ih, iw) order (f32 VMEM).
       patch_ref: (TB*OH*OW, KH*KW*Cin) scratch, rows (b, oh, ow), cols (kh, kw, cin).

    One statement per (b, oh, kh, kw) moves a contiguous (OW, Cin) sublane block
    (strided read along the input-row axis) instead of KW scattered single-sublane
    stores per output pixel."""
    for b in range(TB):
        for oh in range(OH):
            m0 = (b * OH + oh) * OW
            for i in range(KH):
                r0 = (b * IH + oh * SH + i) * IW
                for j in range(KW):
                    c0 = (i * KW + j) * Cin
                    if SW == 1:
                        blk = src_ref[r0 + j:r0 + j + OW, :]
                    else:
                        blk = src_ref[pl.ds(r0 + j, OW, stride=SW), :]
                    patch_ref[m0:m0 + OW, c0:c0 + Cin] = blk


# ------------------------------ fused kernel -----------------------------------

def _dqn_fused_kernel(p1_ref, xyz_ref,
                      w1_ref, b1_ref, w2_ref, b2_ref, w3_ref, b3_ref,
                      wf1_ref, bf1_ref, wf2x_ref, wf2z_ref, bf2_ref,
                      wf3_ref, bf3_ref,
                      out_ref,
                      a1_ref, p2_ref, a2_ref, p3_ref, f1in_ref,
                      *, TB, dims, cdtype):
    (h1, w1), (h2, w2), (h3, w3) = dims

    # conv1: one GEMM on host-built im2col patches (already in compute dtype) + bias + ReLU.
    a1 = jnp.dot(p1_ref[...], w1_ref[...], preferred_element_type=jnp.float32)
    a1_ref[...] = jnp.maximum(a1 + b1_ref[...], 0.0)               # (TB*h1*w1, 32) f32

    # conv2 (4x4, stride 2): strided patch gather + ONE GEMM (K = 4*4*32) + bias + ReLU.
    _gather_patches(a1_ref, p2_ref, TB=TB, IH=h1, IW=w1, OH=h2, OW=w2,
                    KH=4, KW=4, SH=2, SW=2, Cin=32)
    a2 = jnp.dot(p2_ref[...].astype(cdtype), w2_ref[...],
                 preferred_element_type=jnp.float32)
    a2_ref[...] = jnp.maximum(a2 + b2_ref[...], 0.0)               # (TB*h2*w2, 64) f32

    # conv3 (3x3, stride 1): gather + ONE GEMM (K = 3*3*64); ReLU fused here
    # (relu(flatten(x)) == flatten(relu(x))).
    _gather_patches(a2_ref, p3_ref, TB=TB, IH=h2, IW=w2, OH=h3, OW=w3,
                    KH=3, KW=3, SH=1, SW=1, Cin=64)
    a3 = jnp.dot(p3_ref[...].astype(cdtype), w3_ref[...],
                 preferred_element_type=jnp.float32)
    a3 = jnp.maximum(a3 + b3_ref[...], 0.0)                        # (TB*h3*w3, 64) f32

    # Repack conv3 rows into (TB, h3*w3*64) lanes so fc1 is ONE lane-aligned GEMM.
    S = h3 * w3
    for b in range(TB):
        for s in range(S):
            r = b * S + s
            f1in_ref[b:b + 1, s * 64:(s + 1) * 64] = a3[r:r + 1, :]

    # fc1: one GEMM, K = h3*w3*64 (weights pre-flattened from torch's NCHW flatten order).
    h = jnp.dot(f1in_ref[...].astype(cdtype), wf1_ref[...],
                preferred_element_type=jnp.float32)
    h = jnp.maximum(h + bf1_ref[...], 0.0)                         # (TB, 512) f32

    # fc2 on [h, xyz]: split GEMMs keep the main contraction lane-aligned at K=512.
    xyz = xyz_ref[0]                                               # (TB, 3)
    z = jnp.dot(h.astype(cdtype), wf2x_ref[...], preferred_element_type=jnp.float32)
    z = z + jnp.dot(xyz.astype(cdtype), wf2z_ref[...], preferred_element_type=jnp.float32)
    z = jnp.maximum(z + bf2_ref[...], 0.0)                         # (TB, 16) f32

    # fc3.
    q = jnp.dot(z.astype(cdtype), wf3_ref[...], preferred_element_type=jnp.float32)
    out_ref[0] = (q + bf3_ref[...]).astype(out_ref.dtype)          # (TB, n_actions)


# ------------------------------- forward builder --------------------------------

_PREPPED_ORDER = ("w1", "b1", "w2", "b2", "w3", "b3", "wf1", "bf1",
                  "wf2x", "wf2z", "bf2", "wf3", "bf3")


def _replicated_spec(shape):
    nd = len(shape)
    return pl.BlockSpec(shape, lambda bt, _nd=nd: (0,) * _nd)


def make_dqn_forward(image_input_dims, n_actions, batch, *,
                     batch_tile=1, compute_dtype=jnp.float32):
    assert batch % batch_tile == 0
    TB = batch_tile
    n_tiles = batch // TB
    dims = _network_dims(image_input_dims)
    (h1, w1), (h2, w2), (h3, w3) = dims
    C = image_input_dims[0]
    # Keep the conv1-patch batch tile sublane-aligned (16 covers both f32 and bf16 tiling).
    assert TB == batch or (TB * h1 * w1) % 16 == 0

    kernel = functools.partial(_dqn_fused_kernel, TB=TB, dims=dims, cdtype=compute_dtype)

    @jax.jit
    def forward(prepped, image_state, xyz_state):
        patches1 = im2col(image_state, 8, 8, 4, 4).astype(compute_dtype)  # (B*h1*w1, 64*C)
        xyz3 = xyz_state.astype(compute_dtype).reshape(n_tiles, TB, 3)
        weights = [prepped[k] for k in _PREPPED_ORDER]

        in_specs = (
            [pl.BlockSpec((TB * h1 * w1, 64 * C), lambda bt: (bt, 0)),
             pl.BlockSpec((1, TB, 3), lambda bt: (bt, 0, 0))]
            + [_replicated_spec(w.shape) for w in weights])

        out = pl.pallas_call(
            kernel,
            out_shape=jax.ShapeDtypeStruct((n_tiles, TB, n_actions), jnp.float32),
            grid=(n_tiles,),
            in_specs=in_specs,
            out_specs=pl.BlockSpec((1, TB, n_actions), lambda bt: (bt, 0, 0)),
            scratch_shapes=[
                pltpu.VMEM((TB * h1 * w1, 32), jnp.float32),          # conv1 activation
                pltpu.VMEM((TB * h2 * w2, 4 * 4 * 32), jnp.float32),  # conv2 patches
                pltpu.VMEM((TB * h2 * w2, 64), jnp.float32),          # conv2 activation
                pltpu.VMEM((TB * h3 * w3, 3 * 3 * 64), jnp.float32),  # conv3 patches
                pltpu.VMEM((TB, h3 * w3 * 64), jnp.float32),          # fc1 input (repacked)
            ],
            compiler_params=pltpu.CompilerParams(
                dimension_semantics=("parallel",),
                vmem_limit_bytes=64 * 1024 * 1024),
        )(patches1, xyz3, *weights)
        return out.reshape(batch, n_actions)

    return forward


# -------------------------- parameters (torch layout) ---------------------------

def init_params(key, image_input_dims, n_actions):
    C, _, _ = image_input_dims
    (_, _), (_, _), (h3, w3) = _network_dims(image_input_dims)
    fc_input_dims = 64 * h3 * w3

    ks = jax.random.split(key, 12)

    def w_init(k, shape, fan_in):
        return (jax.random.normal(k, shape, jnp.float32) / jnp.sqrt(fan_in)).astype(jnp.float32)

    return {
        "conv1_w": w_init(ks[0], (32, C, 8, 8), C * 64),
        "conv1_b": w_init(ks[1], (32,), C * 64),
        "conv2_w": w_init(ks[2], (64, 32, 4, 4), 32 * 16),
        "conv2_b": w_init(ks[3], (64,), 32 * 16),
        "conv3_w": w_init(ks[4], (64, 64, 3, 3), 64 * 9),
        "conv3_b": w_init(ks[5], (64,), 64 * 9),
        "fc1_w": w_init(ks[6], (fc_input_dims, 512), fc_input_dims),
        "fc1_b": w_init(ks[7], (512,), fc_input_dims),
        "fc2_w": w_init(ks[8], (515, 16), 515),
        "fc2_b": w_init(ks[9], (16,), 515),
        "fc3_w": w_init(ks[10], (16, n_actions), 16),
        "fc3_b": w_init(ks[11], (n_actions,), 16),
    }


def prepare_params(params, image_input_dims, n_actions, compute_dtype=jnp.float32):
    """One-time weight re-layout/cast so the kernel never reshapes or transposes at runtime."""
    C = image_input_dims[0]
    (_, _), (_, _), (h3, w3) = _network_dims(image_input_dims)
    cd, f32 = compute_dtype, jnp.float32
    return {
        # conv1: (O, C, 8, 8) -> (8*8*C, O), rows ordered (kh, kw, c) to match im2col.
        "w1": params["conv1_w"].transpose(2, 3, 1, 0).reshape(8 * 8 * C, 32).astype(cd),
        "b1": params["conv1_b"].reshape(1, 32).astype(f32),
        # conv2 / conv3: (O, I, KH, KW) -> (KH*KW*I, O), rows ordered (kh, kw, cin).
        "w2": params["conv2_w"].transpose(2, 3, 1, 0).reshape(4 * 4 * 32, 64).astype(cd),
        "b2": params["conv2_b"].reshape(1, 64).astype(f32),
        "w3": params["conv3_w"].transpose(2, 3, 1, 0).reshape(3 * 3 * 64, 64).astype(cd),
        "b3": params["conv3_b"].reshape(1, 64).astype(f32),
        # fc1 input rows are NCHW-flatten ordered (c, h, w); regroup to (h, w, c) to match the
        # kernel's repacked (oh*w3+ow)*64 lane layout, then flatten to one (h*w*c, 512) GEMM.
        "wf1": params["fc1_w"].reshape(64, h3, w3, 512)
                              .transpose(1, 2, 0, 3).reshape(h3 * w3 * 64, 512).astype(cd),
        "bf1": params["fc1_b"].reshape(1, 512).astype(f32),
        # fc2 split: image-feature half (K=512, lane-aligned) and xyz half (K=3).
        "wf2x": params["fc2_w"][:512].astype(cd),
        "wf2z": params["fc2_w"][512:].astype(cd),
        "bf2": params["fc2_b"].reshape(1, 16).astype(f32),
        "wf3": params["fc3_w"].astype(cd),
        "bf3": params["fc3_b"].reshape(1, n_actions).astype(f32),
    }


# --------------------------- pure-JAX reference check ----------------------------

def reference_forward(params, image_state, xyz_state, compute_dtype=jnp.float32):
    cd = compute_dtype

    def conv(x, w, b, s):
        y = jax.lax.conv_general_dilated(
            x.astype(cd), w.astype(cd), window_strides=s, padding="VALID",
            dimension_numbers=("NCHW", "OIHW", "NCHW"),
            preferred_element_type=jnp.float32)
        return y + b.reshape(1, -1, 1, 1)

    def mm(a, w):
        return jnp.dot(a.astype(cd), w.astype(cd), preferred_element_type=jnp.float32)

    x = jax.nn.relu(conv(image_state, params["conv1_w"], params["conv1_b"], (4, 4)))
    x = jax.nn.relu(conv(x, params["conv2_w"], params["conv2_b"], (2, 2)))
    x = conv(x, params["conv3_w"], params["conv3_b"], (1, 1))
    x = x.reshape(x.shape[0], -1)
    x = jax.nn.relu(x)
    x = jax.nn.relu(mm(x, params["fc1_w"]) + params["fc1_b"])
    x = jnp.concatenate([x, xyz_state], axis=1)
    x = jax.nn.relu(mm(x, params["fc2_w"]) + params["fc2_b"])
    x = mm(x, params["fc3_w"]) + params["fc3_b"]
    return x


# ------------------------------------- main --------------------------------------

if __name__ == "__main__":
    # Small, conv-chain-consistent shapes: (C=4, H=36, W=36)
    #   conv1: 8x8 s4 -> 8x8; conv2: 4x4 s2 -> 3x3; conv3: 3x3 s1 -> 1x1
    #   fc_input_dims = 64 * 1 * 1 = 64; fc2 in = 512 + 3 = 515
    image_input_dims = (4, 36, 36)
    n_actions = 6
    batch = 2

    key = jax.random.PRNGKey(0)
    k_params, k_img, k_xyz = jax.random.split(key, 3)

    params = init_params(k_params, image_input_dims, n_actions)
    image_state = jax.random.normal(k_img, (batch,) + image_input_dims, jnp.float32)
    xyz_state = jax.random.normal(k_xyz, (batch, 3), jnp.float32)

    ref_f32 = jax.block_until_ready(reference_forward(params, image_state, xyz_state))

    # f32-operand path (tight check; also the sensible default on v5e).
    prepped = prepare_params(params, image_input_dims, n_actions, jnp.float32)
    forward = make_dqn_forward(image_input_dims, n_actions, batch,
                               batch_tile=1, compute_dtype=jnp.float32)
    out = jax.block_until_ready(forward(prepped, image_state, xyz_state))
    assert out.shape == (batch, n_actions) and out.dtype == jnp.float32
    assert float(jnp.max(jnp.abs(out - ref_f32))) < 1e-2, "f32 kernel vs f32 reference"

    # bf16-operand path (v6e/v7x MXU-native; all accumulation / bias / ReLU stay in f32).
    prepped_bf16 = prepare_params(params, image_input_dims, n_actions, jnp.bfloat16)
    forward_bf16 = make_dqn_forward(image_input_dims, n_actions, batch,
                                    batch_tile=1, compute_dtype=jnp.bfloat16)
    out_bf16 = jax.block_until_ready(forward_bf16(prepped_bf16, image_state, xyz_state))
    ref_bf16 = jax.block_until_ready(
        reference_forward(params, image_state, xyz_state, compute_dtype=jnp.bfloat16))
    assert float(jnp.max(jnp.abs(out_bf16 - ref_bf16))) < 1e-2, "bf16 kernel vs bf16 reference"
    assert float(jnp.max(jnp.abs(out_bf16 - ref_f32))) < 1e-1, "bf16 kernel vs f32 reference"

    print("KERNEL_OK")
</pallas_src>

<mosaic_0001>
module attributes {stable_mosaic.version = 11 : i64} {
  func.func @_dqn_fused_kernel(%arg0: i32, %arg1: memref<64x256xf32, #tpu.memory_space<vmem>>, %arg2: memref<1x1x3xf32, #tpu.memory_space<vmem>>, %arg3: memref<256x32xf32, #tpu.memory_space<vmem>>, %arg4: memref<1x32xf32, #tpu.memory_space<vmem>>, %arg5: memref<512x64xf32, #tpu.memory_space<vmem>>, %arg6: memref<1x64xf32, #tpu.memory_space<vmem>>, %arg7: memref<576x64xf32, #tpu.memory_space<vmem>>, %arg8: memref<1x64xf32, #tpu.memory_space<vmem>>, %arg9: memref<64x512xf32, #tpu.memory_space<vmem>>, %arg10: memref<1x512xf32, #tpu.memory_space<vmem>>, %arg11: memref<512x16xf32, #tpu.memory_space<vmem>>, %arg12: memref<3x16xf32, #tpu.memory_space<vmem>>, %arg13: memref<1x16xf32, #tpu.memory_space<vmem>>, %arg14: memref<16x6xf32, #tpu.memory_space<vmem>>, %arg15: memref<1x6xf32, #tpu.memory_space<vmem>>, %arg16: memref<1x1x6xf32, #tpu.memory_space<vmem>>, %arg17: memref<64x32xf32, #tpu.memory_space<vmem>>, %arg18: memref<9x512xf32, #tpu.memory_space<vmem>>, %arg19: memref<9x64xf32, #tpu.memory_space<vmem>>, %arg20: memref<1x576xf32, #tpu.memory_space<vmem>>, %arg21: memref<1x64xf32, #tpu.memory_space<vmem>>) attributes {dimension_semantics = [#tpu.dimension_semantics<parallel>], iteration_bounds = array<i64: 2>, scalar_prefetch = 0 : i64, scratch_operands = 5 : i64, tpu.core_type = #tpu.core_type<tc>, window_params = [{transform_indices = @transform_0, window_bounds = array<i64: 64, 256>}, {transform_indices = @transform_1, window_bounds = array<i64: 1, 1, 3>}, {pipeline_mode = #tpu.pipeline_mode<synchronous>, transform_indices = @transform_2, window_bounds = array<i64: 256, 32>}, {pipeline_mode = #tpu.pipeline_mode<synchronous>, transform_indices = @transform_3, window_bounds = array<i64: 1, 32>}, {pipeline_mode = #tpu.pipeline_mode<synchronous>, transform_indices = @transform_4, window_bounds = array<i64: 512, 64>}, {pipeline_mode = #tpu.pipeline_mode<synchronous>, transform_indices = @transform_5, window_bounds = array<i64: 1, 64>}, {pipeline_mode = #tpu.pipeline_mode<synchronous>, transform_indices = @transform_6, window_bounds = array<i64: 576, 64>}, {pipeline_mode = #tpu.pipeline_mode<synchronous>, transform_indices = @transform_7, window_bounds = array<i64: 1, 64>}, {pipeline_mode = #tpu.pipeline_mode<synchronous>, transform_indices = @transform_8, window_bounds = array<i64: 64, 512>}, {pipeline_mode = #tpu.pipeline_mode<synchronous>, transform_indices = @transform_9, window_bounds = array<i64: 1, 512>}, {pipeline_mode = #tpu.pipeline_mode<synchronous>, transform_indices = @transform_10, window_bounds = array<i64: 512, 16>}, {pipeline_mode = #tpu.pipeline_mode<synchronous>, transform_indices = @transform_11, window_bounds = array<i64: 3, 16>}, {pipeline_mode = #tpu.pipeline_mode<synchronous>, transform_indices = @transform_12, window_bounds = array<i64: 1, 16>}, {pipeline_mode = #tpu.pipeline_mode<synchronous>, transform_indices = @transform_13, window_bounds = array<i64: 16, 6>}, {pipeline_mode = #tpu.pipeline_mode<synchronous>, transform_indices = @transform_14, window_bounds = array<i64: 1, 6>}, {transform_indices = @transform_15, window_bounds = array<i64: 1, 1, 6>}]} {
    %c0 = arith.constant 0 : index
    %c0_0 = arith.constant 0 : index
    %0 = vector.load %arg1[%c0, %c0_0] : memref<64x256xf32, #tpu.memory_space<vmem>>, vector<64x256xf32>
    %c0_1 = arith.constant 0 : index
    %c0_2 = arith.constant 0 : index
    %1 = vector.load %arg3[%c0_1, %c0_2] : memref<256x32xf32, #tpu.memory_space<vmem>>, vector<256x32xf32>
    %cst = arith.constant dense<0.000000e+00> : vector<64x32xf32>
    %2 = tpu.matmul %0, %1, %cst {dimension_numbers = #tpu.dot_dimension_numbers<[1], [0], [0], [1], [0, 0, 1, 1], [], []>} : vector<64x256xf32>, vector<256x32xf32>, vector<64x32xf32> -> vector<64x32xf32>
    %c0_3 = arith.constant 0 : index
    %c0_4 = arith.constant 0 : index
    %3 = vector.load %arg4[%c0_3, %c0_4] : memref<1x32xf32, #tpu.memory_space<vmem>>, vector<1x32xf32>
    %4 = vector.broadcast %3 : vector<1x32xf32> to vector<64x32xf32>
    %5 = arith.addf %2, %4 : vector<64x32xf32>
    %cst_5 = arith.constant 0.000000e+00 : f32
    %6 = vector.broadcast %cst_5 : f32 to vector<64x32xf32>
    %7 = arith.maximumf %5, %6 : vector<64x32xf32>
    %c0_6 = arith.constant 0 : index
    %c0_7 = arith.constant 0 : index
    %8 = vector.load %arg17[%c0_6, %c0_7] : memref<64x32xf32, #tpu.memory_space<vmem>>, vector<64x32xf32>
    tpu.vector_store %arg17[%c0_6, %c0_7], %7 {strides = array<i32>} : memref<64x32xf32, #tpu.memory_space<vmem>>, vector<64x32xf32>,
    %c0_8 = arith.constant 0 : index
    %c0_9 = arith.constant 0 : index
    %9 = tpu.strided_load %arg17[%c0_8, %c0_9] {strides = array<i32: 2, 1>} : memref<64x32xf32, #tpu.memory_space<vmem>>, vector<3x32xf32>
    %c0_10 = arith.constant 0 : index
    %c0_11 = arith.constant 0 : index
    %10 = vector.load %arg18[%c0_10, %c0_11] : memref<9x512xf32, #tpu.memory_space<vmem>>, vector<3x32xf32>
    tpu.vector_store %arg18[%c0_10, %c0_11], %9 {strides = array<i32>} : memref<9x512xf32, #tpu.memory_space<vmem>>, vector<3x32xf32>,
    %c1 = arith.constant 1 : index
    %c0_12 = arith.constant 0 : index
    %11 = tpu.strided_load %arg17[%c1, %c0_12] {strides = array<i32: 2, 1>} : memref<64x32xf32, #tpu.memory_space<vmem>>, vector<3x32xf32>
    %c0_13 = arith.constant 0 : index
    %c32 = arith.constant 32 : index
    %12 = vector.load %arg18[%c0_13, %c32] : memref<9x512xf32, #tpu.memory_space<vmem>>, vector<3x32xf32>
    tpu.vector_store %arg18[%c0_13, %c32], %11 {strides = array<i32>} : memref<9x512xf32, #tpu.memory_space<vmem>>, vector<3x32xf32>,
    %c2 = arith.constant 2 : index
    %c0_14 = arith.constant 0 : index
    %13 = tpu.strided_load %arg17[%c2, %c0_14] {strides = array<i32: 2, 1>} : memref<64x32xf32, #tpu.memory_space<vmem>>, vector<3x32xf32>
    %c0_15 = arith.constant 0 : index
    %c64 = arith.constant 64 : index
    %14 = vector.load %arg18[%c0_15, %c64] : memref<9x512xf32, #tpu.memory_space<vmem>>, vector<3x32xf32>
    tpu.vector_store %arg18[%c0_15, %c64], %13 {strides = array<i32>} : memref<9x512xf32, #tpu.memory_space<vmem>>, vector<3x32xf32>,
    %c3 = arith.constant 3 : index
    %c0_16 = arith.constant 0 : index
    %15 = tpu.strided_load %arg17[%c3, %c0_16] {strides = array<i32: 2, 1>} : memref<64x32xf32, #tpu.memory_space<vmem>>, vector<3x32xf32>
    %c0_17 = arith.constant 0 : index
    %c96 = arith.constant 96 : index
    %16 = vector.load %arg18[%c0_17, %c96] : memref<9x512xf32, #tpu.memory_space<vmem>>, vector<3x32xf32>
    tpu.vector_store %arg18[%c0_17, %c96], %15 {strides = array<i32>} : memref<9x512xf32, #tpu.memory_space<vmem>>, vector<3x32xf32>,
    %c8 = arith.constant 8 : index
    %c0_18 = arith.constant 0 : index
    %17 = tpu.strided_load %arg17[%c8, %c0_18] {strides = array<i32: 2, 1>} : memref<64x32xf32, #tpu.memory_space<vmem>>, vector<3x32xf32>
    %c0_19 = arith.constant 0 : index
    %c128 = arith.constant 128 : index
    %18 = vector.load %arg18[%c0_19, %c128] : memref<9x512xf32, #tpu.memory_space<vmem>>, vector<3x32xf32>
    tpu.vector_store %arg18[%c0_19, %c128], %17 {strides = array<i32>} : memref<9x512xf32, #tpu.memory_space<vmem>>, vector<3x32xf32>,
    %c9 = arith.constant 9 : index
    %c0_20 = arith.constant 0 : index
    %19 = tpu.strided_load %arg17[%c9, %c0_20] {strides = array<i32: 2, 1>} : memref<64x32xf32, #tpu.memory_space<vmem>>, vector<3x32xf32>
    %c0_21 = arith.constant 0 : index
    %c160 = arith.constant 160 : index
    %20 = vector.load %arg18[%c0_21, %c160] : memref<9x512xf32, #tpu.memory_space<vmem>>, vector<3x32xf32>
    tpu.vector_store %arg18[%c0_21, %c160], %19 {strides = array<i32>} : memref<9x512xf32, #tpu.memory_space<vmem>>, vector<3x32xf32>,
    %c10 = arith.constant 10 : index
    %c0_22 = arith.constant 0 : index
    %21 = tpu.strided_load %arg17[%c10, %c0_22] {strides = array<i32: 2, 1>} : memref<64x32xf32, #tpu.memory_space<vmem>>, vector<3x32xf32>
    %c0_23 = arith.constant 0 : index
    %c192 = arith.constant 192 : index
    %22 = vector.load %arg18[%c0_23, %c192] : memref<9x512xf32, #tpu.memory_space<vmem>>, vector<3x32xf32>
    tpu.vector_store %arg18[%c0_23, %c192], %21 {strides = array<i32>} : memref<9x512xf32, #tpu.memory_space<vmem>>, vector<3x32xf32>,
    %c11 = arith.constant 11 : index
    %c0_24 = arith.constant 0 : index
    %23 = tpu.strided_load %arg17[%c11, %c0_24] {strides = array<i32: 2, 1>} : memref<64x32xf32, #tpu.memory_space<vmem>>, vector<3x32xf32>
    %c0_25 = arith.constant 0 : index
    %c224 = arith.constant 224 : index
    %24 = vector.load %arg18[%c0_25, %c224] : memref<9x512xf32, #tpu.memory_space<vmem>>, vector<3x32xf32>
    tpu.vector_store %arg18[%c0_25, %c224], %23 {strides = array<i32>} : memref<9x512xf32, #tpu.memory_space<vmem>>, vector<3x32xf32>,
    %c16 = arith.constant 16 : index
    %c0_26 = arith.constant 0 : index
    %25 = tpu.strided_load %arg17[%c16, %c0_26] {strides = array<i32: 2, 1>} : memref<64x32xf32, #tpu.memory_space<vmem>>, vector<3x32xf32>
    %c0_27 = arith.constant 0 : index
    %c256 = arith.constant 256 : index
    %26 = vector.load %arg18[%c0_27, %c256] : memref<9x512xf32, #tpu.memory_space<vmem>>, vector<3x32xf32>
    tpu.vector_store %arg18[%c0_27, %c256], %25 {strides = array<i32>} : memref<9x512xf32, #tpu.memory_space<vmem>>, vector<3x32xf32>,
    %c17 = arith.constant 17 : index
    %c0_28 = arith.constant 0 : index
    %27 = tpu.strided_load %arg17[%c17, %c0_28] {strides = array<i32: 2, 1>} : memref<64x32xf32, #tpu.memory_space<vmem>>, vector<3x32xf32>
    %c0_29 = arith.constant 0 : index
    %c288 = arith.constant 288 : index
    %28 = vector.load %arg18[%c0_29, %c288] : memref<9x512xf32, #tpu.memory_space<vmem>>, vector<3x32xf32>
    tpu.vector_store %arg18[%c0_29, %c288], %27 {strides = array<i32>} : memref<9x512xf32, #tpu.memory_space<vmem>>, vector<3x32xf32>,
    %c18 = arith.constant 18 : index
    %c0_30 = arith.constant 0 : index
    %29 = tpu.strided_load %arg17[%c18, %c0_30] {strides = array<i32: 2, 1>} : memref<64x32xf32, #tpu.memory_space<vmem>>, vector<3x32xf32>
    %c0_31 = arith.constant 0 : index
    %c320 = arith.constant 320 : index
    %30 = vector.load %arg18[%c0_31, %c320] : memref<9x512xf32, #tpu.memory_space<vmem>>, vector<3x32xf32>
    tpu.vector_store %arg18[%c0_31, %c320], %29 {strides = array<i32>} : memref<9x512xf32, #tpu.memory_space<vmem>>, vector<3x32xf32>,
    %c19 = arith.constant 19 : index
    %c0_32 = arith.constant 0 : index
    %31 = tpu.strided_load %arg17[%c19, %c0_32] {strides = array<i32: 2, 1>} : memref<64x32xf32, #tpu.memory_space<vmem>>, vector<3x32xf32>
    %c0_33 = arith.constant 0 : index
    %c352 = arith.constant 352 : index
    %32 = vector.load %arg18[%c0_33, %c352] : memref<9x512xf32, #tpu.memory_space<vmem>>, vector<3x32xf32>
    tpu.vector_store %arg18[%c0_33, %c352], %31 {strides = array<i32>} : memref<9x512xf32, #tpu.memory_space<vmem>>, vector<3x32xf32>,
    %c24 = arith.constant 24 : index
    %c0_34 = arith.constant 0 : index
    %33 = tpu.strided_load %arg17[%c24, %c0_34] {strides = array<i32: 2, 1>} : memref<64x32xf32, #tpu.memory_space<vmem>>, vector<3x32xf32>
    %c0_35 = arith.constant 0 : index
    %c384 = arith.constant 384 : index
    %34 = vector.load %arg18[%c0_35, %c384] : memref<9x512xf32, #tpu.memory_space<vmem>>, vector<3x32xf32>
    tpu.vector_store %arg18[%c0_35, %c384], %33 {strides = array<i32>} : memref<9x512xf32, #tpu.memory_space<vmem>>, vector<3x32xf32>,
    %c25 = arith.constant 25 : index
    %c0_36 = arith.constant 0 : index
    %35 = tpu.strided_load %arg17[%c25, %c0_36] {strides = array<i32: 2, 1>} : memref<64x32xf32, #tpu.memory_space<vmem>>, vector<3x32xf32>
    %c0_37 = arith.constant 0 : index
    %c416 = arith.constant 416 : index
    %36 = vector.load %arg18[%c0_37, %c416] : memref<9x512xf32, #tpu.memory_space<vmem>>, vector<3x32xf32>
    tpu.vector_store %arg18[%c0_37, %c416], %35 {strides = array<i32>} : memref<9x512xf32, #tpu.memory_space<vmem>>, vector<3x32xf32>,
    %c26 = arith.constant 26 : index
    %c0_38 = arith.constant 0 : index
    %37 = tpu.strided_load %arg17[%c26, %c0_38] {strides = array<i32: 2, 1>} : memref<64x32xf32, #tpu.memory_space<vmem>>, vector<3x32xf32>
    %c0_39 = arith.constant 0 : index
    %c448 = arith.constant 448 : index
    %38 = vector.load %arg18[%c0_39, %c448] : memref<9x512xf32, #tpu.memory_space<vmem>>, vector<3x32xf32>
    tpu.vector_store %arg18[%c0_39, %c448], %37 {strides = array<i32>} : memref<9x512xf32, #tpu.memory_space<vmem>>, vector<3x32xf32>,
    %c27 = arith.constant 27 : index
    %c0_40 = arith.constant 0 : index
    %39 = tpu.strided_load %arg17[%c27, %c0_40] {strides = array<i32: 2, 1>} : memref<64x32xf32, #tpu.memory_space<vmem>>, vector<3x32xf32>
    %c0_41 = arith.constant 0 : index
    %c480 = arith.constant 480 : index
    %40 = vector.load %arg18[%c0_41, %c480] : memref<9x512xf32, #tpu.memory_space<vmem>>, vector<3x32xf32>
    tpu.vector_store %arg18[%c0_41, %c480], %39 {strides = array<i32>} : memref<9x512xf32, #tpu.memory_space<vmem>>, vector<3x32xf32>,
    %c16_42 = arith.constant 16 : index
    %c0_43 = arith.constant 0 : index
    %41 = tpu.strided_load %arg17[%c16_42, %c0_43] {strides = array<i32: 2, 1>} : memref<64x32xf32, #tpu.memory_space<vmem>>, vector<3x32xf32>
    %c3_44 = arith.constant 3 : index
    %c0_45 = arith.constant 0 : index
    %42 = vector.load %arg18[%c3_44, %c0_45] : memref<9x512xf32, #tpu.memory_space<vmem>>, vector<3x32xf32>
    tpu.vector_store %arg18[%c3_44, %c0_45], %41 {strides = array<i32>} : memref<9x512xf32, #tpu.memory_space<vmem>>, vector<3x32xf32>,
    %c17_46 = arith.constant 17 : index
    %c0_47 = arith.constant 0 : index
    %43 = tpu.strided_load %arg17[%c17_46, %c0_47] {strides = array<i32: 2, 1>} : memref<64x32xf32, #tpu.memory_space<vmem>>, vector<3x32xf32>
    %c3_48 = arith.constant 3 : index
    %c32_49 = arith.constant 32 : index
    %44 = vector.load %arg18[%c3_48, %c32_49] : memref<9x512xf32, #tpu.memory_space<vmem>>, vector<3x32xf32>
    tpu.vector_store %arg18[%c3_48, %c32_49], %43 {strides = array<i32>} : memref<9x512xf32, #tpu.memory_space<vmem>>, vector<3x32xf32>,
    %c18_50 = arith.constant 18 : index
    %c0_51 = arith.constant 0 : index
    %45 = tpu.strided_load %arg17[%c18_50, %c0_51] {strides = array<i32: 2, 1>} : memref<64x32xf32, #tpu.memory_space<vmem>>, vector<3x32xf32>
    %c3_52 = arith.constant 3 : index
    %c64_53 = arith.constant 64 : index
    %46 = vector.load %arg18[%c3_52, %c64_53] : memref<9x512xf32, #tpu.memory_space<vmem>>, vector<3x32xf32>
    tpu.vector_store %arg18[%c3_52, %c64_53], %45 {strides = array<i32>} : memref<9x512xf32, #tpu.memory_space<vmem>>, vector<3x32xf32>,
    %c19_54 = arith.constant 19 : index
    %c0_55 = arith.constant 0 : index
    %47 = tpu.strided_load %arg17[%c19_54, %c0_55] {strides = array<i32: 2, 1>} : memref<64x32xf32, #tpu.memory_space<vmem>>, vector<3x32xf32>
    %c3_56 = arith.constant 3 : index
    %c96_57 = arith.constant 96 : index
    %48 = vector.load %arg18[%c3_56, %c96_57] : memref<9x512xf32, #tpu.memory_space<vmem>>, vector<3x32xf32>
    tpu.vector_store %arg18[%c3_56, %c96_57], %47 {strides = array<i32>} : memref<9x512xf32, #tpu.memory_space<vmem>>, vector<3x32xf32>,
    %c24_58 = arith.constant 24 : index
    %c0_59 = arith.constant 0 : index
    %49 = tpu.strided_load %arg17[%c24_58, %c0_59] {strides = array<i32: 2, 1>} : memref<64x32xf32, #tpu.memory_space<vmem>>, vector<3x32xf32>
    %c3_60 = arith.constant 3 : index
    %c128_61 = arith.constant 128 : index
    %50 = vector.load %arg18[%c3_60, %c128_61] : memref<9x512xf32, #tpu.memory_space<vmem>>, vector<3x32xf32>
    tpu.vector_store %arg18[%c3_60, %c128_61], %49 {strides = array<i32>} : memref<9x512xf32, #tpu.memory_space<vmem>>, vector<3x32xf32>,
    %c25_62 = arith.constant 25 : index
    %c0_63 = arith.constant 0 : index
    %51 = tpu.strided_load %arg17[%c25_62, %c0_63] {strides = array<i32: 2, 1>} : memref<64x32xf32, #tpu.memory_space<vmem>>, vector<3x32xf32>
    %c3_64 = arith.constant 3 : index
    %c160_65 = arith.constant 160 : index
    %52 = vector.load %arg18[%c3_64, %c160_65] : memref<9x512xf32, #tpu.memory_space<vmem>>, vector<3x32xf32>
    tpu.vector_store %arg18[%c3_64, %c160_65], %51 {strides = array<i32>} : memref<9x512xf32, #tpu.memory_space<vmem>>, vector<3x32xf32>,
    %c26_66 = arith.constant 26 : index
    %c0_67 = arith.constant 0 : index
    %53 = tpu.strided_load %arg17[%c26_66, %c0_67] {strides = array<i32: 2, 1>} : memref<64x32xf32, #tpu.memory_space<vmem>>, vector<3x32xf32>
    %c3_68 = arith.constant 3 : index
    %c192_69 = arith.constant 192 : index
    %54 = vector.load %arg18[%c3_68, %c192_69] : memref<9x512xf32, #tpu.memory_space<vmem>>, vector<3x32xf32>
    tpu.vector_store %arg18[%c3_68, %c192_69], %53 {strides = array<i32>} : memref<9x512xf32, #tpu.memory_space<vmem>>, vector<3x32xf32>,
    %c27_70 = arith.constant 27 : index
    %c0_71 = arith.constant 0 : index
    %55 = tpu.strided_load %arg17[%c27_70, %c0_71] {strides = array<i32: 2, 1>} : memref<64x32xf32, #tpu.memory_space<vmem>>, vector<3x32xf32>
    %c3_72 = arith.constant 3 : index
    %c224_73 = arith.constant 224 : index
    %56 = vector.load %arg18[%c3_72, %c224_73] : memref<9x512xf32, #tpu.memory_space<vmem>>, vector<3x32xf32>
    tpu.vector_store %arg18[%c3_72, %c224_73], %55 {strides = array<i32>} : memref<9x512xf32, #tpu.memory_space<vmem>>, vector<3x32xf32>,
    %c32_74 = arith.constant 32 : index
    %c0_75 = arith.constant 0 : index
    %57 = tpu.strided_load %arg17[%c32_74, %c0_75] {strides = array<i32: 2, 1>} : memref<64x32xf32, #tpu.memory_space<vmem>>, vector<3x32xf32>
    %c3_76 = arith.constant 3 : index
    %c256_77 = arith.constant 256 : index
    %58 = vector.load %arg18[%c3_76, %c256_77] : memref<9x512xf32, #tpu.memory_space<vmem>>, vector<3x32xf32>
    tpu.vector_store %arg18[%c3_76, %c256_77], %57 {strides = array<i32>} : memref<9x512xf32, #tpu.memory_space<vmem>>, vector<3x32xf32>,
    %c33 = arith.constant 33 : index
    %c0_78 = arith.constant 0 : index
    %59 = tpu.strided_load %arg17[%c33, %c0_78] {strides = array<i32: 2, 1>} : memref<64x32xf32, #tpu.memory_space<vmem>>, vector<3x32xf32>
    %c3_79 = arith.constant 3 : index
    %c288_80 = arith.constant 288 : index
    %60 = vector.load %arg18[%c3_79, %c288_80] : memref<9x512xf32, #tpu.memory_space<vmem>>, vector<3x32xf32>
    tpu.vector_store %arg18[%c3_79, %c288_80], %59 {strides = array<i32>} : memref<9x512xf32, #tpu.memory_space<vmem>>, vector<3x32xf32>,
    %c34 = arith.constant 34 : index
    %c0_81 = arith.constant 0 : index
    %61 = tpu.strided_load %arg17[%c34, %c0_81] {strides = array<i32: 2, 1>} : memref<64x32xf32, #tpu.memory_space<vmem>>, vector<3x32xf32>
    %c3_82 = arith.constant 3 : index
    %c320_83 = arith.constant 320 : index
    %62 = vector.load %arg18[%c3_82, %c320_83] : memref<9x512xf32, #tpu.memory_space<vmem>>, vector<3x32xf32>
    tpu.vector_store %arg18[%c3_82, %c320_83], %61 {strides = array<i32>} : memref<9x512xf32, #tpu.memory_space<vmem>>, vector<3x32xf32>,
    %c35 = arith.constant 35 : index
    %c0_84 = arith.constant 0 : index
    %63 = tpu.strided_load %arg17[%c35, %c0_84] {strides = array<i32: 2, 1>} : memref<64x32xf32, #tpu.memory_space<vmem>>, vector<3x32xf32>
    %c3_85 = arith.constant 3 : index
    %c352_86 = arith.constant 352 : index
    %64 = vector.load %arg18[%c3_85, %c352_86] : memref<9x512xf32, #tpu.memory_space<vmem>>, vector<3x32xf32>
    tpu.vector_store %arg18[%c3_85, %c352_86], %63 {strides = array<i32>} : memref<9x512xf32, #tpu.memory_space<vmem>>, vector<3x32xf32>,
    %c40 = arith.constant 40 : index
    %c0_87 = arith.constant 0 : index
    %65 = tpu.strided_load %arg17[%c40, %c0_87] {strides = array<i32: 2, 1>} : memref<64x32xf32, #tpu.memory_space<vmem>>, vector<3x32xf32>
    %c3_88 = arith.constant 3 : index
    %c384_89 = arith.constant 384 : index
    %66 = vector.load %arg18[%c3_88, %c384_89] : memref<9x512xf32, #tpu.memory_space<vmem>>, vector<3x32xf32>
    tpu.vector_store %arg18[%c3_88, %c384_89], %65 {strides = array<i32>} : memref<9x512xf32, #tpu.memory_space<vmem>>, vector<3x32xf32>,
    %c41 = arith.constant 41 : index
    %c0_90 = arith.constant 0 : index
    %67 = tpu.strided_load %arg17[%c41, %c0_90] {strides = array<i32: 2, 1>} : memref<64x32xf32, #tpu.memory_space<vmem>>, vector<3x32xf32>
    %c3_91 = arith.constant 3 : index
    %c416_92 = arith.constant 416 : index
    %68 = vector.load %arg18[%c3_91, %c416_92] : memref<9x512xf32, #tpu.memory_space<vmem>>, vector<3x32xf32>
    tpu.vector_store %arg18[%c3_91, %c416_92], %67 {strides = array<i32>} : memref<9x512xf32, #tpu.memory_space<vmem>>, vector<3x32xf32>,
    %c42 = arith.constant 42 : index
    %c0_93 = arith.constant 0 : index
    %69 = tpu.strided_load %arg17[%c42, %c0_93] {strides = array<i32: 2, 1>} : memref<64x32xf32, #tpu.memory_space<vmem>>, vector<3x32xf32>
    %c3_94 = arith.constant 3 : index
    %c448_95 = arith.constant 448 : index
    %70 = vector.load %arg18[%c3_94, %c448_95] : memref<9x512xf32, #tpu.memory_space<vmem>>, vector<3x32xf32>
    tpu.vector_store %arg18[%c3_94, %c448_95], %69 {strides = array<i32>} : memref<9x512xf32, #tpu.memory_space<vmem>>, vector<3x32xf32>,
    %c43 = arith.constant 43 : index
    %c0_96 = arith.constant 0 : index
    %71 = tpu.strided_load %arg17[%c43, %c0_96] {strides = array<i32: 2, 1>} : memref<64x32xf32, #tpu.memory_space<vmem>>, vector<3x32xf32>
    %c3_97 = arith.constant 3 : index
    %c480_98 = arith.constant 480 : index
    %72 = vector.load %arg18[%c3_97, %c480_98] : memref<9x512xf32, #tpu.memory_space<vmem>>, vector<3x32xf32>
    tpu.vector_store %arg18[%c3_97, %c480_98], %71 {strides = array<i32>} : memref<9x512xf32, #tpu.memory_space<vmem>>, vector<3x32xf32>,
    %c32_99 = arith.constant 32 : index
    %c0_100 = arith.constant 0 : index
    %73 = tpu.strided_load %arg17[%c32_99, %c0_100] {strides = array<i32: 2, 1>} : memref<64x32xf32, #tpu.memory_space<vmem>>, vector<3x32xf32>
    %c6 = arith.constant 6 : index
    %c0_101 = arith.constant 0 : index
    %74 = vector.load %arg18[%c6, %c0_101] : memref<9x512xf32, #tpu.memory_space<vmem>>, vector<3x32xf32>
    tpu.vector_store %arg18[%c6, %c0_101], %73 {strides = array<i32>} : memref<9x512xf32, #tpu.memory_space<vmem>>, vector<3x32xf32>,
    %c33_102 = arith.constant 33 : index
    %c0_103 = arith.constant 0 : index
    %75 = tpu.strided_load %arg17[%c33_102, %c0_103] {strides = array<i32: 2, 1>} : memref<64x32xf32, #tpu.memory_space<vmem>>, vector<3x32xf32>
    %c6_104 = arith.constant 6 : index
    %c32_105 = arith.constant 32 : index
    %76 = vector.load %arg18[%c6_104, %c32_105] : memref<9x512xf32, #tpu.memory_space<vmem>>, vector<3x32xf32>
    tpu.vector_store %arg18[%c6_104, %c32_105], %75 {strides = array<i32>} : memref<9x512xf32, #tpu.memory_space<vmem>>, vector<3x32xf32>,
    %c34_106 = arith.constant 34 : index
    %c0_107 = arith.constant 0 : index
    %77 = tpu.strided_load %arg17[%c34_106, %c0_107] {strides = array<i32: 2, 1>} : memref<64x32xf32, #tpu.memory_space<vmem>>, vector<3x32xf32>
    %c6_108 = arith.constant 6 : index
    %c64_109 = arith.constant 64 : index
    %78 = vector.load %arg18[%c6_108, %c64_109] : memref<9x512xf32, #tpu.memory_space<vmem>>, vector<3x32xf32>
    tpu.vector_store %arg18[%c6_108, %c64_109], %77 {strides = array<i32>} : memref<9x512xf32, #tpu.memory_space<vmem>>, vector<3x32xf32>,
    %c35_110 = arith.constant 35 : index
    %c0_111 = arith.constant 0 : index
    %79 = tpu.strided_load %arg17[%c35_110, %c0_111] {strides = array<i32: 2, 1>} : memref<64x32xf32, #tpu.memory_space<vmem>>, vector<3x32xf32>
    %c6_112 = arith.constant 6 : index
    %c96_113 = arith.constant 96 : index
    %80 = vector.load %arg18[%c6_112, %c96_113] : memref<9x512xf32, #tpu.memory_space<vmem>>, vector<3x32xf32>
    tpu.vector_store %arg18[%c6_112, %c96_113], %79 {strides = array<i32>} : memref<9x512xf32, #tpu.memory_space<vmem>>, vector<3x32xf32>,
    %c40_114 = arith.constant 40 : index
    %c0_115 = arith.constant 0 : index
    %81 = tpu.strided_load %arg17[%c40_114, %c0_115] {strides = array<i32: 2, 1>} : memref<64x32xf32, #tpu.memory_space<vmem>>, vector<3x32xf32>
    %c6_116 = arith.constant 6 : index
    %c128_117 = arith.constant 128 : index
    %82 = vector.load %arg18[%c6_116, %c128_117] : memref<9x512xf32, #tpu.memory_space<vmem>>, vector<3x32xf32>
    tpu.vector_store %arg18[%c6_116, %c128_117], %81 {strides = array<i32>} : memref<9x512xf32, #tpu.memory_space<vmem>>, vector<3x32xf32>,
    %c41_118 = arith.constant 41 : index
    %c0_119 = arith.constant 0 : index
    %83 = tpu.strided_load %arg17[%c41_118, %c0_119] {strides = array<i32: 2, 1>} : memref<64x32xf32, #tpu.memory_space<vmem>>, vector<3x32xf32>
    %c6_120 = arith.constant 6 : index
    %c160_121 = arith.constant 160 : index
    %84 = vector.load %arg18[%c6_120, %c160_121] : memref<9x512xf32, #tpu.memory_space<vmem>>, vector<3x32xf32>
    tpu.vector_store %arg18[%c6_120, %c160_121], %83 {strides = array<i32>} : memref<9x512xf32, #tpu.memory_space<vmem>>, vector<3x32xf32>,
    %c42_122 = arith.constant 42 : index
    %c0_123 = arith.constant 0 : index
    %85 = tpu.strided_load %arg17[%c42_122, %c0_123] {strides = array<i32: 2, 1>} : memref<64x32xf32, #tpu.memory_space<vmem>>, vector<3x32xf32>
    %c6_124 = arith.constant 6 : index
    %c192_125 = arith.constant 192 : index
    %86 = vector.load %arg18[%c6_124, %c192_125] : memref<9x512xf32, #tpu.memory_space<vmem>>, vector<3x32xf32>
    tpu.vector_store %arg18[%c6_124, %c192_125], %85 {strides = array<i32>} : memref<9x512xf32, #tpu.memory_space<vmem>>, vector<3x32xf32>,
    %c43_126 = arith.constant 43 : index
    %c0_127 = arith.constant 0 : index
    %87 = tpu.strided_load %arg17[%c43_126, %c0_127] {strides = array<i32: 2, 1>} : memref<64x32xf32, #tpu.memory_space<vmem>>, vector<3x32xf32>
    %c6_128 = arith.constant 6 : index
    %c224_129 = arith.constant 224 : index
    %88 = vector.load %arg18[%c6_128, %c224_129] : memref<9x512xf32, #tpu.memory_space<vmem>>, vector<3x32xf32>
    tpu.vector_store %arg18[%c6_128, %c224_129], %87 {strides = array<i32>} : memref<9x512xf32, #tpu.memory_space<vmem>>, vector<3x32xf32>,
    %c48 = arith.constant 48 : index
    %c0_130 = arith.constant 0 : index
    %89 = tpu.strided_load %arg17[%c48, %c0_130] {strides = array<i32: 2, 1>} : memref<64x32xf32, #tpu.memory_space<vmem>>, vector<3x32xf32>
    %c6_131 = arith.constant 6 : index
    %c256_132 = arith.constant 256 : index
    %90 = vector.load %arg18[%c6_131, %c256_132] : memref<9x512xf32, #tpu.memory_space<vmem>>, vector<3x32xf32>
    tpu.vector_store %arg18[%c6_131, %c256_132], %89 {strides = array<i32>} : memref<9x512xf32, #tpu.memory_space<vmem>>, vector<3x32xf32>,
    %c49 = arith.constant 49 : index
    %c0_133 = arith.constant 0 : index
    %91 = tpu.strided_load %arg17[%c49, %c0_133] {strides = array<i32: 2, 1>} : memref<64x32xf32, #tpu.memory_space<vmem>>, vector<3x32xf32>
    %c6_134 = arith.constant 6 : index
    %c288_135 = arith.constant 288 : index
    %92 = vector.load %arg18[%c6_134, %c288_135] : memref<9x512xf32, #tpu.memory_space<vmem>>, vector<3x32xf32>
    tpu.vector_store %arg18[%c6_134, %c288_135], %91 {strides = array<i32>} : memref<9x512xf32, #tpu.memory_space<vmem>>, vector<3x32xf32>,
    %c50 = arith.constant 50 : index
    %c0_136 = arith.constant 0 : index
    %93 = tpu.strided_load %arg17[%c50, %c0_136] {strides = array<i32: 2, 1>} : memref<64x32xf32, #tpu.memory_space<vmem>>, vector<3x32xf32>
    %c6_137 = arith.constant 6 : index
    %c320_138 = arith.constant 320 : index
    %94 = vector.load %arg18[%c6_137, %c320_138] : memref<9x512xf32, #tpu.memory_space<vmem>>, vector<3x32xf32>
    tpu.vector_store %arg18[%c6_137, %c320_138], %93 {strides = array<i32>} : memref<9x512xf32, #tpu.memory_space<vmem>>, vector<3x32xf32>,
    %c51 = arith.constant 51 : index
    %c0_139 = arith.constant 0 : index
    %95 = tpu.strided_load %arg17[%c51, %c0_139] {strides = array<i32: 2, 1>} : memref<64x32xf32, #tpu.memory_space<vmem>>, vector<3x32xf32>
    %c6_140 = arith.constant 6 : index
    %c352_141 = arith.constant 352 : index
    %96 = vector.load %arg18[%c6_140, %c352_141] : memref<9x512xf32, #tpu.memory_space<vmem>>, vector<3x32xf32>
    tpu.vector_store %arg18[%c6_140, %c352_141], %95 {strides = array<i32>} : memref<9x512xf32, #tpu.memory_space<vmem>>, vector<3x32xf32>,
    %c56 = arith.constant 56 : index
    %c0_142 = arith.constant 0 : index
    %97 = tpu.strided_load %arg17[%c56, %c0_142] {strides = array<i32: 2, 1>} : memref<64x32xf32, #tpu.memory_space<vmem>>, vector<3x32xf32>
    %c6_143 = arith.constant 6 : index
    %c384_144 = arith.constant 384 : index
    %98 = vector.load %arg18[%c6_143, %c384_144] : memref<9x512xf32, #tpu.memory_space<vmem>>, vector<3x32xf32>
    tpu.vector_store %arg18[%c6_143, %c384_144], %97 {strides = array<i32>} : memref<9x512xf32, #tpu.memory_space<vmem>>, vector<3x32xf32>,
    %c57 = arith.constant 57 : index
    %c0_145 = arith.constant 0 : index
    %99 = tpu.strided_load %arg17[%c57, %c0_145] {strides = array<i32: 2, 1>} : memref<64x32xf32, #tpu.memory_space<vmem>>, vector<3x32xf32>
    %c6_146 = arith.constant 6 : index
    %c416_147 = arith.constant 416 : index
    %100 = vector.load %arg18[%c6_146, %c416_147] : memref<9x512xf32, #tpu.memory_space<vmem>>, vector<3x32xf32>
    tpu.vector_store %arg18[%c6_146, %c416_147], %99 {strides = array<i32>} : memref<9x512xf32, #tpu.memory_space<vmem>>, vector<3x32xf32>,
    %c58 = arith.constant 58 : index
    %c0_148 = arith.constant 0 : index
    %101 = tpu.strided_load %arg17[%c58, %c0_148] {strides = array<i32: 2, 1>} : memref<64x32xf32, #tpu.memory_space<vmem>>, vector<3x32xf32>
    %c6_149 = arith.constant 6 : index
    %c448_150 = arith.constant 448 : index
    %102 = vector.load %arg18[%c6_149, %c448_150] : memref<9x512xf32, #tpu.memory_space<vmem>>, vector<3x32xf32>
    tpu.vector_store %arg18[%c6_149, %c448_150], %101 {strides = array<i32>} : memref<9x512xf32, #tpu.memory_space<vmem>>, vector<3x32xf32>,
    %c59 = arith.constant 59 : index
    %c0_151 = arith.constant 0 : index
    %103 = tpu.strided_load %arg17[%c59, %c0_151] {strides = array<i32: 2, 1>} : memref<64x32xf32, #tpu.memory_space<vmem>>, vector<3x32xf32>
    %c6_152 = arith.constant 6 : index
    %c480_153 = arith.constant 480 : index
    %104 = vector.load %arg18[%c6_152, %c480_153] : memref<9x512xf32, #tpu.memory_space<vmem>>, vector<3x32xf32>
    tpu.vector_store %arg18[%c6_152, %c480_153], %103 {strides = array<i32>} : memref<9x512xf32, #tpu.memory_space<vmem>>, vector<3x32xf32>,
    %c0_154 = arith.constant 0 : index
    %c0_155 = arith.constant 0 : index
    %105 = vector.load %arg18[%c0_154, %c0_155] : memref<9x512xf32, #tpu.memory_space<vmem>>, vector<9x512xf32>
    %c0_156 = arith.constant 0 : index
    %c0_157 = arith.constant 0 : index
    %106 = vector.load %arg5[%c0_156, %c0_157] : memref<512x64xf32, #tpu.memory_space<vmem>>, vector<512x64xf32>
    %cst_158 = arith.constant dense<0.000000e+00> : vector<9x64xf32>
    %107 = tpu.matmul %105, %106, %cst_158 {dimension_numbers = #tpu.dot_dimension_numbers<[1], [0], [0], [1], [0, 0, 1, 1], [], []>} : vector<9x512xf32>, vector<512x64xf32>, vector<9x64xf32> -> vector<9x64xf32>
    %c0_159 = arith.constant 0 : index
    %c0_160 = arith.constant 0 : index
    %108 = vector.load %arg6[%c0_159, %c0_160] : memref<1x64xf32, #tpu.memory_space<vmem>>, vector<1x64xf32>
    %109 = vector.broadcast %108 : vector<1x64xf32> to vector<9x64xf32>
    %110 = arith.addf %107, %109 : vector<9x64xf32>
    %cst_161 = arith.constant 0.000000e+00 : f32
    %111 = vector.broadcast %cst_161 : f32 to vector<9x64xf32>
    %112 = arith.maximumf %110, %111 : vector<9x64xf32>
    %c0_162 = arith.constant 0 : index
    %c0_163 = arith.constant 0 : index
    %113 = vector.load %arg19[%c0_162, %c0_163] : memref<9x64xf32, #tpu.memory_space<vmem>>, vector<9x64xf32>
    tpu.vector_store %arg19[%c0_162, %c0_163], %112 {strides = array<i32>} : memref<9x64xf32, #tpu.memory_space<vmem>>, vector<9x64xf32>,
    %c0_164 = arith.constant 0 : index
    %c0_165 = arith.constant 0 : index
    %114 = vector.load %arg19[%c0_164, %c0_165] : memref<9x64xf32, #tpu.memory_space<vmem>>, vector<1x64xf32>
    %c0_166 = arith.constant 0 : index
    %c0_167 = arith.constant 0 : index
    %115 = vector.load %arg20[%c0_166, %c0_167] : memref<1x576xf32, #tpu.memory_space<vmem>>, vector<1x64xf32>
    tpu.vector_store %arg20[%c0_166, %c0_167], %114 {strides = array<i32>} : memref<1x576xf32, #tpu.memory_space<vmem>>, vector<1x64xf32>,
    %c1_168 = arith.constant 1 : index
    %c0_169 = arith.constant 0 : index
    %116 = vector.load %arg19[%c1_168, %c0_169] : memref<9x64xf32, #tpu.memory_space<vmem>>, vector<1x64xf32>
    %c0_170 = arith.constant 0 : index
    %c64_171 = arith.constant 64 : index
    %117 = vector.load %arg20[%c0_170, %c64_171] : memref<1x576xf32, #tpu.memory_space<vmem>>, vector<1x64xf32>
    tpu.vector_store %arg20[%c0_170, %c64_171], %116 {strides = array<i32>} : memref<1x576xf32, #tpu.memory_space<vmem>>, vector<1x64xf32>,
    %c2_172 = arith.constant 2 : index
    %c0_173 = arith.constant 0 : index
    %118 = vector.load %arg19[%c2_172, %c0_173] : memref<9x64xf32, #tpu.memory_space<vmem>>, vector<1x64xf32>
    %c0_174 = arith.constant 0 : index
    %c128_175 = arith.constant 128 : index
    %119 = vector.load %arg20[%c0_174, %c128_175] : memref<1x576xf32, #tpu.memory_space<vmem>>, vector<1x64xf32>
    tpu.vector_store %arg20[%c0_174, %c128_175], %118 {strides = array<i32>} : memref<1x576xf32, #tpu.memory_space<vmem>>, vector<1x64xf32>,
    %c3_176 = arith.constant 3 : index
    %c0_177 = arith.constant 0 : index
    %120 = vector.load %arg19[%c3_176, %c0_177] : memref<9x64xf32, #tpu.memory_space<vmem>>, vector<1x64xf32>
    %c0_178 = arith.constant 0 : index
    %c192_179 = arith.constant 192 : index
    %121 = vector.load %arg20[%c0_178, %c192_179] : memref<1x576xf32, #tpu.memory_space<vmem>>, vector<1x64xf32>
    tpu.vector_store %arg20[%c0_178, %c192_179], %120 {strides = array<i32>} : memref<1x576xf32, #tpu.memory_space<vmem>>, vector<1x64xf32>,
    %c4 = arith.constant 4 : index
    %c0_180 = arith.constant 0 : index
    %122 = vector.load %arg19[%c4, %c0_180] : memref<9x64xf32, #tpu.memory_space<vmem>>, vector<1x64xf32>
    %c0_181 = arith.constant 0 : index
    %c256_182 = arith.constant 256 : index
    %123 = vector.load %arg20[%c0_181, %c256_182] : memref<1x576xf32, #tpu.memory_space<vmem>>, vector<1x64xf32>
    tpu.vector_store %arg20[%c0_181, %c256_182], %122 {strides = array<i32>} : memref<1x576xf32, #tpu.memory_space<vmem>>, vector<1x64xf32>,
    %c5 = arith.constant 5 : index
    %c0_183 = arith.constant 0 : index
    %124 = vector.load %arg19[%c5, %c0_183] : memref<9x64xf32, #tpu.memory_space<vmem>>, vector<1x64xf32>
    %c0_184 = arith.constant 0 : index
    %c320_185 = arith.constant 320 : index
    %125 = vector.load %arg20[%c0_184, %c320_185] : memref<1x576xf32, #tpu.memory_space<vmem>>, vector<1x64xf32>
    tpu.vector_store %arg20[%c0_184, %c320_185], %124 {strides = array<i32>} : memref<1x576xf32, #tpu.memory_space<vmem>>, vector<1x64xf32>,
    %c6_186 = arith.constant 6 : index
    %c0_187 = arith.constant 0 : index
    %126 = vector.load %arg19[%c6_186, %c0_187] : memref<9x64xf32, #tpu.memory_space<vmem>>, vector<1x64xf32>
    %c0_188 = arith.constant 0 : index
    %c384_189 = arith.constant 384 : index
    %127 = vector.load %arg20[%c0_188, %c384_189] : memref<1x576xf32, #tpu.memory_space<vmem>>, vector<1x64xf32>
    tpu.vector_store %arg20[%c0_188, %c384_189], %126 {strides = array<i32>} : memref<1x576xf32, #tpu.memory_space<vmem>>, vector<1x64xf32>,
    %c7 = arith.constant 7 : index
    %c0_190 = arith.constant 0 : index
    %128 = vector.load %arg19[%c7, %c0_190] : memref<9x64xf32, #tpu.memory_space<vmem>>, vector<1x64xf32>
    %c0_191 = arith.constant 0 : index
    %c448_192 = arith.constant 448 : index
    %129 = vector.load %arg20[%c0_191, %c448_192] : memref<1x576xf32, #tpu.memory_space<vmem>>, vector<1x64xf32>
    tpu.vector_store %arg20[%c0_191, %c448_192], %128 {strides = array<i32>} : memref<1x576xf32, #tpu.memory_space<vmem>>, vector<1x64xf32>,
    %c8_193 = arith.constant 8 : index
    %c0_194 = arith.constant 0 : index
    %130 = vector.load %arg19[%c8_193, %c0_194] : memref<9x64xf32, #tpu.memory_space<vmem>>, vector<1x64xf32>
    %c0_195 = arith.constant 0 : index
    %c512 = arith.constant 512 : index
    %131 = vector.load %arg20[%c0_195, %c512] : memref<1x576xf32, #tpu.memory_space<vmem>>, vector<1x64xf32>
    tpu.vector_store %arg20[%c0_195, %c512], %130 {strides = array<i32>} : memref<1x576xf32, #tpu.memory_space<vmem>>, vector<1x64xf32>,
    %c0_196 = arith.constant 0 : index
    %c0_197 = arith.constant 0 : index
    %132 = vector.load %arg20[%c0_196, %c0_197] : memref<1x576xf32, #tpu.memory_space<vmem>>, vector<1x576xf32>
    %c0_198 = arith.constant 0 : index
    %c0_199 = arith.constant 0 : index
    %133 = vector.load %arg7[%c0_198, %c0_199] : memref<576x64xf32, #tpu.memory_space<vmem>>, vector<576x64xf32>
    %cst_200 = arith.constant dense<0.000000e+00> : vector<1x64xf32>
    %134 = tpu.matmul %132, %133, %cst_200 {dimension_numbers = #tpu.dot_dimension_numbers<[1], [0], [0], [1], [0, 0, 1, 1], [], []>} : vector<1x576xf32>, vector<576x64xf32>, vector<1x64xf32> -> vector<1x64xf32>
    %c0_201 = arith.constant 0 : index
    %c0_202 = arith.constant 0 : index
    %135 = vector.load %arg8[%c0_201, %c0_202] : memref<1x64xf32, #tpu.memory_space<vmem>>, vector<1x64xf32>
    %136 = arith.addf %134, %135 : vector<1x64xf32>
    %cst_203 = arith.constant 0.000000e+00 : f32
    %137 = vector.broadcast %cst_203 : f32 to vector<1x64xf32>
    %138 = arith.maximumf %136, %137 : vector<1x64xf32>
    %c0_204 = arith.constant 0 : index
    %c0_205 = arith.constant 0 : index
    %139 = vector.load %arg21[%c0_204, %c0_205] : memref<1x64xf32, #tpu.memory_space<vmem>>, vector<1x64xf32>
    tpu.vector_store %arg21[%c0_204, %c0_205], %138 {strides = array<i32>} : memref<1x64xf32, #tpu.memory_space<vmem>>, vector<1x64xf32>,
    %c0_206 = arith.constant 0 : index
    %c0_207 = arith.constant 0 : index
    %140 = vector.load %arg21[%c0_206, %c0_207] : memref<1x64xf32, #tpu.memory_space<vmem>>, vector<1x64xf32>
    %c0_208 = arith.constant 0 : index
    %c0_209 = arith.constant 0 : index
    %141 = vector.load %arg9[%c0_208, %c0_209] : memref<64x512xf32, #tpu.memory_space<vmem>>, vector<64x512xf32>
    %cst_210 = arith.constant dense<0.000000e+00> : vector<1x512xf32>
    %142 = tpu.matmul %140, %141, %cst_210 {dimension_numbers = #tpu.dot_dimension_numbers<[1], [0], [0], [1], [0, 0, 1, 1], [], []>} : vector<1x64xf32>, vector<64x512xf32>, vector<1x512xf32> -> vector<1x512xf32>
    %c0_211 = arith.constant 0 : index
    %c0_212 = arith.constant 0 : index
    %143 = vector.load %arg10[%c0_211, %c0_212] : memref<1x512xf32, #tpu.memory_space<vmem>>, vector<1x512xf32>
    %144 = arith.addf %142, %143 : vector<1x512xf32>
    %cst_213 = arith.constant 0.000000e+00 : f32
    %145 = vector.broadcast %cst_213 : f32 to vector<1x512xf32>
    %146 = arith.maximumf %144, %145 : vector<1x512xf32>
    %c0_214 = arith.constant 0 : index
    %c0_215 = arith.constant 0 : index
    %c0_216 = arith.constant 0 : index
    %147 = vector.load %arg2[%c0_214, %c0_215, %c0_216] : memref<1x1x3xf32, #tpu.memory_space<vmem>>, vector<1x1x3xf32>
    %148 = vector.shape_cast %147 : vector<1x1x3xf32> to vector<1x3xf32>
    %c0_217 = arith.constant 0 : index
    %c0_218 = arith.constant 0 : index
    %149 = vector.load %arg11[%c0_217, %c0_218] : memref<512x16xf32, #tpu.memory_space<vmem>>, vector<512x16xf32>
    %cst_219 = arith.constant dense<0.000000e+00> : vector<1x16xf32>
    %150 = tpu.matmul %146, %149, %cst_219 {dimension_numbers = #tpu.dot_dimension_numbers<[1], [0], [0], [1], [0, 0, 1, 1], [], []>} : vector<1x512xf32>, vector<512x16xf32>, vector<1x16xf32> -> vector<1x16xf32>
    %c0_220 = arith.constant 0 : index
    %c0_221 = arith.constant 0 : index
    %151 = vector.load %arg12[%c0_220, %c0_221] : memref<3x16xf32, #tpu.memory_space<vmem>>, vector<3x16xf32>
    %cst_222 = arith.constant dense<0.000000e+00> : vector<1x16xf32>
    %152 = tpu.matmul %148, %151, %cst_222 {dimension_numbers = #tpu.dot_dimension_numbers<[1], [0], [0], [1], [0, 0, 1, 1], [], []>} : vector<1x3xf32>, vector<3x16xf32>, vector<1x16xf32> -> vector<1x16xf32>
    %153 = arith.addf %150, %152 : vector<1x16xf32>
    %c0_223 = arith.constant 0 : index
    %c0_224 = arith.constant 0 : index
    %154 = vector.load %arg13[%c0_223, %c0_224] : memref<1x16xf32, #tpu.memory_space<vmem>>, vector<1x16xf32>
    %155 = arith.addf %153, %154 : vector<1x16xf32>
    %cst_225 = arith.constant 0.000000e+00 : f32
    %156 = vector.broadcast %cst_225 : f32 to vector<1x16xf32>
    %157 = arith.maximumf %155, %156 : vector<1x16xf32>
    %c0_226 = arith.constant 0 : index
    %c0_227 = arith.constant 0 : index
    %158 = vector.load %arg14[%c0_226, %c0_227] : memref<16x6xf32, #tpu.memory_space<vmem>>, vector<16x6xf32>
    %cst_228 = arith.constant dense<0.000000e+00> : vector<1x6xf32>
    %159 = tpu.matmul %157, %158, %cst_228 {dimension_numbers = #tpu.dot_dimension_numbers<[1], [0], [0], [1], [0, 0, 1, 1], [], []>} : vector<1x16xf32>, vector<16x6xf32>, vector<1x6xf32> -> vector<1x6xf32>
    %c0_229 = arith.constant 0 : index
    %c0_230 = arith.constant 0 : index
    %160 = vector.load %arg15[%c0_229, %c0_230] : memref<1x6xf32, #tpu.memory_space<vmem>>, vector<1x6xf32>
    %161 = arith.addf %159, %160 : vector<1x6xf32>
    %c0_231 = arith.constant 0 : index
    %c0_232 = arith.constant 0 : index
    %c0_233 = arith.constant 0 : index
    %162 = vector.load %arg16[%c0_231, %c0_232, %c0_233] : memref<1x1x6xf32, #tpu.memory_space<vmem>>, vector<1x1x6xf32>
    %163 = vector.shape_cast %162 : vector<1x1x6xf32> to vector<1x6xf32>
    %164 = vector.shape_cast %161 : vector<1x6xf32> to vector<1x1x6xf32>
    tpu.vector_store %arg16[%c0_231, %c0_232, %c0_233], %164 {strides = array<i32>} : memref<1x1x6xf32, #tpu.memory_space<vmem>>, vector<1x1x6xf32>,
    return
  }
  func.func @transform_0(%arg0: i32) -> (i32, i32) {
    %c0_i32 = arith.constant 0 : i32
    %c0_i32_0 = arith.constant 0 : i32
    return %arg0, %c0_i32 : i32, i32
  }
  func.func @transform_1(%arg0: i32) -> (i32, i32, i32) {
    %c0_i32 = arith.constant 0 : i32
    %c0_i32_0 = arith.constant 0 : i32
    %c0_i32_1 = arith.constant 0 : i32
    return %arg0, %c0_i32, %c0_i32_0 : i32, i32, i32
  }
  func.func @transform_2(%arg0: i32) -> (i32, i32) {
    %c0_i32 = arith.constant 0 : i32
    %c0_i32_0 = arith.constant 0 : i32
    %c0_i32_1 = arith.constant 0 : i32
    return %c0_i32, %c0_i32_0 : i32, i32
  }
  func.func @transform_3(%arg0: i32) -> (i32, i32) {
    %c0_i32 = arith.constant 0 : i32
    %c0_i32_0 = arith.constant 0 : i32
    %c0_i32_1 = arith.constant 0 : i32
    return %c0_i32, %c0_i32_0 : i32, i32
  }
  func.func @transform_4(%arg0: i32) -> (i32, i32) {
    %c0_i32 = arith.constant 0 : i32
    %c0_i32_0 = arith.constant 0 : i32
    %c0_i32_1 = arith.constant 0 : i32
    return %c0_i32, %c0_i32_0 : i32, i32
  }
  func.func @transform_5(%arg0: i32) -> (i32, i32) {
    %c0_i32 = arith.constant 0 : i32
    %c0_i32_0 = arith.constant 0 : i32
    %c0_i32_1 = arith.constant 0 : i32
    return %c0_i32, %c0_i32_0 : i32, i32
  }
  func.func @transform_6(%arg0: i32) -> (i32, i32) {
    %c0_i32 = arith.constant 0 : i32
    %c0_i32_0 = arith.constant 0 : i32
    %c0_i32_1 = arith.constant 0 : i32
    return %c0_i32, %c0_i32_0 : i32, i32
  }
  func.func @transform_7(%arg0: i32) -> (i32, i32) {
    %c0_i32 = arith.constant 0 : i32
    %c0_i32_0 = arith.constant 0 : i32
    %c0_i32_1 = arith.constant 0 : i32
    return %c0_i32, %c0_i32_0 : i32, i32
  }
  func.func @transform_8(%arg0: i32) -> (i32, i32) {
    %c0_i32 = arith.constant 0 : i32
    %c0_i32_0 = arith.constant 0 : i32
    %c0_i32_1 = arith.constant 0 : i32
    return %c0_i32, %c0_i32_0 : i32, i32
  }
  func.func @transform_9(%arg0: i32) -> (i32, i32) {
    %c0_i32 = arith.constant 0 : i32
    %c0_i32_0 = arith.constant 0 : i32
    %c0_i32_1 = arith.constant 0 : i32
    return %c0_i32, %c0_i32_0 : i32, i32
  }
  func.func @transform_10(%arg0: i32) -> (i32, i32) {
    %c0_i32 = arith.constant 0 : i32
    %c0_i32_0 = arith.constant 0 : i32
    %c0_i32_1 = arith.constant 0 : i32
    return %c0_i32, %c0_i32_0 : i32, i32
  }
  func.func @transform_11(%arg0: i32) -> (i32, i32) {
    %c0_i32 = arith.constant 0 : i32
    %c0_i32_0 = arith.constant 0 : i32
    %c0_i32_1 = arith.constant 0 : i32
    return %c0_i32, %c0_i32_0 : i32, i32
  }
  func.func @transform_12(%arg0: i32) -> (i32, i32) {
    %c0_i32 = arith.constant 0 : i32
    %c0_i32_0 = arith.constant 0 : i32
    %c0_i32_1 = arith.constant 0 : i32
    return %c0_i32, %c0_i32_0 : i32, i32
  }
  func.func @transform_13(%arg0: i32) -> (i32, i32) {
    %c0_i32 = arith.constant 0 : i32
    %c0_i32_0 = arith.constant 0 : i32
    %c0_i32_1 = arith.constant 0 : i32
    return %c0_i32, %c0_i32_0 : i32, i32
  }
  func.func @transform_14(%arg0: i32) -> (i32, i32) {
    %c0_i32 = arith.constant 0 : i32
    %c0_i32_0 = arith.constant 0 : i32
    %c0_i32_1 = arith.constant 0 : i32
    return %c0_i32, %c0_i32_0 : i32, i32
  }
  func.func @transform_15(%arg0: i32) -> (i32, i32, i32) {
    %c0_i32 = arith.constant 0 : i32
    %c0_i32_0 = arith.constant 0 : i32
    %c0_i32_1 = arith.constant 0 : i32
    return %arg0, %c0_i32, %c0_i32_0 : i32, i32, i32
  }
}

</mosaic_0001>

<llo_original>
// kernel: forward.1
$region0: #{forward.1}
  #allocation0 [shape = 'u32[]', space=smem, size = 0x4, offset = 0x4, fixed_abs, tag = 'smem constant byte address 0x4 - core index']
  #allocation1 [shape = 'u32[144,128]{1,0:T(1,128)}', space=vmem, size = 0x12000, scoped, tag = 'internal scratch']
  #allocation2 [shape = 'f32[64,32]{1,0:T(8,128)}', space=vmem, size = 0x8000, scoped, tag = 'scratch operand']
  #allocation3 [shape = 'f32[9,512]{1,0:T(8,128)}', space=vmem, size = 0x8000, scoped, tag = 'scratch operand']
  #allocation4 [shape = 'f32[9,64]{1,0:T(8,128)}', space=vmem, size = 0x2000, scoped, tag = 'scratch operand']
  #allocation5 [shape = 'f32[1,576]{1,0:T(1,128)}', space=vmem, size = 0xa00, scoped, tag = 'scratch operand']
  #allocation6 [shape = 'f32[1,64]{1,0:T(1,128)}', space=vmem, size = 0x200, scoped, tag = 'scratch operand']
  %s0 = inlined_call_operand.hbm [shape: f32[128,256], index: 0, kind: input, shape index: {}]
  %s1 = inlined_call_operand.hbm [shape: f32[2,1,3], index: 1, kind: input, shape index: {}]
  %s2 = inlined_call_operand.hbm [shape: f32[256,32], index: 2, kind: input, shape index: {}]
  %s3 = inlined_call_operand.hbm [shape: f32[1,32], index: 3, kind: input, shape index: {}]
  %s4 = inlined_call_operand.hbm [shape: f32[512,64], index: 4, kind: input, shape index: {}]
  %s5 = inlined_call_operand.hbm [shape: f32[1,64], index: 5, kind: input, shape index: {}]
  %s6 = inlined_call_operand.hbm [shape: f32[576,64], index: 6, kind: input, shape index: {}]
  %s7 = inlined_call_operand.hbm [shape: f32[1,64], index: 7, kind: input, shape index: {}]
  %s8 = inlined_call_operand.hbm [shape: f32[64,512], index: 8, kind: input, shape index: {}]
  %s9 = inlined_call_operand.hbm [shape: f32[1,512], index: 9, kind: input, shape index: {}]
  %s10 = inlined_call_operand.hbm [shape: f32[512,16], index: 10, kind: input, shape index: {}]
  %s11 = inlined_call_operand.hbm [shape: f32[3,16], index: 11, kind: input, shape index: {}]
  %s12 = inlined_call_operand.hbm [shape: f32[1,16], index: 12, kind: input, shape index: {}]
  %s13 = inlined_call_operand.hbm [shape: f32[16,6], index: 13, kind: input, shape index: {}]
  %s14 = inlined_call_operand.hbm [shape: f32[1,6], index: 14, kind: input, shape index: {}]
  %s15 = inlined_call_operand.hbm [shape: f32[2,1,6], index: 15, kind: output, shape index: {}]
  %s16 = sld [smem:[#allocation0]]
  $region153: #{forward.1} parent=0
    _
  %s18 = ssub.s32 1, %s16
  %s19 = scalar_select 0, %s18, %s16
  $region1: #{forward.1} parent=0
    #allocation7 [shape = 'u8[131072]{0}', space=vmem, size = 0x20000, scoped, tag = 'input window, operand 0']
    #allocation8 [shape = 's32[2]{0}', space=sflag, size = 0x8, scoped, tag = 'scoped memory for forward.1']
    #allocation9 [shape = 's32[2]{0}', space=sflag, size = 0x8, scoped, tag = 'scoped memory for forward.1']
    #allocation10 [shape = 'u8[1024]{0}', space=vmem, size = 0x400, scoped, tag = 'input window, operand 1']
    #allocation11 [shape = 's32[2]{0}', space=sflag, size = 0x8, scoped, tag = 'scoped memory for forward.1']
    #allocation12 [shape = 'u8[131072]{0}', space=vmem, size = 0x20000, scoped, tag = 'input window, operand 2, single buffered']
    #allocation13 [shape = 'u8[512]{0}', space=vmem, size = 0x400, scoped, tag = 'input window, operand 3, single buffered']
    #allocation14 [shape = 's32[1]{0}', space=sflag, size = 0x4, scoped, tag = 'scoped memory for forward.1']
    #allocation15 [shape = 'u8[262144]{0}', space=vmem, size = 0x40000, scoped, tag = 'input window, operand 4, single buffered']
    #allocation16 [shape = 'u8[512]{0}', space=vmem, size = 0x400, scoped, tag = 'input window, operand 5, single buffered']
    #allocation17 [shape = 's32[1]{0}', space=sflag, size = 0x4, scoped, tag = 'scoped memory for forward.1']
    #allocation18 [shape = 'u8[294912]{0}', space=vmem, size = 0x48000, scoped, tag = 'input window, operand 6, single buffered']
    #allocation19 [shape = 'u8[512]{0}', space=vmem, size = 0x400, scoped, tag = 'input window, operand 7, single buffered']
    #allocation20 [shape = 's32[1]{0}', space=sflag, size = 0x4, scoped, tag = 'scoped memory for forward.1']
    #allocation21 [shape = 'u8[131072]{0}', space=vmem, size = 0x20000, scoped, tag = 'input window, operand 8, single buffered']
    #allocation22 [shape = 'u8[2048]{0}', space=vmem, size = 0x800, scoped, tag = 'input window, operand 9, single buffered']
    #allocation23 [shape = 's32[1]{0}', space=sflag, size = 0x4, scoped, tag = 'scoped memory for forward.1']
    #allocation24 [shape = 'u8[262144]{0}', space=vmem, size = 0x40000, scoped, tag = 'input window, operand 10, single buffered']
    #allocation25 [shape = 'u8[2048]{0}', space=vmem, size = 0x800, scoped, tag = 'input window, operand 11, single buffered']
    #allocation26 [shape = 's32[1]{0}', space=sflag, size = 0x4, scoped, tag = 'scoped memory for forward.1']
    #allocation27 [shape = 'u8[512]{0}', space=vmem, size = 0x400, scoped, tag = 'input window, operand 12, single buffered']
    #allocation28 [shape = 'u8[8192]{0}', space=vmem, size = 0x2000, scoped, tag = 'input window, operand 13, single buffered']
    #allocation29 [shape = 's32[1]{0}', space=sflag, size = 0x4, scoped, tag = 'scoped memory for forward.1']
    #allocation30 [shape = 'u8[512]{0}', space=vmem, size = 0x400, scoped, tag = 'input window, operand 14, single buffered']
    #allocation31 [shape = 'u8[1024]{0}', space=vmem, size = 0x400, scoped, tag = 'output window, operand 0']
    %20 = vsyncpa [#allocation8], 0
    %s21 = scalar_lea.sflag [#allocation8], 1
    %22 = vsyncpa %s21, 0
    %23 = vsyncpa [#allocation11], 0
    %s24 = scalar_lea.sflag [#allocation11], 1
    %25 = vsyncpa %s24, 0
    %26 = vsyncpa [#allocation14], 0
    %27 = vsyncpa [#allocation17], 0
    %28 = vsyncpa [#allocation20], 0
    %29 = vsyncpa [#allocation23], 0
    %30 = vsyncpa [#allocation26], 0
    %31 = vsyncpa [#allocation29], 0
    %32 = vsyncpa [#allocation9], 0
    %s33 = scalar_lea.sflag [#allocation9], 1
    %34 = vsyncpa %s33, 0
    loop: start=0, step=1, limit=4
    $region2: #{forward.1} parent=1 // loop_pre_header
      _
    $region3: #{forward.1} parent=1 // loop_header
      %s36 = sphi 0, %s40
      %p37 = scmp.ge.s32.totalorder %s36, 4
      %s46 = sphi 0, %s48
      %s49 = sphi 0, %s46
      %s50 = sphi 0, %s49
      %s66 = sphi 0, %s50
      %s72 = sphi 0, %s74
      %s75 = sphi 0, %s72
      %s76 = sphi 0, %s75
      %s92 = sphi 0, %s76
      %s96 = sphi 0, %s96
      %s98 = sphi 0, %s96
      %s99 = sphi 0, %s98
      %s113 = sphi 0, %s99
      %s117 = sphi 0, %s117
      %s119 = sphi 0, %s117
      %s120 = sphi 0, %s119
      %s134 = sphi 0, %s120
      %s138 = sphi 0, %s138
      %s140 = sphi 0, %s138
      %s141 = sphi 0, %s140
      %s155 = sphi 0, %s141
      %s159 = sphi 0, %s159
      %s161 = sphi 0, %s159
      %s162 = sphi 0, %s161
      %s176 = sphi 0, %s162
      %s180 = sphi 0, %s180
      %s182 = sphi 0, %s180
      %s183 = sphi 0, %s182
      %s197 = sphi 0, %s183
      %s201 = sphi 0, %s201
      %s203 = sphi 0, %s201
      %s204 = sphi 0, %s203
      %s218 = sphi 0, %s204
      %s222 = sphi 0, %s222
      %s224 = sphi 0, %s222
      %s225 = sphi 0, %s224
      %s239 = sphi 0, %s225
      %s243 = sphi 0, %s243
      %s245 = sphi 0, %s243
      %s246 = sphi 0, %s245
      %s260 = sphi 0, %s246
      %s264 = sphi 0, %s264
      %s266 = sphi 0, %s264
      %s267 = sphi 0, %s266
      %s281 = sphi 0, %s267
      %s285 = sphi 0, %s285
      %s287 = sphi 0, %s285
      %s288 = sphi 0, %s287
      %s302 = sphi 0, %s288
      %s306 = sphi 0, %s306
      %s308 = sphi 0, %s306
      %s309 = sphi 0, %s308
      %s323 = sphi 0, %s309
      %s327 = sphi 0, %s327
      %s329 = sphi 0, %s327
      %s330 = sphi 0, %s329
      %s344 = sphi 0, %s330
      %s348 = sphi 0, %s348
      %s350 = sphi 0, %s348
      %s351 = sphi 0, %s350
      %s365 = sphi 0, %s351
      %s371 = sphi 0, %s373
      %s374 = sphi 0, %s371
      %s375 = sphi 0, %s374
      %s391 = sphi 0, %s375
    $region4: #{forward.1} parent=1 // loop_header_branch
      %39 = sbr.rel (%p37) target = $region8
    $region5: #{forward.1} parent=1 // loop_body
      %s41 = ssub.s32 %s36, 1
      %s42 = ssub.s32 %s36, 2
      %s43 = sadd.s32 %s36, 1
      %s44 = ssub.s32 %s36, %s43
      %p45 = scmp.eq.s32.totalorder %s44, 0
      %s47 = sadd.s32 %s46, 1
      %s48 = scalar_select %p45, %s46, %s47
      %p51 = pneg %p45
      %p52 = scmp.eq.s32.totalorder %s36, 1
      %p53 = por %p51, %p52
      %p54 = scmp.ne.s32.totalorder %s46, %s49
      %p55 = scmp.eq.s32.totalorder %s36, 0
      %p56 = por %p54, %p55
      %p57 = scmp.ne.s32.totalorder %s46, %s49
      %p58 = scmp.eq.s32.totalorder %s41, 1
      %p59 = por %p57, %p58
      %p60 = scmp.ne.s32.totalorder %s49, %s50
      %p61 = scmp.eq.s32.totalorder %s41, 0
      %p62 = por %p60, %p61
      %p63 = scmp.ne.s32.totalorder %s49, %s50
      %p64 = scmp.eq.s32.totalorder %s42, 1
      %p65 = por %p63, %p64
      %p67 = scmp.ne.s32.totalorder %s50, %s66
      %p68 = scmp.eq.s32.totalorder %s42, 0
      %p69 = por %p67, %p68
      %s70 = ssub.s32 %s36, %s43
      %p71 = scmp.eq.s32.totalorder %s70, 0
      %s73 = sadd.s32 %s72, 1
      %s74 = scalar_select %p71, %s72, %s73
      %p77 = pneg %p71
      %p78 = scmp.eq.s32.totalorder %s36, 1
      %p79 = por %p77, %p78
      %p80 = scmp.ne.s32.totalorder %s72, %s75
      %p81 = scmp.eq.s32.totalorder %s36, 0
      %p82 = por %p80, %p81
      %p83 = scmp.ne.s32.totalorder %s72, %s75
      %p84 = scmp.eq.s32.totalorder %s41, 1
      %p85 = por %p83, %p84
      %p86 = scmp.ne.s32.totalorder %s75, %s76
      %p87 = scmp.eq.s32.totalorder %s41, 0
      %p88 = por %p86, %p87
      %p89 = scmp.ne.s32.totalorder %s75, %s76
      %p90 = scmp.eq.s32.totalorder %s42, 1
      %p91 = por %p89, %p90
      %p93 = scmp.ne.s32.totalorder %s76, %s92
      %p94 = scmp.eq.s32.totalorder %s42, 0
      %p95 = por %p93, %p94
      %s97 = sadd.s32 %s96, 1
      %p100 = scmp.eq.s32.totalorder %s36, 1
      %p101 = scmp.ne.s32.totalorder %s96, %s98
      %p102 = scmp.eq.s32.totalorder %s36, 0
      %p103 = por %p101, %p102
      %p104 = scmp.ne.s32.totalorder %s96, %s98
      %p105 = scmp.eq.s32.totalorder %s41, 1
      %p106 = por %p104, %p105
      %p107 = scmp.ne.s32.totalorder %s98, %s99
      %p108 = scmp.eq.s32.totalorder %s41, 0
      %p109 = por %p107, %p108
      %p110 = scmp.ne.s32.totalorder %s98, %s99
      %p111 = scmp.eq.s32.totalorder %s42, 1
      %p112 = por %p110, %p111
      %p114 = scmp.ne.s32.totalorder %s99, %s113
      %p115 = scmp.eq.s32.totalorder %s42, 0
      %p116 = por %p114, %p115
      %s118 = sadd.s32 %s117, 1
      %p121 = scmp.eq.s32.totalorder %s36, 1
      %p122 = scmp.ne.s32.totalorder %s117, %s119
      %p123 = scmp.eq.s32.totalorder %s36, 0
      %p124 = por %p122, %p123
      %p125 = scmp.ne.s32.totalorder %s117, %s119
      %p126 = scmp.eq.s32.totalorder %s41, 1
      %p127 = por %p125, %p126
      %p128 = scmp.ne.s32.totalorder %s119, %s120
      %p129 = scmp.eq.s32.totalorder %s41, 0
      %p130 = por %p128, %p129
      %p131 = scmp.ne.s32.totalorder %s119, %s120
      %p132 = scmp.eq.s32.totalorder %s42, 1
      %p133 = por %p131, %p132
      %p135 = scmp.ne.s32.totalorder %s120, %s134
      %p136 = scmp.eq.s32.totalorder %s42, 0
      %p137 = por %p135, %p136
      %s139 = sadd.s32 %s138, 1
      %p142 = scmp.eq.s32.totalorder %s36, 1
      %p143 = scmp.ne.s32.totalorder %s138, %s140
      %p144 = scmp.eq.s32.totalorder %s36, 0
      %p145 = por %p143, %p144
      %p146 = scmp.ne.s32.totalorder %s138, %s140
      %p147 = scmp.eq.s32.totalorder %s41, 1
      %p148 = por %p146, %p147
      %p149 = scmp.ne.s32.totalorder %s140, %s141
      %p150 = scmp.eq.s32.totalorder %s41, 0
      %p151 = por %p149, %p150
      %p152 = scmp.ne.s32.totalorder %s140, %s141
      %p153 = scmp.eq.s32.totalorder %s42, 1
      %p154 = por %p152, %p153
      %p156 = scmp.ne.s32.totalorder %s141, %s155
      %p157 = scmp.eq.s32.totalorder %s42, 0
      %p158 = por %p156, %p157
      %s160 = sadd.s32 %s159, 1
      %p163 = scmp.eq.s32.totalorder %s36, 1
      %p164 = scmp.ne.s32.totalorder %s159, %s161
      %p165 = scmp.eq.s32.totalorder %s36, 0
      %p166 = por %p164, %p165
      %p167 = scmp.ne.s32.totalorder %s159, %s161
      %p168 = scmp.eq.s32.totalorder %s41, 1
      %p169 = por %p167, %p168
      %p170 = scmp.ne.s32.totalorder %s161, %s162
      %p171 = scmp.eq.s32.totalorder %s41, 0
      %p172 = por %p170, %p171
      %p173 = scmp.ne.s32.totalorder %s161, %s162
      %p174 = scmp.eq.s32.totalorder %s42, 1
      %p175 = por %p173, %p174
      %p177 = scmp.ne.s32.totalorder %s162, %s176
      %p178 = scmp.eq.s32.totalorder %s42, 0
      %p179 = por %p177, %p178
      %s181 = sadd.s32 %s180, 1
      %p184 = scmp.eq.s32.totalorder %s36, 1
      %p185 = scmp.ne.s32.totalorder %s180, %s182
      %p186 = scmp.eq.s32.totalorder %s36, 0
      %p187 = por %p185, %p186
      %p188 = scmp.ne.s32.totalorder %s180, %s182
      %p189 = scmp.eq.s32.totalorder %s41, 1
      %p190 = por %p188, %p189
      %p191 = scmp.ne.s32.totalorder %s182, %s183
      %p192 = scmp.eq.s32.totalorder %s41, 0
      %p193 = por %p191, %p192
      %p194 = scmp.ne.s32.totalorder %s182, %s183
      %p195 = scmp.eq.s32.totalorder %s42, 1
      %p196 = por %p194, %p195
      %p198 = scmp.ne.s32.totalorder %s183, %s197
      %p199 = scmp.eq.s32.totalorder %s42, 0
      %p200 = por %p198, %p199
      %s202 = sadd.s32 %s201, 1
      %p205 = scmp.eq.s32.totalorder %s36, 1
      %p206 = scmp.ne.s32.totalorder %s201, %s203
      %p207 = scmp.eq.s32.totalorder %s36, 0
      %p208 = por %p206, %p207
      %p209 = scmp.ne.s32.totalorder %s201, %s203
      %p210 = scmp.eq.s32.totalorder %s41, 1
      %p211 = por %p209, %p210
      %p212 = scmp.ne.s32.totalorder %s203, %s204
      %p213 = scmp.eq.s32.totalorder %s41, 0
      %p214 = por %p212, %p213
      %p215 = scmp.ne.s32.totalorder %s203, %s204
      %p216 = scmp.eq.s32.totalorder %s42, 1
      %p217 = por %p215, %p216
      %p219 = scmp.ne.s32.totalorder %s204, %s218
      %p220 = scmp.eq.s32.totalorder %s42, 0
      %p221 = por %p219, %p220
      %s223 = sadd.s32 %s222, 1
      %p226 = scmp.eq.s32.totalorder %s36, 1
      %p227 = scmp.ne.s32.totalorder %s222, %s224
      %p228 = scmp.eq.s32.totalorder %s36, 0
      %p229 = por %p227, %p228
      %p230 = scmp.ne.s32.totalorder %s222, %s224
      %p231 = scmp.eq.s32.totalorder %s41, 1
      %p232 = por %p230, %p231
      %p233 = scmp.ne.s32.totalorder %s224, %s225
      %p234 = scmp.eq.s32.totalorder %s41, 0
      %p235 = por %p233, %p234
      %p236 = scmp.ne.s32.totalorder %s224, %s225
      %p237 = scmp.eq.s32.totalorder %s42, 1
      %p238 = por %p236, %p237
      %p240 = scmp.ne.s32.totalorder %s225, %s239
      %p241 = scmp.eq.s32.totalorder %s42, 0
      %p242 = por %p240, %p241
      %s244 = sadd.s32 %s243, 1
      %p247 = scmp.eq.s32.totalorder %s36, 1
      %p248 = scmp.ne.s32.totalorder %s243, %s245
      %p249 = scmp.eq.s32.totalorder %s36, 0
      %p250 = por %p248, %p249
      %p251 = scmp.ne.s32.totalorder %s243, %s245
      %p252 = scmp.eq.s32.totalorder %s41, 1
      %p253 = por %p251, %p252
      %p254 = scmp.ne.s32.totalorder %s245, %s246
      %p255 = scmp.eq.s32.totalorder %s41, 0
      %p256 = por %p254, %p255
      %p257 = scmp.ne.s32.totalorder %s245, %s246
      %p258 = scmp.eq.s32.totalorder %s42, 1
      %p259 = por %p257, %p258
      %p261 = scmp.ne.s32.totalorder %s246, %s260
      %p262 = scmp.eq.s32.totalorder %s42, 0
      %p263 = por %p261, %p262
      %s265 = sadd.s32 %s264, 1
      %p268 = scmp.eq.s32.totalorder %s36, 1
      %p269 = scmp.ne.s32.totalorder %s264, %s266
      %p270 = scmp.eq.s32.totalorder %s36, 0
      %p271 = por %p269, %p270
      %p272 = scmp.ne.s32.totalorder %s264, %s266
      %p273 = scmp.eq.s32.totalorder %s41, 1
      %p274 = por %p272, %p273
      %p275 = scmp.ne.s32.totalorder %s266, %s267
      %p276 = scmp.eq.s32.totalorder %s41, 0
      %p277 = por %p275, %p276
      %p278 = scmp.ne.s32.totalorder %s266, %s267
      %p279 = scmp.eq.s32.totalorder %s42, 1
      %p280 = por %p278, %p279
      %p282 = scmp.ne.s32.totalorder %s267, %s281
      %p283 = scmp.eq.s32.totalorder %s42, 0
      %p284 = por %p282, %p283
      %s286 = sadd.s32 %s285, 1
      %p289 = scmp.eq.s32.totalorder %s36, 1
      %p290 = scmp.ne.s32.totalorder %s285, %s287
      %p291 = scmp.eq.s32.totalorder %s36, 0
      %p292 = por %p290, %p291
      %p293 = scmp.ne.s32.totalorder %s285, %s287
      %p294 = scmp.eq.s32.totalorder %s41, 1
      %p295 = por %p293, %p294
      %p296 = scmp.ne.s32.totalorder %s287, %s288
      %p297 = scmp.eq.s32.totalorder %s41, 0
      %p298 = por %p296, %p297
      %p299 = scmp.ne.s32.totalorder %s287, %s288
      %p300 = scmp.eq.s32.totalorder %s42, 1
      %p301 = por %p299, %p300
      %p303 = scmp.ne.s32.totalorder %s288, %s302
      %p304 = scmp.eq.s32.totalorder %s42, 0
      %p305 = por %p303, %p304
      %s307 = sadd.s32 %s306, 1
      %p310 = scmp.eq.s32.totalorder %s36, 1
      %p311 = scmp.ne.s32.totalorder %s306, %s308
      %p312 = scmp.eq.s32.totalorder %s36, 0
      %p313 = por %p311, %p312
      %p314 = scmp.ne.s32.totalorder %s306, %s308
      %p315 = scmp.eq.s32.totalorder %s41, 1
      %p316 = por %p314, %p315
      %p317 = scmp.ne.s32.totalorder %s308, %s309
      %p318 = scmp.eq.s32.totalorder %s41, 0
      %p319 = por %p317, %p318
      %p320 = scmp.ne.s32.totalorder %s308, %s309
      %p321 = scmp.eq.s32.totalorder %s42, 1
      %p322 = por %p320, %p321
      %p324 = scmp.ne.s32.totalorder %s309, %s323
      %p325 = scmp.eq.s32.totalorder %s42, 0
      %p326 = por %p324, %p325
      %s328 = sadd.s32 %s327, 1
      %p331 = scmp.eq.s32.totalorder %s36, 1
      %p332 = scmp.ne.s32.totalorder %s327, %s329
      %p333 = scmp.eq.s32.totalorder %s36, 0
      %p334 = por %p332, %p333
      %p335 = scmp.ne.s32.totalorder %s327, %s329
      %p336 = scmp.eq.s32.totalorder %s41, 1
      %p337 = por %p335, %p336
      %p338 = scmp.ne.s32.totalorder %s329, %s330
      %p339 = scmp.eq.s32.totalorder %s41, 0
      %p340 = por %p338, %p339
      %p341 = scmp.ne.s32.totalorder %s329, %s330
      %p342 = scmp.eq.s32.totalorder %s42, 1
      %p343 = por %p341, %p342
      %p345 = scmp.ne.s32.totalorder %s330, %s344
      %p346 = scmp.eq.s32.totalorder %s42, 0
      %p347 = por %p345, %p346
      %s349 = sadd.s32 %s348, 1
      %p352 = scmp.eq.s32.totalorder %s36, 1
      %p353 = scmp.ne.s32.totalorder %s348, %s350
      %p354 = scmp.eq.s32.totalorder %s36, 0
      %p355 = por %p353, %p354
      %p356 = scmp.ne.s32.totalorder %s348, %s350
      %p357 = scmp.eq.s32.totalorder %s41, 1
      %p358 = por %p356, %p357
      %p359 = scmp.ne.s32.totalorder %s350, %s351
      %p360 = scmp.eq.s32.totalorder %s41, 0
      %p361 = por %p359, %p360
      %p362 = scmp.ne.s32.totalorder %s350, %s351
      %p363 = scmp.eq.s32.totalorder %s42, 1
      %p364 = por %p362, %p363
      %p366 = scmp.ne.s32.totalorder %s351, %s365
      %p367 = scmp.eq.s32.totalorder %s42, 0
      %p368 = por %p366, %p367
      %s369 = ssub.s32 %s36, %s43
      %p370 = scmp.eq.s32.totalorder %s369, 0
      %s372 = sadd.s32 %s371, 1
      %s373 = scalar_select %p370, %s371, %s372
      %p376 = pneg %p370
      %p377 = scmp.eq.s32.totalorder %s36, 1
      %p378 = por %p376, %p377
      %p379 = scmp.ne.s32.totalorder %s371, %s374
      %p380 = scmp.eq.s32.totalorder %s36, 0
      %p381 = por %p379, %p380
      %p382 = scmp.ne.s32.totalorder %s371, %s374
      %p383 = scmp.eq.s32.totalorder %s41, 1
      %p384 = por %p382, %p383
      %p385 = scmp.ne.s32.totalorder %s374, %s375
      %p386 = scmp.eq.s32.totalorder %s41, 0
      %p387 = por %p385, %p386
      %p388 = scmp.ne.s32.totalorder %s374, %s375
      %p389 = scmp.eq.s32.totalorder %s42, 1
      %p390 = por %p388, %p389
      %p392 = scmp.ne.s32.totalorder %s375, %s391
      %p393 = scmp.eq.s32.totalorder %s42, 0
      %p394 = por %p392, %p393
      %p395 = scmp.le.s32.totalorder 1, %s36
      %p396 = scmp.lt.s32.totalorder %s36, 3
      %p397 = pnand %p395, %p396
      %p398 = pneg %p397
      // Predicated region
      $region9: #{forward.1} parent=5 // pred_check
        _
      $region10: #{forward.1} parent=5 // pred_check_branch
        %400 = sbr.rel (%p397) target = $region12
      $region11: #{forward.1} parent=5 // pred_region
        %s401 = ssub.s32 %s36, 1
        // Predicated region
        $region13: #{forward.1} parent=11 // pred_check
          %p402 = pneg %p109
        $region14: #{forward.1} parent=11 // pred_check_branch
          %404 = sbr.rel (%p402) target = $region16
        $region15: #{forward.1} parent=11 // pred_region
          %s406 = ssub.s32 4096, 4096
          %407 = vsyncadd [#allocation11], %s406
          %s408 = sshll.u32 [#allocation12], 4
          %s409 = int_to_ptr.vmem [resolvable:$true] %s408
          %414 = dma.hbm_to_vmem [thread:$0]  %s2, 4096, %s409, [#allocation11], 128, 128, 8
        $region16: #{forward.1} parent=11 // pred_fallthru
          _
        // Predicated region
        $region17: #{forward.1} parent=11 // pred_check
          %p415 = pneg %p130
        $region18: #{forward.1} parent=11 // pred_check_branch
          %417 = sbr.rel (%p415) target = $region20
        $region19: #{forward.1} parent=11 // pred_region
          %s419 = ssub.s32 16, 16
          %420 = vsyncadd [#allocation14], %s419
          %s422 = sshll.u32 [#allocation13], 4
          %s423 = int_to_ptr.vmem [resolvable:$true] %s422
          %425 = dma.hbm_to_vmem [thread:$0]  %s3, 16, %s423, [#allocation14]
        $region20: #{forward.1} parent=11 // pred_fallthru
          _
        // Predicated region
        $region21: #{forward.1} parent=11 // pred_check
          %p426 = pneg %p151
        $region22: #{forward.1} parent=11 // pred_check_branch
          %428 = sbr.rel (%p426) target = $region24
        $region23: #{forward.1} parent=11 // pred_region
          %s430 = ssub.s32 8192, 8192
          %431 = vsyncadd [#allocation14], %s430
          %s432 = sshll.u32 [#allocation15], 4
          %s433 = int_to_ptr.vmem [resolvable:$true] %s432
          %438 = dma.hbm_to_vmem [thread:$0]  %s4, 8192, %s433, [#allocation14], 128, 128, 8
        $region24: #{forward.1} parent=11 // pred_fallthru
          _
        // Predicated region
        $region25: #{forward.1} parent=11 // pred_check
          %p439 = pneg %p172
        $region26: #{forward.1} parent=11 // pred_check_branch
          %441 = sbr.rel (%p439) target = $region28
        $region27: #{forward.1} parent=11 // pred_region
          %s443 = ssub.s32 16, 16
          %444 = vsyncadd [#allocation17], %s443
          %s446 = sshll.u32 [#allocation16], 4
          %s447 = int_to_ptr.vmem [resolvable:$true] %s446
          %449 = dma.hbm_to_vmem [thread:$0]  %s5, 16, %s447, [#allocation17]
        $region28: #{forward.1} parent=11 // pred_fallthru
          _
        // Predicated region
        $region29: #{forward.1} parent=11 // pred_check
          %p450 = pneg %p193
        $region30: #{forward.1} parent=11 // pred_check_branch
          %452 = sbr.rel (%p450) target = $region32
        $region31: #{forward.1} parent=11 // pred_region
          %s454 = ssub.s32 9216, 9216
          %455 = vsyncadd [#allocation17], %s454
          %s456 = sshll.u32 [#allocation18], 4
          %s457 = int_to_ptr.vmem [resolvable:$true] %s456
          %462 = dma.hbm_to_vmem [thread:$0]  %s6, 9216, %s457, [#allocation17], 128, 128, 8
        $region32: #{forward.1} parent=11 // pred_fallthru
          _
        // Predicated region
        $region33: #{forward.1} parent=11 // pred_check
          %p463 = pneg %p214
        $region34: #{forward.1} parent=11 // pred_check_branch
          %465 = sbr.rel (%p463) target = $region36
        $region35: #{forward.1} parent=11 // pred_region
          %s467 = ssub.s32 16, 16
          %468 = vsyncadd [#allocation20], %s467
          %s470 = sshll.u32 [#allocation19], 4
          %s471 = int_to_ptr.vmem [resolvable:$true] %s470
          %473 = dma.hbm_to_vmem [thread:$0]  %s7, 16, %s471, [#allocation20]
        $region36: #{forward.1} parent=11 // pred_fallthru
          _
        // Predicated region
        $region37: #{forward.1} parent=11 // pred_check
          %p474 = pneg %p235
        $region38: #{forward.1} parent=11 // pred_check_branch
          %476 = sbr.rel (%p474) target = $region40
        $region39: #{forward.1} parent=11 // pred_region
          %s478 = ssub.s32 4096, 4096
          %479 = vsyncadd [#allocation20], %s478
          %s480 = sshll.u32 [#allocation21], 4
          %s481 = int_to_ptr.vmem [resolvable:$true] %s480
          %486 = dma.hbm_to_vmem [thread:$0]  %s8, 4096, %s481, [#allocation20], 512, 512, 32
        $region40: #{forward.1} parent=11 // pred_fallthru
          _
        // Predicated region
        $region41: #{forward.1} parent=11 // pred_check
          %p487 = pneg %p256
        $region42: #{forward.1} parent=11 // pred_check_branch
          %489 = sbr.rel (%p487) target = $region44
        $region43: #{forward.1} parent=11 // pred_region
          %s491 = ssub.s32 64, 64
          %492 = vsyncadd [#allocation23], %s491
          %s494 = sshll.u32 [#allocation22], 4
          %s495 = int_to_ptr.vmem [resolvable:$true] %s494
          %497 = dma.hbm_to_vmem [thread:$0]  %s9, 64, %s495, [#allocation23]
        $region44: #{forward.1} parent=11 // pred_fallthru
          _
        // Predicated region
        $region45: #{forward.1} parent=11 // pred_check
          %p498 = pneg %p277
        $region46: #{forward.1} parent=11 // pred_check_branch
          %500 = sbr.rel (%p498) target = $region48
        $region47: #{forward.1} parent=11 // pred_region
          %s502 = ssub.s32 8192, 8192
          %503 = vsyncadd [#allocation23], %s502
          %s504 = sshll.u32 [#allocation24], 4
          %s505 = int_to_ptr.vmem [resolvable:$true] %s504
          %510 = dma.hbm_to_vmem [thread:$0]  %s10, 8192, %s505, [#allocation23], 128, 128, 8
        $region48: #{forward.1} parent=11 // pred_fallthru
          _
        // Predicated region
        $region49: #{forward.1} parent=11 // pred_check
          %p511 = pneg %p298
        $region50: #{forward.1} parent=11 // pred_check_branch
          %513 = sbr.rel (%p511) target = $region52
        $region51: #{forward.1} parent=11 // pred_region
          %s515 = ssub.s32 64, 64
          %516 = vsyncadd [#allocation26], %s515
          %s518 = sshll.u32 [#allocation25], 4
          %s519 = int_to_ptr.vmem [resolvable:$true] %s518
          %521 = dma.hbm_to_vmem [thread:$0]  %s11, 64, %s519, [#allocation26]
        $region52: #{forward.1} parent=11 // pred_fallthru
          _
        // Predicated region
        $region53: #{forward.1} parent=11 // pred_check
          %p522 = pneg %p319
        $region54: #{forward.1} parent=11 // pred_check_branch
          %524 = sbr.rel (%p522) target = $region56
        $region55: #{forward.1} parent=11 // pred_region
          %s526 = ssub.s32 16, 16
          %527 = vsyncadd [#allocation26], %s526
          %s529 = sshll.u32 [#allocation27], 4
          %s530 = int_to_ptr.vmem [resolvable:$true] %s529
          %532 = dma.hbm_to_vmem [thread:$0]  %s12, 16, %s530, [#allocation26]
        $region56: #{forward.1} parent=11 // pred_fallthru
          _
        // Predicated region
        $region57: #{forward.1} parent=11 // pred_check
          %p533 = pneg %p340
        $region58: #{forward.1} parent=11 // pred_check_branch
          %535 = sbr.rel (%p533) target = $region60
        $region59: #{forward.1} parent=11 // pred_region
          %s537 = ssub.s32 256, 256
          %538 = vsyncadd [#allocation29], %s537
          %s539 = sshll.u32 [#allocation28], 4
          %s540 = int_to_ptr.vmem [resolvable:$true] %s539
          %545 = dma.hbm_to_vmem [thread:$0]  %s13, 256, %s540, [#allocation29], 128, 128, 8
        $region60: #{forward.1} parent=11 // pred_fallthru
          _
        // Predicated region
        $region61: #{forward.1} parent=11 // pred_check
          %p546 = pneg %p361
        $region62: #{forward.1} parent=11 // pred_check_branch
          %548 = sbr.rel (%p546) target = $region64
        $region63: #{forward.1} parent=11 // pred_region
          %s550 = ssub.s32 16, 16
          %551 = vsyncadd [#allocation29], %s550
          %s553 = sshll.u32 [#allocation30], 4
          %s554 = int_to_ptr.vmem [resolvable:$true] %s553
          %556 = dma.hbm_to_vmem [thread:$0]  %s14, 16, %s554, [#allocation29]
        $region64: #{forward.1} parent=11 // pred_fallthru
          _
      $region12: #{forward.1} parent=5 // pred_fallthru
        _
      %p557 = scmp.lt.s32.totalorder %s36, 2
      // Predicated region
      $region65: #{forward.1} parent=5 // pred_check
        %p558 = pneg %p557
      $region66: #{forward.1} parent=5 // pred_check_branch
        %560 = sbr.rel (%p558) target = $region68
      $region67: #{forward.1} parent=5 // pred_region
        // Predicated region
        $region69: #{forward.1} parent=67 // pred_check
          %p561 = pneg %p56
        $region70: #{forward.1} parent=67 // pred_check_branch
          %563 = sbr.rel (%p561) target = $region72
        $region71: #{forward.1} parent=67 // pred_region
          %s564 = sand.u32 %s46, 1
          %s565 = scalar_lea.sflag [#allocation8], %s564
          %s566 = sand.u32 %s46, 1
          %s567 = smul.addr %s566, 128
          %s568 = scalar_lea.vmem [#allocation7], %s567
          %s569 = smul.u32 8, %s36
          %s571 = ssub.s32 2048, 2048
          %572 = vsyncadd %s565, %s571
          %s573 = smul.addr %s569, 2
          %s574 = smul.addr %s573, 128
          %s575 = scalar_lea.hbm %s0, %s574
          %s576 = sshll.u32 %s568, 4
          %s577 = int_to_ptr.vmem [resolvable:$true] %s576
          %582 = dma.hbm_to_vmem [thread:$0]  %s575, 2048, %s577, %s565, 256, 256, 16
        $region72: #{forward.1} parent=67 // pred_fallthru
          _
        // Predicated region
        $region73: #{forward.1} parent=67 // pred_check
          %p583 = pneg %p82
        $region74: #{forward.1} parent=67 // pred_check_branch
          %585 = sbr.rel (%p583) target = $region76
        $region75: #{forward.1} parent=67 // pred_region
          %s586 = sand.u32 %s36, 1
          %s587 = scalar_lea.sflag [#allocation11], %s586
          %s588 = sand.u32 %s72, 1
          %s589 = scalar_lea.vmem [#allocation10], %s588
          %s591 = ssub.s32 16, 16
          %592 = vsyncadd %s587, %s591
          %s593 = smul.addr %s36, 16
          %s594 = scalar_lea.hbm %s1, %s593
          %s596 = sshll.u32 %s589, 4
          %s597 = int_to_ptr.vmem [resolvable:$true] %s596
          %599 = dma.hbm_to_vmem [thread:$0]  %s594, 16, %s597, %s587
        $region76: #{forward.1} parent=67 // pred_fallthru
          _
      $region68: #{forward.1} parent=5 // pred_fallthru
        _
      %p600 = scmp.le.s32.totalorder 1, %s36
      %p601 = scmp.lt.s32.totalorder %s36, 3
      %p602 = pnand %p600, %p601
      %p603 = pneg %p602
      // Predicated region
      $region77: #{forward.1} parent=5 // pred_check
        _
      $region78: #{forward.1} parent=5 // pred_check_branch
        %605 = sbr.rel (%p602) target = $region80
      $region79: #{forward.1} parent=5 // pred_region
        %s606 = ssub.s32 %s36, 1
        %s607 = sand.u32 %s49, 1
        %s608 = scalar_lea.sflag [#allocation8], %s607
        %s609 = sand.u32 %s49, 1
        %s610 = smul.addr %s609, 128
        %s611 = scalar_lea.vmem [#allocation7], %s610
        // Predicated region
        $region81: #{forward.1} parent=79 // pred_check
          %p612 = pneg %p62
        $region82: #{forward.1} parent=79 // pred_check_branch
          %614 = sbr.rel (%p612) target = $region84
        $region83: #{forward.1} parent=79 // pred_region
          %615 = dma.done %s608, 2048
        $region84: #{forward.1} parent=79 // pred_fallthru
          _
        %s616 = sand.u32 %s41, 1
        %s617 = scalar_lea.sflag [#allocation11], %s616
        %s618 = sand.u32 %s75, 1
        %s619 = scalar_lea.vmem [#allocation10], %s618
        // Predicated region
        $region85: #{forward.1} parent=79 // pred_check
          %p620 = pneg %p88
        $region86: #{forward.1} parent=79 // pred_check_branch
          %622 = sbr.rel (%p620) target = $region88
        $region87: #{forward.1} parent=79 // pred_region
          %623 = dma.done %s617, 16
        $region88: #{forward.1} parent=79 // pred_fallthru
          _
        // Predicated region
        $region89: #{forward.1} parent=79 // pred_check
          %p624 = pneg %p109
        $region90: #{forward.1} parent=79 // pred_check_branch
          %626 = sbr.rel (%p624) target = $region92
        $region91: #{forward.1} parent=79 // pred_region
          %627 = dma.done [#allocation11], 4096
        $region92: #{forward.1} parent=79 // pred_fallthru
          _
        // Predicated region
        $region93: #{forward.1} parent=79 // pred_check
          %p628 = pneg %p130
        $region94: #{forward.1} parent=79 // pred_check_branch
          %630 = sbr.rel (%p628) target = $region96
        $region95: #{forward.1} parent=79 // pred_region
          %631 = dma.done [#allocation14], 16
        $region96: #{forward.1} parent=79 // pred_fallthru
          _
        // Predicated region
        $region97: #{forward.1} parent=79 // pred_check
          %p632 = pneg %p151
        $region98: #{forward.1} parent=79 // pred_check_branch
          %634 = sbr.rel (%p632) target = $region100
        $region99: #{forward.1} parent=79 // pred_region
          %635 = dma.done [#allocation14], 8192
        $region100: #{forward.1} parent=79 // pred_fallthru
          _
        // Predicated region
        $region101: #{forward.1} parent=79 // pred_check
          %p636 = pneg %p172
        $region102: #{forward.1} parent=79 // pred_check_branch
          %638 = sbr.rel (%p636) target = $region104
        $region103: #{forward.1} parent=79 // pred_region
          %639 = dma.done [#allocation17], 16
        $region104: #{forward.1} parent=79 // pred_fallthru
          _
        // Predicated region
        $region105: #{forward.1} parent=79 // pred_check
          %p640 = pneg %p193
        $region106: #{forward.1} parent=79 // pred_check_branch
          %642 = sbr.rel (%p640) target = $region108
        $region107: #{forward.1} parent=79 // pred_region
          %643 = dma.done [#allocation17], 9216
        $region108: #{forward.1} parent=79 // pred_fallthru
          _
        // Predicated region
        $region109: #{forward.1} parent=79 // pred_check
          %p644 = pneg %p214
        $region110: #{forward.1} parent=79 // pred_check_branch
          %646 = sbr.rel (%p644) target = $region112
        $region111: #{forward.1} parent=79 // pred_region
          %647 = dma.done [#allocation20], 16
        $region112: #{forward.1} parent=79 // pred_fallthru
          _
        // Predicated region
        $region113: #{forward.1} parent=79 // pred_check
          %p648 = pneg %p235
        $region114: #{forward.1} parent=79 // pred_check_branch
          %650 = sbr.rel (%p648) target = $region116
        $region115: #{forward.1} parent=79 // pred_region
          %651 = dma.done [#allocation20], 4096
        $region116: #{forward.1} parent=79 // pred_fallthru
          _
        // Predicated region
        $region117: #{forward.1} parent=79 // pred_check
          %p652 = pneg %p256
        $region118: #{forward.1} parent=79 // pred_check_branch
          %654 = sbr.rel (%p652) target = $region120
        $region119: #{forward.1} parent=79 // pred_region
          %655 = dma.done [#allocation23], 64
        $region120: #{forward.1} parent=79 // pred_fallthru
          _
        // Predicated region
        $region121: #{forward.1} parent=79 // pred_check
          %p656 = pneg %p277
        $region122: #{forward.1} parent=79 // pred_check_branch
          %658 = sbr.rel (%p656) target = $region124
        $region123: #{forward.1} parent=79 // pred_region
          %659 = dma.done [#allocation23], 8192
        $region124: #{forward.1} parent=79 // pred_fallthru
          _
        // Predicated region
        $region125: #{forward.1} parent=79 // pred_check
          %p660 = pneg %p298
        $region126: #{forward.1} parent=79 // pred_check_branch
          %662 = sbr.rel (%p660) target = $region128
        $region127: #{forward.1} parent=79 // pred_region
          %663 = dma.done [#allocation26], 64
        $region128: #{forward.1} parent=79 // pred_fallthru
          _
        // Predicated region
        $region129: #{forward.1} parent=79 // pred_check
          %p664 = pneg %p319
        $region130: #{forward.1} parent=79 // pred_check_branch
          %666 = sbr.rel (%p664) target = $region132
        $region131: #{forward.1} parent=79 // pred_region
          %667 = dma.done [#allocation26], 16
        $region132: #{forward.1} parent=79 // pred_fallthru
          _
        // Predicated region
        $region133: #{forward.1} parent=79 // pred_check
          %p668 = pneg %p340
        $region134: #{forward.1} parent=79 // pred_check_branch
          %670 = sbr.rel (%p668) target = $region136
        $region135: #{forward.1} parent=79 // pred_region
          %671 = dma.done [#allocation29], 256
        $region136: #{forward.1} parent=79 // pred_fallthru
          _
        // Predicated region
        $region137: #{forward.1} parent=79 // pred_check
          %p672 = pneg %p361
        $region138: #{forward.1} parent=79 // pred_check_branch
          %674 = sbr.rel (%p672) target = $region140
        $region139: #{forward.1} parent=79 // pred_region
          %675 = dma.done [#allocation29], 16
        $region140: #{forward.1} parent=79 // pred_fallthru
          _
        %s676 = sand.u32 %s49, 1
        %s677 = scalar_lea.sflag [#allocation8], %s676
        %s678 = sand.u32 %s49, 1
        %s679 = smul.addr %s678, 128
        %s680 = scalar_lea.vmem [#allocation7], %s679
        %p681 = pneg %p62
        %p682 = pneg %p59
        %s683 = sand.u32 %s41, 1
        %s684 = scalar_lea.sflag [#allocation11], %s683
        %s685 = sand.u32 %s75, 1
        %s686 = scalar_lea.vmem [#allocation10], %s685
        %p687 = pneg %p88
        %p688 = pneg %p85
        %p689 = pneg %p109
        %p690 = pneg %p106
        %p691 = pneg %p130
        %p692 = pneg %p127
        %p693 = pneg %p151
        %p694 = pneg %p148
        %p695 = pneg %p172
        %p696 = pneg %p169
        %p697 = pneg %p193
        %p698 = pneg %p190
        %p699 = pneg %p214
        %p700 = pneg %p211
        %p701 = pneg %p235
        %p702 = pneg %p232
        %p703 = pneg %p256
        %p704 = pneg %p253
        %p705 = pneg %p277
        %p706 = pneg %p274
        %p707 = pneg %p298
        %p708 = pneg %p295
        %p709 = pneg %p319
        %p710 = pneg %p316
        %p711 = pneg %p340
        %p712 = pneg %p337
        %p713 = pneg %p361
        %p714 = pneg %p358
        %p715 = pneg %p387
        %p716 = pneg %p384
        %s717 = sand.u32 %s374, 1
        %s718 = scalar_lea.sflag [#allocation9], %s717
        %s719 = sand.u32 %s374, 1
        %s720 = scalar_lea.vmem [#allocation31], %s719
        %s721 = smul.u32 8, %s41
        %v722 = vld [vmem:[%s611] sm:$0xff]
        %v723 = vld [vmem:[%s611 + $0x8] sm:$0xff]
        %v724 = vld [vmem:[%s611 + $0x10] sm:$0xff]
        %v725 = vld [vmem:[%s611 + $0x18] sm:$0xff]
        %v726 = vld [vmem:[%s611 + $0x20] sm:$0xff]
        %v727 = vld [vmem:[%s611 + $0x28] sm:$0xff]
        %v728 = vld [vmem:[%s611 + $0x30] sm:$0xff]
        %v729 = vld [vmem:[%s611 + $0x38] sm:$0xff]
        %v730 = vld [vmem:[%s611 + $0x40] sm:$0xff]
        %v731 = vld [vmem:[%s611 + $0x48] sm:$0xff]
        %v732 = vld [vmem:[%s611 + $0x50] sm:$0xff]
        %v733 = vld [vmem:[%s611 + $0x58] sm:$0xff]
        %v734 = vld [vmem:[%s611 + $0x60] sm:$0xff]
        %v735 = vld [vmem:[%s611 + $0x68] sm:$0xff]
        %v736 = vld [vmem:[%s611 + $0x70] sm:$0xff]
        %v737 = vld [vmem:[%s611 + $0x78] sm:$0xff]
        %v738 = vld [vmem:[#allocation12] sm:$0xff]
        %v739 = vld [vmem:[#allocation12 + $0x8] sm:$0xff]
        %v740 = vld [vmem:[#allocation12 + $0x10] sm:$0xff]
        %v741 = vld [vmem:[#allocation12 + $0x18] sm:$0xff]
        %v742 = vld [vmem:[#allocation12 + $0x20] sm:$0xff]
        %v743 = vld [vmem:[#allocation12 + $0x28] sm:$0xff]
        %v744 = vld [vmem:[#allocation12 + $0x30] sm:$0xff]
        %v745 = vld [vmem:[#allocation12 + $0x38] sm:$0xff]
        %v746 = vld [vmem:[#allocation12 + $0x40] sm:$0xff]
        %v747 = vld [vmem:[#allocation12 + $0x48] sm:$0xff]
        %v748 = vld [vmem:[#allocation12 + $0x50] sm:$0xff]
        %v749 = vld [vmem:[#allocation12 + $0x58] sm:$0xff]
        %v750 = vld [vmem:[#allocation12 + $0x60] sm:$0xff]
        %v751 = vld [vmem:[#allocation12 + $0x68] sm:$0xff]
        %v752 = vld [vmem:[#allocation12 + $0x70] sm:$0xff]
        %v753 = vld [vmem:[#allocation12 + $0x78] sm:$0xff]
        %v754 = vld [vmem:[#allocation12 + $0x80] sm:$0xff]
        %v755 = vld [vmem:[#allocation12 + $0x88] sm:$0xff]
        %v756 = vld [vmem:[#allocation12 + $0x90] sm:$0xff]
        %v757 = vld [vmem:[#allocation12 + $0x98] sm:$0xff]
        %v758 = vld [vmem:[#allocation12 + $0xa0] sm:$0xff]
        %v759 = vld [vmem:[#allocation12 + $0xa8] sm:$0xff]
        %v760 = vld [vmem:[#allocation12 + $0xb0] sm:$0xff]
        %v761 = vld [vmem:[#allocation12 + $0xb8] sm:$0xff]
        %v762 = vld [vmem:[#allocation12 + $0xc0] sm:$0xff]
        %v763 = vld [vmem:[#allocation12 + $0xc8] sm:$0xff]
        %v764 = vld [vmem:[#allocation12 + $0xd0] sm:$0xff]
        %v765 = vld [vmem:[#allocation12 + $0xd8] sm:$0xff]
        %v766 = vld [vmem:[#allocation12 + $0xe0] sm:$0xff]
        %v767 = vld [vmem:[#allocation12 + $0xe8] sm:$0xff]
        %v768 = vld [vmem:[#allocation12 + $0xf0] sm:$0xff]
        %v769 = vld [vmem:[#allocation12 + $0xf8] sm:$0xff]
        %v770 = vld [vmem:[#allocation13] sm:$0x1]
        %v772 = vlaneseq
        %v773 = vshrl.u32 %v772, 7
        %v774 = vsub.s32 0, %v773
        %v775 = vrot.slane %v770, %v774
        %777 = vmatprep.subr.mxu0 0.0
        %778 = vmatpush1.msra.mxu0 %v738
        %779 = vmatprep.subr.mxu0 0.0
        %780 = vmatpush1.msra.mxu0 %v739
        %781 = vmatprep.subr.mxu0 0.0
        %782 = vmatpush1.msra.mxu0 %v740
        %783 = vmatprep.subr.mxu0 0.0
        %784 = vmatpush1.msra.mxu0 %v741
        %785 = vmatprep.subr.mxu0 0.0
        %786 = vmatpush1.msra.mxu0 %v742
        %787 = vmatprep.subr.mxu0 0.0
        %788 = vmatpush1.msra.mxu0 %v743
        %789 = vmatprep.subr.mxu0 0.0
        %790 = vmatpush1.msra.mxu0 %v744
        %791 = vmatprep.subr.mxu0 0.0
        %792 = vmatpush1.msra.mxu0 %v745
        %793 = vmatprep.subr.mxu0 0.0
        %794 = vmatpush1.msra.mxu0 %v746
        %795 = vmatprep.subr.mxu0 0.0
        %796 = vmatpush1.msra.mxu0 %v747
        %797 = vmatprep.subr.mxu0 0.0
        %798 = vmatpush1.msra.mxu0 %v748
        %799 = vmatprep.subr.mxu0 0.0
        %800 = vmatpush1.msra.mxu0 %v749
        %801 = vmatprep.subr.mxu0 0.0
        %802 = vmatpush1.msra.mxu0 %v750
        %803 = vmatprep.subr.mxu0 0.0
        %804 = vmatpush1.msra.mxu0 %v751
        %805 = vmatprep.subr.mxu0 0.0
        %806 = vmatpush1.msra.mxu0 %v752
        %807 = vmatprep.subr.mxu0 0.0
        %808 = vmatpush1.msra.mxu0 %v753
        %809 = vmatprep.subr.mxu0 0.0
        %810 = vmatpush1.msra.mxu0 %v754
        %811 = vmatprep.subr.mxu0 0.0
        %812 = vmatpush1.msra.mxu0 %v755
        %813 = vmatprep.subr.mxu0 0.0
        %814 = vmatpush1.msra.mxu0 %v756
        %815 = vmatprep.subr.mxu0 0.0
        %816 = vmatpush1.msra.mxu0 %v757
        %817 = vmatprep.subr.mxu0 0.0
        %818 = vmatpush1.msra.mxu0 %v758
        %819 = vmatprep.subr.mxu0 0.0
        %820 = vmatpush1.msra.mxu0 %v759
        %821 = vmatprep.subr.mxu0 0.0
        %822 = vmatpush1.msra.mxu0 %v760
        %823 = vmatprep.subr.mxu0 0.0
        %824 = vmatpush1.msra.mxu0 %v761
        %825 = vmatprep.subr.mxu0 0.0
        %826 = vmatpush1.msra.mxu0 %v762
        %827 = vmatprep.subr.mxu0 0.0
        %828 = vmatpush1.msra.mxu0 %v763
        %829 = vmatprep.subr.mxu0 0.0
        %830 = vmatpush1.msra.mxu0 %v764
        %831 = vmatprep.subr.mxu0 0.0
        %832 = vmatpush1.msra.mxu0 %v765
        %833 = vmatprep.subr.mxu0 0.0
        %834 = vmatpush1.msra.mxu0 %v766
        %835 = vmatprep.subr.mxu0 0.0
        %836 = vmatpush1.msra.mxu0 %v767
        %837 = vmatprep.subr.mxu0 0.0
        %838 = vmatpush1.msra.mxu0 %v768
        %839 = vmatprep.subr.mxu0 0.0
        %840 = vmatpush1.msra.mxu0 %v769
        %841 = vmatprep.mubr.f32.mxu0 %v723
        %842 = vmatmul.mubr.f32.gmra.mrb[0].mxu0 %v722
        %v843 = vpop.f32.mrb[0].mxu0
        %v844 = vadd.f32 %v775, %v843
        %v845 = vpop.f32.mrb[0].mxu0
        %846 = vmatprep.mubr.f32.mxu0 %v725
        %847 = vmatmul.mubr.f32.gmra.mrb[0].mxu0 %v724
        %v848 = vpop.f32.mrb[0].mxu0
        %v849 = vadd.f32 %v775, %v848
        %v850 = vpop.f32.mrb[0].mxu0
        %851 = vmatprep.mubr.f32.mxu0 %v727
        %852 = vmatmul.mubr.f32.gmra.mrb[0].mxu0 %v726
        %v853 = vpop.f32.mrb[0].mxu0
        %v854 = vadd.f32 %v775, %v853
        %v855 = vpop.f32.mrb[0].mxu0
        %856 = vmatprep.mubr.f32.mxu0 %v729
        %857 = vmatmul.mubr.f32.gmra.mrb[0].mxu0 %v728
        %v858 = vpop.f32.mrb[0].mxu0
        %v859 = vadd.f32 %v775, %v858
        %v860 = vpop.f32.mrb[0].mxu0
        %861 = vmatprep.mubr.f32.mxu0 %v731
        %862 = vmatmul.mubr.f32.gmra.mrb[0].mxu0 %v730
        %v863 = vpop.f32.mrb[0].mxu0
        %v864 = vadd.f32 %v775, %v863
        %v865 = vpop.f32.mrb[0].mxu0
        %866 = vmatprep.mubr.f32.mxu0 %v733
        %867 = vmatmul.mubr.f32.gmra.mrb[0].mxu0 %v732
        %v868 = vpop.f32.mrb[0].mxu0
        %v869 = vadd.f32 %v775, %v868
        %v870 = vpop.f32.mrb[0].mxu0
        %871 = vmatprep.mubr.f32.mxu0 %v735
        %872 = vmatmul.mubr.f32.gmra.mrb[0].mxu0 %v734
        %v873 = vpop.f32.mrb[0].mxu0
        %v874 = vadd.f32 %v775, %v873
        %v875 = vpop.f32.mrb[0].mxu0
        %876 = vmatprep.mubr.f32.mxu0 %v737
        %877 = vmatmul.mubr.f32.gmra.mrb[0].mxu0 %v736
        %v878 = vpop.f32.mrb[0].mxu0
        %v879 = vadd.f32 %v775, %v878
        %v880 = vpop.f32.mrb[0].mxu0
        %881 = vdwg.mxu0
        %v882 = vmax.f32 %v844, 0.0
        %v883 = vmax.f32 %v849, 0.0
        %v884 = vmax.f32 %v854, 0.0
        %v885 = vmax.f32 %v859, 0.0
        %v886 = vmax.f32 %v864, 0.0
        %v887 = vmax.f32 %v869, 0.0
        %v888 = vmax.f32 %v874, 0.0
        %v889 = vmax.f32 %v879, 0.0
        %vm890 = vcmask 261120
        %891 = vst.msk [vmem:[#allocation2] sm:$0xff] %vm890, %v882
        %892 = vst.msk [vmem:[#allocation2 + $0x8] sm:$0xff] %vm890, %v883
        %893 = vst.msk [vmem:[#allocation2 + $0x10] sm:$0xff] %vm890, %v884
        %894 = vst.msk [vmem:[#allocation2 + $0x18] sm:$0xff] %vm890, %v885
        %895 = vst.msk [vmem:[#allocation2 + $0x20] sm:$0xff] %vm890, %v886
        %896 = vst.msk [vmem:[#allocation2 + $0x28] sm:$0xff] %vm890, %v887
        %897 = vst.msk [vmem:[#allocation2 + $0x30] sm:$0xff] %vm890, %v888
        %898 = vst.msk [vmem:[#allocation2 + $0x38] sm:$0xff] %vm890, %v889
        %v899 = vld [vmem:[#allocation2] ss:$2 sm:$0x7]
        %vm900 = vcmask 256000
        %901 = vst.msk [vmem:[#allocation3] sm:$0x7] %vm900, %v899
        %s902 = scalar_lea.vmem [#allocation2], 1
        %v903 = vld [vmem:[%s902] ss:$2 sm:$0x7]
        %905 = vrot.lane.b32.xlu0 %v903, 32
        %v906 = vpop.permute.xlu0 %905
        %vm908 = vcmask 518400
        %909 = vst.msk [vmem:[#allocation3] sm:$0x7] %vm908, %v906
        %s910 = scalar_lea.vmem [#allocation2], 2
        %v911 = vld [vmem:[%s910] ss:$2 sm:$0x7]
        %913 = vrot.lane.b32.xlu0 %v911, 64
        %v914 = vpop.permute.xlu0 %913
        %vm916 = vcmask 780800
        %917 = vst.msk [vmem:[#allocation3] sm:$0x7] %vm916, %v914
        %s918 = scalar_lea.vmem [#allocation2], 3
        %v919 = vld [vmem:[%s918] ss:$2 sm:$0x7]
        %921 = vrot.lane.b32.xlu0 %v919, 96
        %v922 = vpop.permute.xlu0 %921
        %vm924 = vcmask 1043200
        %925 = vst.msk [vmem:[#allocation3] sm:$0x7] %vm924, %v922
        %s926 = scalar_lea.vmem [#allocation2], 8
        %v927 = vld [vmem:[%s926] ss:$2 sm:$0x7]
        %928 = vst.msk [vmem:[#allocation3 + $0x8] sm:$0x7] %vm900, %v927
        %s929 = scalar_lea.vmem [#allocation2], 9
        %v930 = vld [vmem:[%s929] ss:$2 sm:$0x7]
        %932 = vrot.lane.b32.xlu0 %v930, 32
        %v933 = vpop.permute.xlu0 %932
        %935 = vst.msk [vmem:[#allocation3 + $0x8] sm:$0x7] %vm908, %v933
        %s936 = scalar_lea.vmem [#allocation2], 10
        %v937 = vld [vmem:[%s936] ss:$2 sm:$0x7]
        %939 = vrot.lane.b32.xlu0 %v937, 64
        %v940 = vpop.permute.xlu0 %939
        %942 = vst.msk [vmem:[#allocation3 + $0x8] sm:$0x7] %vm916, %v940
        %s943 = scalar_lea.vmem [#allocation2], 11
        %v944 = vld [vmem:[%s943] ss:$2 sm:$0x7]
        %946 = vrot.lane.b32.xlu0 %v944, 96
        %v947 = vpop.permute.xlu0 %946
        %949 = vst.msk [vmem:[#allocation3 + $0x8] sm:$0x7] %vm924, %v947
        %s950 = scalar_lea.vmem [#allocation2], 16
        %v951 = vld [vmem:[%s950] ss:$2 sm:$0x7]
        %952 = vst.msk [vmem:[#allocation3 + $0x10] sm:$0x7] %vm900, %v951
        %s953 = scalar_lea.vmem [#allocation2], 17
        %v954 = vld [vmem:[%s953] ss:$2 sm:$0x7]
        %956 = vrot.lane.b32.xlu0 %v954, 32
        %v957 = vpop.permute.xlu0 %956
        %959 = vst.msk [vmem:[#allocation3 + $0x10] sm:$0x7] %vm908, %v957
        %s960 = scalar_lea.vmem [#allocation2], 18
        %v961 = vld [vmem:[%s960] ss:$2 sm:$0x7]
        %963 = vrot.lane.b32.xlu0 %v961, 64
        %v964 = vpop.permute.xlu0 %963
        %966 = vst.msk [vmem:[#allocation3 + $0x10] sm:$0x7] %vm916, %v964
        %s967 = scalar_lea.vmem [#allocation2], 19
        %v968 = vld [vmem:[%s967] ss:$2 sm:$0x7]
        %970 = vrot.lane.b32.xlu0 %v968, 96
        %v971 = vpop.permute.xlu0 %970
        %973 = vst.msk [vmem:[#allocation3 + $0x10] sm:$0x7] %vm924, %v971
        %s974 = scalar_lea.vmem [#allocation2], 24
        %v975 = vld [vmem:[%s974] ss:$2 sm:$0x7]
        %976 = vst.msk [vmem:[#allocation3 + $0x18] sm:$0x7] %vm900, %v975
        %s977 = scalar_lea.vmem [#allocation2], 25
        %v978 = vld [vmem:[%s977] ss:$2 sm:$0x7]
        %980 = vrot.lane.b32.xlu0 %v978, 32
        %v981 = vpop.permute.xlu0 %980
        %983 = vst.msk [vmem:[#allocation3 + $0x18] sm:$0x7] %vm908, %v981
        %s984 = scalar_lea.vmem [#allocation2], 26
        %v985 = vld [vmem:[%s984] ss:$2 sm:$0x7]
        %987 = vrot.lane.b32.xlu0 %v985, 64
        %v988 = vpop.permute.xlu0 %987
        %990 = vst.msk [vmem:[#allocation3 + $0x18] sm:$0x7] %vm916, %v988
        %s991 = scalar_lea.vmem [#allocation2], 27
        %v992 = vld [vmem:[%s991] ss:$2 sm:$0x7]
        %994 = vrot.lane.b32.xlu0 %v992, 96
        %v995 = vpop.permute.xlu0 %994
        %997 = vst.msk [vmem:[#allocation3 + $0x18] sm:$0x7] %vm924, %v995
        %v998 = vld [vmem:[%s950] ss:$2 sm:$0x7]
        %v1000 = vrot.slane %v998, 5
        %vm1002 = vcmask 259075
        %1003 = vst.msk [vmem:[#allocation3] sm:$0x38] %vm1002, %v1000
        %v1004 = vld [vmem:[%s953] ss:$2 sm:$0x7]
        %v1006 = vrot.slane %v1004, 5
        %1007 = vrot.lane.b32.xlu0 %v1006, 32
        %v1008 = vpop.permute.xlu0 %1007
        %vm1010 = vcmask 521475
        %1011 = vst.msk [vmem:[#allocation3] sm:$0x38] %vm1010, %v1008
        %v1012 = vld [vmem:[%s960] ss:$2 sm:$0x7]
        %v1014 = vrot.slane %v1012, 5
        %1015 = vrot.lane.b32.xlu0 %v1014, 64
        %v1016 = vpop.permute.xlu0 %1015
        %vm1018 = vcmask 783875
        %1019 = vst.msk [vmem:[#allocation3] sm:$0x38] %vm1018, %v1016
        %v1020 = vld [vmem:[%s967] ss:$2 sm:$0x7]
        %v1022 = vrot.slane %v1020, 5
        %1023 = vrot.lane.b32.xlu0 %v1022, 96
        %v1024 = vpop.permute.xlu0 %1023
        %vm1026 = vcmask 1046275
        %1027 = vst.msk [vmem:[#allocation3] sm:$0x38] %vm1026, %v1024
        %v1028 = vld [vmem:[%s974] ss:$2 sm:$0x7]
        %v1030 = vrot.slane %v1028, 5
        %1032 = vst.msk [vmem:[#allocation3 + $0x8] sm:$0x38] %vm1002, %v1030
        %v1033 = vld [vmem:[%s977] ss:$2 sm:$0x7]
        %v1035 = vrot.slane %v1033, 5
        %1036 = vrot.lane.b32.xlu0 %v1035, 32
        %v1037 = vpop.permute.xlu0 %1036
        %1039 = vst.msk [vmem:[#allocation3 + $0x8] sm:$0x38] %vm1010, %v1037
        %v1040 = vld [vmem:[%s984] ss:$2 sm:$0x7]
        %v1042 = vrot.slane %v1040, 5
        %1043 = vrot.lane.b32.xlu0 %v1042, 64
        %v1044 = vpop.permute.xlu0 %1043
        %1046 = vst.msk [vmem:[#allocation3 + $0x8] sm:$0x38] %vm1018, %v1044
        %v1047 = vld [vmem:[%s991] ss:$2 sm:$0x7]
        %v1049 = vrot.slane %v1047, 5
        %1050 = vrot.lane.b32.xlu0 %v1049, 96
        %v1051 = vpop.permute.xlu0 %1050
        %1053 = vst.msk [vmem:[#allocation3 + $0x8] sm:$0x38] %vm1026, %v1051
        %s1054 = scalar_lea.vmem [#allocation2], 32
        %v1055 = vld [vmem:[%s1054] ss:$2 sm:$0x7]
        %v1057 = vrot.slane %v1055, 5
        %1059 = vst.msk [vmem:[#allocation3 + $0x10] sm:$0x38] %vm1002, %v1057
        %s1060 = scalar_lea.vmem [#allocation2], 33
        %v1061 = vld [vmem:[%s1060] ss:$2 sm:$0x7]
        %v1063 = vrot.slane %v1061, 5
        %1064 = vrot.lane.b32.xlu0 %v1063, 32
        %v1065 = vpop.permute.xlu0 %1064
        %1067 = vst.msk [vmem:[#allocation3 + $0x10] sm:$0x38] %vm1010, %v1065
        %s1068 = scalar_lea.vmem [#allocation2], 34
        %v1069 = vld [vmem:[%s1068] ss:$2 sm:$0x7]
        %v1071 = vrot.slane %v1069, 5
        %1072 = vrot.lane.b32.xlu0 %v1071, 64
        %v1073 = vpop.permute.xlu0 %1072
        %1075 = vst.msk [vmem:[#allocation3 + $0x10] sm:$0x38] %vm1018, %v1073
        %s1076 = scalar_lea.vmem [#allocation2], 35
        %v1077 = vld [vmem:[%s1076] ss:$2 sm:$0x7]
        %v1079 = vrot.slane %v1077, 5
        %1080 = vrot.lane.b32.xlu0 %v1079, 96
        %v1081 = vpop.permute.xlu0 %1080
        %1083 = vst.msk [vmem:[#allocation3 + $0x10] sm:$0x38] %vm1026, %v1081
        %s1084 = scalar_lea.vmem [#allocation2], 40
        %v1085 = vld [vmem:[%s1084] ss:$2 sm:$0x7]
        %v1087 = vrot.slane %v1085, 5
        %1089 = vst.msk [vmem:[#allocation3 + $0x18] sm:$0x38] %vm1002, %v1087
        %s1090 = scalar_lea.vmem [#allocation2], 41
        %v1091 = vld [vmem:[%s1090] ss:$2 sm:$0x7]
        %v1093 = vrot.slane %v1091, 5
        %1094 = vrot.lane.b32.xlu0 %v1093, 32
        %v1095 = vpop.permute.xlu0 %1094
        %1097 = vst.msk [vmem:[#allocation3 + $0x18] sm:$0x38] %vm1010, %v1095
        %s1098 = scalar_lea.vmem [#allocation2], 42
        %v1099 = vld [vmem:[%s1098] ss:$2 sm:$0x7]
        %v1101 = vrot.slane %v1099, 5
        %1102 = vrot.lane.b32.xlu0 %v1101, 64
        %v1103 = vpop.permute.xlu0 %1102
        %1105 = vst.msk [vmem:[#allocation3 + $0x18] sm:$0x38] %vm1018, %v1103
        %s1106 = scalar_lea.vmem [#allocation2], 43
        %v1107 = vld [vmem:[%s1106] ss:$2 sm:$0x7]
        %v1109 = vrot.slane %v1107, 5
        %1110 = vrot.lane.b32.xlu0 %v1109, 96
        %v1111 = vpop.permute.xlu0 %1110
        %1113 = vst.msk [vmem:[#allocation3 + $0x18] sm:$0x38] %vm1026, %v1111
        %v1114 = vld [vmem:[%s1054] ss:$2 sm:$0x7]
        %v1116 = vrot.slane %v1114, 2
        %vm1118 = vcmask 261126
        %1119 = vst.msk [vmem:[#allocation3] sm:$0xc0] %vm1118, %v1116
        %vm1120 = vcmask 253952
        %1121 = vst.msk [vmem:[#allocation3 + $0x20] sm:$0x1] %vm1120, %v1116
        %v1122 = vld [vmem:[%s1060] ss:$2 sm:$0x7]
        %v1124 = vrot.slane %v1122, 2
        %1125 = vrot.lane.b32.xlu0 %v1124, 32
        %v1126 = vpop.permute.xlu0 %1125
        %vm1128 = vcmask 523526
        %1129 = vst.msk [vmem:[#allocation3] sm:$0xc0] %vm1128, %v1126
        %vm1130 = vcmask 516352
        %1131 = vst.msk [vmem:[#allocation3 + $0x20] sm:$0x1] %vm1130, %v1126
        %v1132 = vld [vmem:[%s1068] ss:$2 sm:$0x7]
        %v1134 = vrot.slane %v1132, 2
        %1135 = vrot.lane.b32.xlu0 %v1134, 64
        %v1136 = vpop.permute.xlu0 %1135
        %vm1138 = vcmask 785926
        %1139 = vst.msk [vmem:[#allocation3] sm:$0xc0] %vm1138, %v1136
        %vm1140 = vcmask 778752
        %1141 = vst.msk [vmem:[#allocation3 + $0x20] sm:$0x1] %vm1140, %v1136
        %v1142 = vld [vmem:[%s1076] ss:$2 sm:$0x7]
        %v1144 = vrot.slane %v1142, 2
        %1145 = vrot.lane.b32.xlu0 %v1144, 96
        %v1146 = vpop.permute.xlu0 %1145
        %vm1148 = vcmask 1048326
        %1149 = vst.msk [vmem:[#allocation3] sm:$0xc0] %vm1148, %v1146
        %vm1150 = vcmask 1041152
        %1151 = vst.msk [vmem:[#allocation3 + $0x20] sm:$0x1] %vm1150, %v1146
        %v1152 = vld [vmem:[%s1084] ss:$2 sm:$0x7]
        %v1154 = vrot.slane %v1152, 2
        %1156 = vst.msk [vmem:[#allocation3 + $0x8] sm:$0xc0] %vm1118, %v1154
        %1157 = vst.msk [vmem:[#allocation3 + $0x28] sm:$0x1] %vm1120, %v1154
        %v1158 = vld [vmem:[%s1090] ss:$2 sm:$0x7]
        %v1160 = vrot.slane %v1158, 2
        %1161 = vrot.lane.b32.xlu0 %v1160, 32
        %v1162 = vpop.permute.xlu0 %1161
        %1164 = vst.msk [vmem:[#allocation3 + $0x8] sm:$0xc0] %vm1128, %v1162
        %1165 = vst.msk [vmem:[#allocation3 + $0x28] sm:$0x1] %vm1130, %v1162
        %v1166 = vld [vmem:[%s1098] ss:$2 sm:$0x7]
        %v1168 = vrot.slane %v1166, 2
        %1169 = vrot.lane.b32.xlu0 %v1168, 64
        %v1170 = vpop.permute.xlu0 %1169
        %1172 = vst.msk [vmem:[#allocation3 + $0x8] sm:$0xc0] %vm1138, %v1170
        %1173 = vst.msk [vmem:[#allocation3 + $0x28] sm:$0x1] %vm1140, %v1170
        %v1174 = vld [vmem:[%s1106] ss:$2 sm:$0x7]
        %v1176 = vrot.slane %v1174, 2
        %1177 = vrot.lane.b32.xlu0 %v1176, 96
        %v1178 = vpop.permute.xlu0 %1177
        %1180 = vst.msk [vmem:[#allocation3 + $0x8] sm:$0xc0] %vm1148, %v1178
        %1181 = vst.msk [vmem:[#allocation3 + $0x28] sm:$0x1] %vm1150, %v1178
        %s1182 = scalar_lea.vmem [#allocation2], 48
        %v1183 = vld [vmem:[%s1182] ss:$2 sm:$0x7]
        %v1185 = vrot.slane %v1183, 2
        %1187 = vst.msk [vmem:[#allocation3 + $0x10] sm:$0xc0] %vm1118, %v1185
        %1188 = vst.msk [vmem:[#allocation3 + $0x30] sm:$0x1] %vm1120, %v1185
        %s1189 = scalar_lea.vmem [#allocation2], 49
        %v1190 = vld [vmem:[%s1189] ss:$2 sm:$0x7]
        %v1192 = vrot.slane %v1190, 2
        %1193 = vrot.lane.b32.xlu0 %v1192, 32
        %v1194 = vpop.permute.xlu0 %1193
        %1196 = vst.msk [vmem:[#allocation3 + $0x10] sm:$0xc0] %vm1128, %v1194
        %1197 = vst.msk [vmem:[#allocation3 + $0x30] sm:$0x1] %vm1130, %v1194
        %s1198 = scalar_lea.vmem [#allocation2], 50
        %v1199 = vld [vmem:[%s1198] ss:$2 sm:$0x7]
        %v1201 = vrot.slane %v1199, 2
        %1202 = vrot.lane.b32.xlu0 %v1201, 64
        %v1203 = vpop.permute.xlu0 %1202
        %1205 = vst.msk [vmem:[#allocation3 + $0x10] sm:$0xc0] %vm1138, %v1203
        %1206 = vst.msk [vmem:[#allocation3 + $0x30] sm:$0x1] %vm1140, %v1203
        %s1207 = scalar_lea.vmem [#allocation2], 51
        %v1208 = vld [vmem:[%s1207] ss:$2 sm:$0x7]
        %v1210 = vrot.slane %v1208, 2
        %1211 = vrot.lane.b32.xlu0 %v1210, 96
        %v1212 = vpop.permute.xlu0 %1211
        %1214 = vst.msk [vmem:[#allocation3 + $0x10] sm:$0xc0] %vm1148, %v1212
        %1215 = vst.msk [vmem:[#allocation3 + $0x30] sm:$0x1] %vm1150, %v1212
        %s1216 = scalar_lea.vmem [#allocation2], 56
        %v1217 = vld [vmem:[%s1216] ss:$2 sm:$0x7]
        %v1219 = vrot.slane %v1217, 2
        %1221 = vst.msk [vmem:[#allocation3 + $0x18] sm:$0xc0] %vm1118, %v1219
        %1222 = vst.msk [vmem:[#allocation3 + $0x38] sm:$0x1] %vm1120, %v1219
        %s1223 = scalar_lea.vmem [#allocation2], 57
        %v1224 = vld [vmem:[%s1223] ss:$2 sm:$0x7]
        %v1226 = vrot.slane %v1224, 2
        %1227 = vrot.lane.b32.xlu0 %v1226, 32
        %v1228 = vpop.permute.xlu0 %1227
        %1230 = vst.msk [vmem:[#allocation3 + $0x18] sm:$0xc0] %vm1128, %v1228
        %1231 = vst.msk [vmem:[#allocation3 + $0x38] sm:$0x1] %vm1130, %v1228
        %s1232 = scalar_lea.vmem [#allocation2], 58
        %v1233 = vld [vmem:[%s1232] ss:$2 sm:$0x7]
        %v1235 = vrot.slane %v1233, 2
        %1236 = vrot.lane.b32.xlu0 %v1235, 64
        %v1237 = vpop.permute.xlu0 %1236
        %1239 = vst.msk [vmem:[#allocation3 + $0x18] sm:$0xc0] %vm1138, %v1237
        %1240 = vst.msk [vmem:[#allocation3 + $0x38] sm:$0x1] %vm1140, %v1237
        %s1241 = scalar_lea.vmem [#allocation2], 59
        %v1242 = vld [vmem:[%s1241] ss:$2 sm:$0x7]
        %v1244 = vrot.slane %v1242, 2
        %1245 = vrot.lane.b32.xlu0 %v1244, 96
        %v1246 = vpop.permute.xlu0 %1245
        %1248 = vst.msk [vmem:[#allocation3 + $0x18] sm:$0xc0] %vm1148, %v1246
        %1249 = vst.msk [vmem:[#allocation3 + $0x38] sm:$0x1] %vm1150, %v1246
        %v1250 = vld [vmem:[#allocation3] sm:$0xff]
        %v1251 = vld [vmem:[#allocation3 + $0x8] sm:$0xff]
        %v1252 = vld [vmem:[#allocation3 + $0x10] sm:$0xff]
        %v1253 = vld [vmem:[#allocation3 + $0x18] sm:$0xff]
        %v1254 = vld [vmem:[#allocation3 + $0x20] sm:$0x1]
        %v1255 = vld [vmem:[#allocation3 + $0x28] sm:$0x1]
        %v1256 = vld [vmem:[#allocation3 + $0x30] sm:$0x1]
        %v1257 = vld [vmem:[#allocation3 + $0x38] sm:$0x1]
        %v1258 = vld [vmem:[#allocation15] sm:$0xff]
        %v1259 = vld [vmem:[#allocation15 + $0x8] sm:$0xff]
        %v1260 = vld [vmem:[#allocation15 + $0x10] sm:$0xff]
        %v1261 = vld [vmem:[#allocation15 + $0x18] sm:$0xff]
        %v1262 = vld [vmem:[#allocation15 + $0x20] sm:$0xff]
        %v1263 = vld [vmem:[#allocation15 + $0x28] sm:$0xff]
        %v1264 = vld [vmem:[#allocation15 + $0x30] sm:$0xff]
        %v1265 = vld [vmem:[#allocation15 + $0x38] sm:$0xff]
        %v1266 = vld [vmem:[#allocation15 + $0x40] sm:$0xff]
        %v1267 = vld [vmem:[#allocation15 + $0x48] sm:$0xff]
        %v1268 = vld [vmem:[#allocation15 + $0x50] sm:$0xff]
        %v1269 = vld [vmem:[#allocation15 + $0x58] sm:$0xff]
        %v1270 = vld [vmem:[#allocation15 + $0x60] sm:$0xff]
        %v1271 = vld [vmem:[#allocation15 + $0x68] sm:$0xff]
        %v1272 = vld [vmem:[#allocation15 + $0x70] sm:$0xff]
        %v1273 = vld [vmem:[#allocation15 + $0x78] sm:$0xff]
        %v1274 = vld [vmem:[#allocation15 + $0x80] sm:$0xff]
        %v1275 = vld [vmem:[#allocation15 + $0x88] sm:$0xff]
        %v1276 = vld [vmem:[#allocation15 + $0x90] sm:$0xff]
        %v1277 = vld [vmem:[#allocation15 + $0x98] sm:$0xff]
        %v1278 = vld [vmem:[#allocation15 + $0xa0] sm:$0xff]
        %v1279 = vld [vmem:[#allocation15 + $0xa8] sm:$0xff]
        %v1280 = vld [vmem:[#allocation15 + $0xb0] sm:$0xff]
        %v1281 = vld [vmem:[#allocation15 + $0xb8] sm:$0xff]
        %v1282 = vld [vmem:[#allocation15 + $0xc0] sm:$0xff]
        %v1283 = vld [vmem:[#allocation15 + $0xc8] sm:$0xff]
        %v1284 = vld [vmem:[#allocation15 + $0xd0] sm:$0xff]
        %v1285 = vld [vmem:[#allocation15 + $0xd8] sm:$0xff]
        %v1286 = vld [vmem:[#allocation15 + $0xe0] sm:$0xff]
        %v1287 = vld [vmem:[#allocation15 + $0xe8] sm:$0xff]
        %v1288 = vld [vmem:[#allocation15 + $0xf0] sm:$0xff]
        %v1289 = vld [vmem:[#allocation15 + $0xf8] sm:$0xff]
        %v1290 = vld [vmem:[#allocation15 + $0x100] sm:$0xff]
        %v1291 = vld [vmem:[#allocation15 + $0x108] sm:$0xff]
        %v1292 = vld [vmem:[#allocation15 + $0x110] sm:$0xff]
        %v1293 = vld [vmem:[#allocation15 + $0x118] sm:$0xff]
        %v1294 = vld [vmem:[#allocation15 + $0x120] sm:$0xff]
        %v1295 = vld [vmem:[#allocation15 + $0x128] sm:$0xff]
        %v1296 = vld [vmem:[#allocation15 + $0x130] sm:$0xff]
        %v1297 = vld [vmem:[#allocation15 + $0x138] sm:$0xff]
        %v1298 = vld [vmem:[#allocation15 + $0x140] sm:$0xff]
        %v1299 = vld [vmem:[#allocation15 + $0x148] sm:$0xff]
        %v1300 = vld [vmem:[#allocation15 + $0x150] sm:$0xff]
        %v1301 = vld [vmem:[#allocation15 + $0x158] sm:$0xff]
        %v1302 = vld [vmem:[#allocation15 + $0x160] sm:$0xff]
        %v1303 = vld [vmem:[#allocation15 + $0x168] sm:$0xff]
        %v1304 = vld [vmem:[#allocation15 + $0x170] sm:$0xff]
        %v1305 = vld [vmem:[#allocation15 + $0x178] sm:$0xff]
        %v1306 = vld [vmem:[#allocation15 + $0x180] sm:$0xff]
        %v1307 = vld [vmem:[#allocation15 + $0x188] sm:$0xff]
        %v1308 = vld [vmem:[#allocation15 + $0x190] sm:$0xff]
        %v1309 = vld [vmem:[#allocation15 + $0x198] sm:$0xff]
        %v1310 = vld [vmem:[#allocation15 + $0x1a0] sm:$0xff]
        %v1311 = vld [vmem:[#allocation15 + $0x1a8] sm:$0xff]
        %v1312 = vld [vmem:[#allocation15 + $0x1b0] sm:$0xff]
        %v1313 = vld [vmem:[#allocation15 + $0x1b8] sm:$0xff]
        %v1314 = vld [vmem:[#allocation15 + $0x1c0] sm:$0xff]
        %v1315 = vld [vmem:[#allocation15 + $0x1c8] sm:$0xff]
        %v1316 = vld [vmem:[#allocation15 + $0x1d0] sm:$0xff]
        %v1317 = vld [vmem:[#allocation15 + $0x1d8] sm:$0xff]
        %v1318 = vld [vmem:[#allocation15 + $0x1e0] sm:$0xff]
        %v1319 = vld [vmem:[#allocation15 + $0x1e8] sm:$0xff]
        %v1320 = vld [vmem:[#allocation15 + $0x1f0] sm:$0xff]
        %v1321 = vld [vmem:[#allocation15 + $0x1f8] sm:$0xff]
        %v1322 = vld [vmem:[#allocation16] sm:$0x1]
        %v1324 = vlaneseq
        %v1325 = vshrl.u32 %v1324, 7
        %v1326 = vsub.s32 0, %v1325
        %v1327 = vrot.slane %v1322, %v1326
        %1329 = vmatprep.subr.mxu0 0.0
        %1330 = vmatpush1.msra.mxu0 %v1258
        %1331 = vmatprep.subr.mxu0 0.0
        %1332 = vmatpush1.msra.mxu0 %v1259
        %1333 = vmatprep.subr.mxu0 0.0
        %1334 = vmatpush1.msra.mxu0 %v1260
        %1335 = vmatprep.subr.mxu0 0.0
        %1336 = vmatpush1.msra.mxu0 %v1261
        %1337 = vmatprep.subr.mxu0 0.0
        %1338 = vmatpush1.msra.mxu0 %v1262
        %1339 = vmatprep.subr.mxu0 0.0
        %1340 = vmatpush1.msra.mxu0 %v1263
        %1341 = vmatprep.subr.mxu0 0.0
        %1342 = vmatpush1.msra.mxu0 %v1264
        %1343 = vmatprep.subr.mxu0 0.0
        %1344 = vmatpush1.msra.mxu0 %v1265
        %1345 = vmatprep.subr.mxu0 0.0
        %1346 = vmatpush1.msra.mxu0 %v1266
        %1347 = vmatprep.subr.mxu0 0.0
        %1348 = vmatpush1.msra.mxu0 %v1267
        %1349 = vmatprep.subr.mxu0 0.0
        %1350 = vmatpush1.msra.mxu0 %v1268
        %1351 = vmatprep.subr.mxu0 0.0
        %1352 = vmatpush1.msra.mxu0 %v1269
        %1353 = vmatprep.subr.mxu0 0.0
        %1354 = vmatpush1.msra.mxu0 %v1270
        %1355 = vmatprep.subr.mxu0 0.0
        %1356 = vmatpush1.msra.mxu0 %v1271
        %1357 = vmatprep.subr.mxu0 0.0
        %1358 = vmatpush1.msra.mxu0 %v1272
        %1359 = vmatprep.subr.mxu0 0.0
        %1360 = vmatpush1.msra.mxu0 %v1273
        %1361 = vmatprep.subr.mxu0 0.0
        %1362 = vmatpush1.msra.mxu0 %v1274
        %1363 = vmatprep.subr.mxu0 0.0
        %1364 = vmatpush1.msra.mxu0 %v1275
        %1365 = vmatprep.subr.mxu0 0.0
        %1366 = vmatpush1.msra.mxu0 %v1276
        %1367 = vmatprep.subr.mxu0 0.0
        %1368 = vmatpush1.msra.mxu0 %v1277
        %1369 = vmatprep.subr.mxu0 0.0
        %1370 = vmatpush1.msra.mxu0 %v1278
        %1371 = vmatprep.subr.mxu0 0.0
        %1372 = vmatpush1.msra.mxu0 %v1279
        %1373 = vmatprep.subr.mxu0 0.0
        %1374 = vmatpush1.msra.mxu0 %v1280
        %1375 = vmatprep.subr.mxu0 0.0
        %1376 = vmatpush1.msra.mxu0 %v1281
        %1377 = vmatprep.subr.mxu0 0.0
        %1378 = vmatpush1.msra.mxu0 %v1282
        %1379 = vmatprep.subr.mxu0 0.0
        %1380 = vmatpush1.msra.mxu0 %v1283
        %1381 = vmatprep.subr.mxu0 0.0
        %1382 = vmatpush1.msra.mxu0 %v1284
        %1383 = vmatprep.subr.mxu0 0.0
        %1384 = vmatpush1.msra.mxu0 %v1285
        %1385 = vmatprep.subr.mxu0 0.0
        %1386 = vmatpush1.msra.mxu0 %v1286
        %1387 = vmatprep.subr.mxu0 0.0
        %1388 = vmatpush1.msra.mxu0 %v1287
        %1389 = vmatprep.subr.mxu0 0.0
        %1390 = vmatpush1.msra.mxu0 %v1288
        %1391 = vmatprep.subr.mxu0 0.0
        %1392 = vmatpush1.msra.mxu0 %v1289
        %1393 = vmatprep.mubr.f32.mxu0 %v1251
        %1394 = vmatmul.mubr.f32.gmra.mrb[0].mxu0 %v1250
        %v1395 = vpop.f32.mrb[0].mxu0
        %v1396 = vadd.f32 %v1327, %v1395
        %v1397 = vpop.f32.mrb[0].mxu0
        %1398 = vmatprep.mubr.f32.mxu0 %v1255
        %1399 = vmatmul.mubr.f32.gmra.mrb[0].mxu0 %v1254
        %v1400 = vpop.f32.mrb[0].mxu0
        %v1401 = vadd.f32 %v1327, %v1400
        %v1402 = vpop.f32.mrb[0].mxu0
        %1403 = vdwg.mxu0
        %1404 = vmatprep.subr.mxu0 0.0
        %1405 = vmatpush1.msra.mxu0 %v1290
        %1406 = vmatprep.subr.mxu0 0.0
        %1407 = vmatpush1.msra.mxu0 %v1291
        %1408 = vmatprep.subr.mxu0 0.0
        %1409 = vmatpush1.msra.mxu0 %v1292
        %1410 = vmatprep.subr.mxu0 0.0
        %1411 = vmatpush1.msra.mxu0 %v1293
        %1412 = vmatprep.subr.mxu0 0.0
        %1413 = vmatpush1.msra.mxu0 %v1294
        %1414 = vmatprep.subr.mxu0 0.0
        %1415 = vmatpush1.msra.mxu0 %v1295
        %1416 = vmatprep.subr.mxu0 0.0
        %1417 = vmatpush1.msra.mxu0 %v1296
        %1418 = vmatprep.subr.mxu0 0.0
        %1419 = vmatpush1.msra.mxu0 %v1297
        %1420 = vmatprep.subr.mxu0 0.0
        %1421 = vmatpush1.msra.mxu0 %v1298
        %1422 = vmatprep.subr.mxu0 0.0
        %1423 = vmatpush1.msra.mxu0 %v1299
        %1424 = vmatprep.subr.mxu0 0.0
        %1425 = vmatpush1.msra.mxu0 %v1300
        %1426 = vmatprep.subr.mxu0 0.0
        %1427 = vmatpush1.msra.mxu0 %v1301
        %1428 = vmatprep.subr.mxu0 0.0
        %1429 = vmatpush1.msra.mxu0 %v1302
        %1430 = vmatprep.subr.mxu0 0.0
        %1431 = vmatpush1.msra.mxu0 %v1303
        %1432 = vmatprep.subr.mxu0 0.0
        %1433 = vmatpush1.msra.mxu0 %v1304
        %1434 = vmatprep.subr.mxu0 0.0
        %1435 = vmatpush1.msra.mxu0 %v1305
        %1436 = vmatprep.subr.mxu0 0.0
        %1437 = vmatpush1.msra.mxu0 %v1306
        %1438 = vmatprep.subr.mxu0 0.0
        %1439 = vmatpush1.msra.mxu0 %v1307
        %1440 = vmatprep.subr.mxu0 0.0
        %1441 = vmatpush1.msra.mxu0 %v1308
        %1442 = vmatprep.subr.mxu0 0.0
        %1443 = vmatpush1.msra.mxu0 %v1309
        %1444 = vmatprep.subr.mxu0 0.0
        %1445 = vmatpush1.msra.mxu0 %v1310
        %1446 = vmatprep.subr.mxu0 0.0
        %1447 = vmatpush1.msra.mxu0 %v1311
        %1448 = vmatprep.subr.mxu0 0.0
        %1449 = vmatpush1.msra.mxu0 %v1312
        %1450 = vmatprep.subr.mxu0 0.0
        %1451 = vmatpush1.msra.mxu0 %v1313
        %1452 = vmatprep.subr.mxu0 0.0
        %1453 = vmatpush1.msra.mxu0 %v1314
        %1454 = vmatprep.subr.mxu0 0.0
        %1455 = vmatpush1.msra.mxu0 %v1315
        %1456 = vmatprep.subr.mxu0 0.0
        %1457 = vmatpush1.msra.mxu0 %v1316
        %1458 = vmatprep.subr.mxu0 0.0
        %1459 = vmatpush1.msra.mxu0 %v1317
        %1460 = vmatprep.subr.mxu0 0.0
        %1461 = vmatpush1.msra.mxu0 %v1318
        %1462 = vmatprep.subr.mxu0 0.0
        %1463 = vmatpush1.msra.mxu0 %v1319
        %1464 = vmatprep.subr.mxu0 0.0
        %1465 = vmatpush1.msra.mxu0 %v1320
        %1466 = vmatprep.subr.mxu0 0.0
        %1467 = vmatpush1.msra.mxu0 %v1321
        %1468 = vmatprep.mubr.f32.mxu0 %v1253
        %1469 = vmatmul.mubr.f32.gmra.mrb[0].mxu0 %v1252
        %v1470 = vpop.f32.mrb[0].mxu0
        %v1471 = vadd.f32 %v1396, %v1470
        %v1472 = vpop.f32.mrb[0].mxu0
        %1473 = vmatprep.mubr.f32.mxu0 %v1257
        %1474 = vmatmul.mubr.f32.gmra.mrb[0].mxu0 %v1256
        %v1475 = vpop.f32.mrb[0].mxu0
        %v1476 = vadd.f32 %v1401, %v1475
        %v1477 = vpop.f32.mrb[0].mxu0
        %1478 = vdwg.mxu0
        %v1479 = vmax.f32 %v1471, 0.0
        %v1480 = vmax.f32 %v1476, 0.0
        %vm1481 = vcmask 523264
        %1482 = vst.msk [vmem:[#allocation4] sm:$0xff] %vm1481, %v1479
        %vm1483 = vcmask 516096
        %1484 = vst.msk [vmem:[#allocation4 + $0x8] sm:$0x1] %vm1483, %v1480
        %v1485 = vld [vmem:[#allocation4] sm:$0x1]
        %v1486 = vlaneseq
        %vm1487 = vcmp.ge.s32.totalorder %v1486, 0
        %vm1488 = vcmp.lt.s32.totalorder %v1486, 64
        %vm1489 = vmand %vm1487, %vm1488
        %1490 = vst.msk [vmem:[#allocation5] sm:$0x1] %vm1489, %v1485
        %v1491 = vld [vmem:[#allocation4 + $0x1] sm:$0x1]
        %v1494 = vunpack.c.l.s4 1966171168
        %v1495 = vunpack.c.0.s8 %v1494
        %v1496 = vlaneseq
        %v1497 = vshrl.u32 %v1496, 7
        %v1498 = vsub.s32 %v1495, %v1497
        %v1499 = vrot.slane %v1491, %v1498
        %v1501 = vunpack.c.l.s4 1966171168
        %v1502 = vunpack.c.0.s8 %v1501
        %v1503 = vlaneseq
        %v1504 = vshrl.u32 %v1503, 7
        %v1505 = vsub.s32 %v1502, %v1504
        %v1506 = vrot.slane %v1499, %v1505
        %1507 = vrot.lane.b32.xlu0 %v1506, 64
        %v1508 = vpop.permute.xlu0 %1507
        %vm1510 = vcmp.ge.s32.totalorder %v1486, 64
        %vm1511 = vcmp.lt.s32.totalorder %v1486, 128
        %vm1512 = vmand %vm1510, %vm1511
        %1513 = vst.msk [vmem:[#allocation5] sm:$0x1] %vm1512, %v1508
        %v1514 = vld [vmem:[#allocation4 + $0x2] sm:$0x1]
        %1515 = vst.msk [vmem:[#allocation5 + $0x1] sm:$0x1] %vm1489, %v1514
        %v1516 = vld [vmem:[#allocation4 + $0x3] sm:$0x1]
        %v1519 = vunpack.c.l.s4 1966171168
        %v1520 = vunpack.c.0.s8 %v1519
        %v1521 = vlaneseq
        %v1522 = vshrl.u32 %v1521, 7
        %v1523 = vsub.s32 %v1520, %v1522
        %v1524 = vrot.slane %v1516, %v1523
        %v1526 = vunpack.c.l.s4 1966171168
        %v1527 = vunpack.c.0.s8 %v1526
        %v1528 = vlaneseq
        %v1529 = vshrl.u32 %v1528, 7
        %v1530 = vsub.s32 %v1527, %v1529
        %v1531 = vrot.slane %v1524, %v1530
        %1532 = vrot.lane.b32.xlu0 %v1531, 64
        %v1533 = vpop.permute.xlu0 %1532
        %1535 = vst.msk [vmem:[#allocation5 + $0x1] sm:$0x1] %vm1512, %v1533
        %v1536 = vld [vmem:[#allocation4 + $0x4] sm:$0x1]
        %1537 = vst.msk [vmem:[#allocation5 + $0x2] sm:$0x1] %vm1489, %v1536
        %v1538 = vld [vmem:[#allocation4 + $0x5] sm:$0x1]
        %v1541 = vunpack.c.l.s4 1966171168
        %v1542 = vunpack.c.0.s8 %v1541
        %v1543 = vlaneseq
        %v1544 = vshrl.u32 %v1543, 7
        %v1545 = vsub.s32 %v1542, %v1544
        %v1546 = vrot.slane %v1538, %v1545
        %v1548 = vunpack.c.l.s4 1966171168
        %v1549 = vunpack.c.0.s8 %v1548
        %v1550 = vlaneseq
        %v1551 = vshrl.u32 %v1550, 7
        %v1552 = vsub.s32 %v1549, %v1551
        %v1553 = vrot.slane %v1546, %v1552
        %1554 = vrot.lane.b32.xlu0 %v1553, 64
        %v1555 = vpop.permute.xlu0 %1554
        %1557 = vst.msk [vmem:[#allocation5 + $0x2] sm:$0x1] %vm1512, %v1555
        %v1558 = vld [vmem:[#allocation4 + $0x6] sm:$0x1]
        %1559 = vst.msk [vmem:[#allocation5 + $0x3] sm:$0x1] %vm1489, %v1558
        %v1560 = vld [vmem:[#allocation4 + $0x7] sm:$0x1]
        %v1563 = vunpack.c.l.s4 1966171168
        %v1564 = vunpack.c.0.s8 %v1563
        %v1565 = vlaneseq
        %v1566 = vshrl.u32 %v1565, 7
        %v1567 = vsub.s32 %v1564, %v1566
        %v1568 = vrot.slane %v1560, %v1567
        %v1570 = vunpack.c.l.s4 1966171168
        %v1571 = vunpack.c.0.s8 %v1570
        %v1572 = vlaneseq
        %v1573 = vshrl.u32 %v1572, 7
        %v1574 = vsub.s32 %v1571, %v1573
        %v1575 = vrot.slane %v1568, %v1574
        %1576 = vrot.lane.b32.xlu0 %v1575, 64
        %v1577 = vpop.permute.xlu0 %1576
        %1579 = vst.msk [vmem:[#allocation5 + $0x3] sm:$0x1] %vm1512, %v1577
        %v1580 = vld [vmem:[#allocation4 + $0x8] sm:$0x1]
        %1581 = vst.msk [vmem:[#allocation5 + $0x4] sm:$0x1] %vm1489, %v1580
        %v1582 = vld [vmem:[#allocation5] sm:$0x1f]
        %v1583 = vld [vmem:[#allocation18] sm:$0xff]
        %v1584 = vld [vmem:[#allocation18 + $0x8] sm:$0xff]
        %v1585 = vld [vmem:[#allocation18 + $0x10] sm:$0xff]
        %v1586 = vld [vmem:[#allocation18 + $0x18] sm:$0xff]
        %v1587 = vld [vmem:[#allocation18 + $0x20] sm:$0xff]
        %v1588 = vld [vmem:[#allocation18 + $0x28] sm:$0xff]
        %v1589 = vld [vmem:[#allocation18 + $0x30] sm:$0xff]
        %v1590 = vld [vmem:[#allocation18 + $0x38] sm:$0xff]
        %v1591 = vld [vmem:[#allocation18 + $0x40] sm:$0xff]
        %v1592 = vld [vmem:[#allocation18 + $0x48] sm:$0xff]
        %v1593 = vld [vmem:[#allocation18 + $0x50] sm:$0xff]
        %v1594 = vld [vmem:[#allocation18 + $0x58] sm:$0xff]
        %v1595 = vld [vmem:[#allocation18 + $0x60] sm:$0xff]
        %v1596 = vld [vmem:[#allocation18 + $0x68] sm:$0xff]
        %v1597 = vld [vmem:[#allocation18 + $0x70] sm:$0xff]
        %v1598 = vld [vmem:[#allocation18 + $0x78] sm:$0xff]
        %v1599 = vld [vmem:[#allocation18 + $0x80] sm:$0xff]
        %v1600 = vld [vmem:[#allocation18 + $0x88] sm:$0xff]
        %v1601 = vld [vmem:[#allocation18 + $0x90] sm:$0xff]
        %v1602 = vld [vmem:[#allocation18 + $0x98] sm:$0xff]
        %v1603 = vld [vmem:[#allocation18 + $0xa0] sm:$0xff]
        %v1604 = vld [vmem:[#allocation18 + $0xa8] sm:$0xff]
        %v1605 = vld [vmem:[#allocation18 + $0xb0] sm:$0xff]
        %v1606 = vld [vmem:[#allocation18 + $0xb8] sm:$0xff]
        %v1607 = vld [vmem:[#allocation18 + $0xc0] sm:$0xff]
        %v1608 = vld [vmem:[#allocation18 + $0xc8] sm:$0xff]
        %v1609 = vld [vmem:[#allocation18 + $0xd0] sm:$0xff]
        %v1610 = vld [vmem:[#allocation18 + $0xd8] sm:$0xff]
        %v1611 = vld [vmem:[#allocation18 + $0xe0] sm:$0xff]
        %v1612 = vld [vmem:[#allocation18 + $0xe8] sm:$0xff]
        %v1613 = vld [vmem:[#allocation18 + $0xf0] sm:$0xff]
        %v1614 = vld [vmem:[#allocation18 + $0xf8] sm:$0xff]
        %v1615 = vld [vmem:[#allocation18 + $0x100] sm:$0xff]
        %v1616 = vld [vmem:[#allocation18 + $0x108] sm:$0xff]
        %v1617 = vld [vmem:[#allocation18 + $0x110] sm:$0xff]
        %v1618 = vld [vmem:[#allocation18 + $0x118] sm:$0xff]
        %v1619 = vld [vmem:[#allocation18 + $0x120] sm:$0xff]
        %v1620 = vld [vmem:[#allocation18 + $0x128] sm:$0xff]
        %v1621 = vld [vmem:[#allocation18 + $0x130] sm:$0xff]
        %v1622 = vld [vmem:[#allocation18 + $0x138] sm:$0xff]
        %v1623 = vld [vmem:[#allocation18 + $0x140] sm:$0xff]
        %v1624 = vld [vmem:[#allocation18 + $0x148] sm:$0xff]
        %v1625 = vld [vmem:[#allocation18 + $0x150] sm:$0xff]
        %v1626 = vld [vmem:[#allocation18 + $0x158] sm:$0xff]
        %v1627 = vld [vmem:[#allocation18 + $0x160] sm:$0xff]
        %v1628 = vld [vmem:[#allocation18 + $0x168] sm:$0xff]
        %v1629 = vld [vmem:[#allocation18 + $0x170] sm:$0xff]
        %v1630 = vld [vmem:[#allocation18 + $0x178] sm:$0xff]
        %v1631 = vld [vmem:[#allocation18 + $0x180] sm:$0xff]
        %v1632 = vld [vmem:[#allocation18 + $0x188] sm:$0xff]
        %v1633 = vld [vmem:[#allocation18 + $0x190] sm:$0xff]
        %v1634 = vld [vmem:[#allocation18 + $0x198] sm:$0xff]
        %v1635 = vld [vmem:[#allocation18 + $0x1a0] sm:$0xff]
        %v1636 = vld [vmem:[#allocation18 + $0x1a8] sm:$0xff]
        %v1637 = vld [vmem:[#allocation18 + $0x1b0] sm:$0xff]
        %v1638 = vld [vmem:[#allocation18 + $0x1b8] sm:$0xff]
        %v1639 = vld [vmem:[#allocation18 + $0x1c0] sm:$0xff]
        %v1640 = vld [vmem:[#allocation18 + $0x1c8] sm:$0xff]
        %v1641 = vld [vmem:[#allocation18 + $0x1d0] sm:$0xff]
        %v1642 = vld [vmem:[#allocation18 + $0x1d8] sm:$0xff]
        %v1643 = vld [vmem:[#allocation18 + $0x1e0] sm:$0xff]
        %v1644 = vld [vmem:[#allocation18 + $0x1e8] sm:$0xff]
        %v1645 = vld [vmem:[#allocation18 + $0x1f0] sm:$0xff]
        %v1646 = vld [vmem:[#allocation18 + $0x1f8] sm:$0xff]
        %v1647 = vld [vmem:[#allocation18 + $0x200] sm:$0xff]
        %v1648 = vld [vmem:[#allocation18 + $0x208] sm:$0xff]
        %v1649 = vld [vmem:[#allocation18 + $0x210] sm:$0xff]
        %v1650 = vld [vmem:[#allocation18 + $0x218] sm:$0xff]
        %v1651 = vld [vmem:[#allocation18 + $0x220] sm:$0xff]
        %v1652 = vld [vmem:[#allocation18 + $0x228] sm:$0xff]
        %v1653 = vld [vmem:[#allocation18 + $0x230] sm:$0xff]
        %v1654 = vld [vmem:[#allocation18 + $0x238] sm:$0xff]
        %v1655 = vld [vmem:[#allocation19] sm:$0x1]
        %v1657 = vlaneseq
        %v1658 = vshrl.u32 %v1657, 7
        %v1659 = vsub.s32 0, %v1658
        %v1660 = vrot.slane %v1582, %v1659
        %v1661 = vlaneseq
        %v1662 = vshrl.u32 %v1661, 7
        %v1663 = vsub.s32 1, %v1662
        %v1664 = vrot.slane %v1582, %v1663
        %v1665 = vlaneseq
        %v1666 = vshrl.u32 %v1665, 7
        %v1667 = vsub.s32 2, %v1666
        %v1668 = vrot.slane %v1582, %v1667
        %v1669 = vlaneseq
        %v1670 = vshrl.u32 %v1669, 7
        %v1671 = vsub.s32 3, %v1670
        %v1672 = vrot.slane %v1582, %v1671
        %v1673 = vlaneseq
        %v1674 = vshrl.u32 %v1673, 7
        %v1675 = vsub.s32 4, %v1674
        %v1676 = vrot.slane %v1582, %v1675
        %v1681 = vsel %vm1481, %v1676, 0
        %1683 = vmatprep.subr.mxu0 0.0
        %1684 = vmatpush1.msra.mxu0 %v1583
        %1685 = vmatprep.subr.mxu0 0.0
        %1686 = vmatpush1.msra.mxu0 %v1584
        %1687 = vmatprep.subr.mxu0 0.0
        %1688 = vmatpush1.msra.mxu0 %v1585
        %1689 = vmatprep.subr.mxu0 0.0
        %1690 = vmatpush1.msra.mxu0 %v1586
        %1691 = vmatprep.subr.mxu0 0.0
        %1692 = vmatpush1.msra.mxu0 %v1587
        %1693 = vmatprep.subr.mxu0 0.0
        %1694 = vmatpush1.msra.mxu0 %v1588
        %1695 = vmatprep.subr.mxu0 0.0
        %1696 = vmatpush1.msra.mxu0 %v1589
        %1697 = vmatprep.subr.mxu0 0.0
        %1698 = vmatpush1.msra.mxu0 %v1590
        %1699 = vmatprep.subr.mxu0 0.0
        %1700 = vmatpush1.msra.mxu0 %v1591
        %1701 = vmatprep.subr.mxu0 0.0
        %1702 = vmatpush1.msra.mxu0 %v1592
        %1703 = vmatprep.subr.mxu0 0.0
        %1704 = vmatpush1.msra.mxu0 %v1593
        %1705 = vmatprep.subr.mxu0 0.0
        %1706 = vmatpush1.msra.mxu0 %v1594
        %1707 = vmatprep.subr.mxu0 0.0
        %1708 = vmatpush1.msra.mxu0 %v1595
        %1709 = vmatprep.subr.mxu0 0.0
        %1710 = vmatpush1.msra.mxu0 %v1596
        %1711 = vmatprep.subr.mxu0 0.0
        %1712 = vmatpush1.msra.mxu0 %v1597
        %1713 = vmatprep.subr.mxu0 0.0
        %1714 = vmatpush1.msra.mxu0 %v1598
        %1715 = vmatprep.subr.mxu0 0.0
        %1716 = vmatpush1.msra.mxu0 %v1599
        %1717 = vmatprep.subr.mxu0 0.0
        %1718 = vmatpush1.msra.mxu0 %v1600
        %1719 = vmatprep.subr.mxu0 0.0
        %1720 = vmatpush1.msra.mxu0 %v1601
        %1721 = vmatprep.subr.mxu0 0.0
        %1722 = vmatpush1.msra.mxu0 %v1602
        %1723 = vmatprep.subr.mxu0 0.0
        %1724 = vmatpush1.msra.mxu0 %v1603
        %1725 = vmatprep.subr.mxu0 0.0
        %1726 = vmatpush1.msra.mxu0 %v1604
        %1727 = vmatprep.subr.mxu0 0.0
        %1728 = vmatpush1.msra.mxu0 %v1605
        %1729 = vmatprep.subr.mxu0 0.0
        %1730 = vmatpush1.msra.mxu0 %v1606
        %1731 = vmatprep.subr.mxu0 0.0
        %1732 = vmatpush1.msra.mxu0 %v1607
        %1733 = vmatprep.subr.mxu0 0.0
        %1734 = vmatpush1.msra.mxu0 %v1608
        %1735 = vmatprep.subr.mxu0 0.0
        %1736 = vmatpush1.msra.mxu0 %v1609
        %1737 = vmatprep.subr.mxu0 0.0
        %1738 = vmatpush1.msra.mxu0 %v1610
        %1739 = vmatprep.subr.mxu0 0.0
        %1740 = vmatpush1.msra.mxu0 %v1611
        %1741 = vmatprep.subr.mxu0 0.0
        %1742 = vmatpush1.msra.mxu0 %v1612
        %1743 = vmatprep.subr.mxu0 0.0
        %1744 = vmatpush1.msra.mxu0 %v1613
        %1745 = vmatprep.subr.mxu0 0.0
        %1746 = vmatpush1.msra.mxu0 %v1614
        %1747 = vmatprep.mubr.f32.mxu0 %v1664
        %1748 = vmatmul.mubr.f32.gmra.mrb[0].mxu0 %v1660
        %v1749 = vpop.f32.mrb[0].mxu0
        %v1750 = vadd.f32 %v1655, %v1749
        %v1751 = vpop.f32.mrb[0].mxu0
        %1752 = vdwg.mxu0
        %1753 = vmatprep.subr.mxu0 0.0
        %1754 = vmatpush1.msra.mxu0 %v1615
        %1755 = vmatprep.subr.mxu0 0.0
        %1756 = vmatpush1.msra.mxu0 %v1616
        %1757 = vmatprep.subr.mxu0 0.0
        %1758 = vmatpush1.msra.mxu0 %v1617
        %1759 = vmatprep.subr.mxu0 0.0
        %1760 = vmatpush1.msra.mxu0 %v1618
        %1761 = vmatprep.subr.mxu0 0.0
        %1762 = vmatpush1.msra.mxu0 %v1619
        %1763 = vmatprep.subr.mxu0 0.0
        %1764 = vmatpush1.msra.mxu0 %v1620
        %1765 = vmatprep.subr.mxu0 0.0
        %1766 = vmatpush1.msra.mxu0 %v1621
        %1767 = vmatprep.subr.mxu0 0.0
        %1768 = vmatpush1.msra.mxu0 %v1622
        %1769 = vmatprep.subr.mxu0 0.0
        %1770 = vmatpush1.msra.mxu0 %v1623
        %1771 = vmatprep.subr.mxu0 0.0
        %1772 = vmatpush1.msra.mxu0 %v1624
        %1773 = vmatprep.subr.mxu0 0.0
        %1774 = vmatpush1.msra.mxu0 %v1625
        %1775 = vmatprep.subr.mxu0 0.0
        %1776 = vmatpush1.msra.mxu0 %v1626
        %1777 = vmatprep.subr.mxu0 0.0
        %1778 = vmatpush1.msra.mxu0 %v1627
        %1779 = vmatprep.subr.mxu0 0.0
        %1780 = vmatpush1.msra.mxu0 %v1628
        %1781 = vmatprep.subr.mxu0 0.0
        %1782 = vmatpush1.msra.mxu0 %v1629
        %1783 = vmatprep.subr.mxu0 0.0
        %1784 = vmatpush1.msra.mxu0 %v1630
        %1785 = vmatprep.subr.mxu0 0.0
        %1786 = vmatpush1.msra.mxu0 %v1631
        %1787 = vmatprep.subr.mxu0 0.0
        %1788 = vmatpush1.msra.mxu0 %v1632
        %1789 = vmatprep.subr.mxu0 0.0
        %1790 = vmatpush1.msra.mxu0 %v1633
        %1791 = vmatprep.subr.mxu0 0.0
        %1792 = vmatpush1.msra.mxu0 %v1634
        %1793 = vmatprep.subr.mxu0 0.0
        %1794 = vmatpush1.msra.mxu0 %v1635
        %1795 = vmatprep.subr.mxu0 0.0
        %1796 = vmatpush1.msra.mxu0 %v1636
        %1797 = vmatprep.subr.mxu0 0.0
        %1798 = vmatpush1.msra.mxu0 %v1637
        %1799 = vmatprep.subr.mxu0 0.0
        %1800 = vmatpush1.msra.mxu0 %v1638
        %1801 = vmatprep.subr.mxu0 0.0
        %1802 = vmatpush1.msra.mxu0 %v1639
        %1803 = vmatprep.subr.mxu0 0.0
        %1804 = vmatpush1.msra.mxu0 %v1640
        %1805 = vmatprep.subr.mxu0 0.0
        %1806 = vmatpush1.msra.mxu0 %v1641
        %1807 = vmatprep.subr.mxu0 0.0
        %1808 = vmatpush1.msra.mxu0 %v1642
        %1809 = vmatprep.subr.mxu0 0.0
        %1810 = vmatpush1.msra.mxu0 %v1643
        %1811 = vmatprep.subr.mxu0 0.0
        %1812 = vmatpush1.msra.mxu0 %v1644
        %1813 = vmatprep.subr.mxu0 0.0
        %1814 = vmatpush1.msra.mxu0 %v1645
        %1815 = vmatprep.subr.mxu0 0.0
        %1816 = vmatpush1.msra.mxu0 %v1646
        %1817 = vmatprep.mubr.f32.mxu0 %v1672
        %1818 = vmatmul.mubr.f32.gmra.mrb[0].mxu0 %v1668
        %v1819 = vpop.f32.mrb[0].mxu0
        %v1820 = vadd.f32 %v1750, %v1819
        %v1821 = vpop.f32.mrb[0].mxu0
        %1822 = vdwg.mxu0
        %1823 = vmatprep.subr.mxu0 0.0
        %1824 = vmatpush1.msra.mxu0 %v1647
        %1825 = vmatprep.subr.mxu0 0.0
        %1826 = vmatpush1.msra.mxu0 %v1648
        %1827 = vmatprep.subr.mxu0 0.0
        %1828 = vmatpush1.msra.mxu0 %v1649
        %1829 = vmatprep.subr.mxu0 0.0
        %1830 = vmatpush1.msra.mxu0 %v1650
        %1831 = vmatprep.subr.mxu0 0.0
        %1832 = vmatpush1.msra.mxu0 %v1651
        %1833 = vmatprep.subr.mxu0 0.0
        %1834 = vmatpush1.msra.mxu0 %v1652
        %1835 = vmatprep.subr.mxu0 0.0
        %1836 = vmatpush1.msra.mxu0 %v1653
        %1837 = vmatprep.subr.mxu0 0.0
        %1838 = vmatpush1.msra.mxu0 %v1654
        %1839 = vmatprep.subr.mxu0 0.0
        %1840 = vmatpush1.msra.mxu0 0.0
        %1841 = vmatprep.subr.mxu0 0.0
        %1842 = vmatpush1.msra.mxu0 0.0
        %1843 = vmatprep.subr.mxu0 0.0
        %1844 = vmatpush1.msra.mxu0 0.0
        %1845 = vmatprep.subr.mxu0 0.0
        %1846 = vmatpush1.msra.mxu0 0.0
        %1847 = vmatprep.subr.mxu0 0.0
        %1848 = vmatpush1.msra.mxu0 0.0
        %1849 = vmatprep.subr.mxu0 0.0
        %1850 = vmatpush1.msra.mxu0 0.0
        %1851 = vmatprep.subr.mxu0 0.0
        %1852 = vmatpush1.msra.mxu0 0.0
        %1853 = vmatprep.subr.mxu0 0.0
        %1854 = vmatpush1.msra.mxu0 0.0
        %1855 = vmatprep.subr.mxu0 0.0
        %1856 = vmatpush1.msra.mxu0 0.0
        %1857 = vmatprep.subr.mxu0 0.0
        %1858 = vmatpush1.msra.mxu0 0.0
        %1859 = vmatprep.subr.mxu0 0.0
        %1860 = vmatpush1.msra.mxu0 0.0
        %1861 = vmatprep.subr.mxu0 0.0
        %1862 = vmatpush1.msra.mxu0 0.0
        %1863 = vmatprep.subr.mxu0 0.0
        %1864 = vmatpush1.msra.mxu0 0.0
        %1865 = vmatprep.subr.mxu0 0.0
        %1866 = vmatpush1.msra.mxu0 0.0
        %1867 = vmatprep.subr.mxu0 0.0
        %1868 = vmatpush1.msra.mxu0 0.0
        %1869 = vmatprep.subr.mxu0 0.0
        %1870 = vmatpush1.msra.mxu0 0.0
        %1871 = vmatprep.subr.mxu0 0.0
        %1872 = vmatpush1.msra.mxu0 0.0
        %1873 = vmatprep.subr.mxu0 0.0
        %1874 = vmatpush1.msra.mxu0 0.0
        %1875 = vmatprep.subr.mxu0 0.0
        %1876 = vmatpush1.msra.mxu0 0.0
        %1877 = vmatprep.subr.mxu0 0.0
        %1878 = vmatpush1.msra.mxu0 0.0
        %1879 = vmatprep.subr.mxu0 0.0
        %1880 = vmatpush1.msra.mxu0 0.0
        %1881 = vmatprep.subr.mxu0 0.0
        %1882 = vmatpush1.msra.mxu0 0.0
        %1883 = vmatprep.subr.mxu0 0.0
        %1884 = vmatpush1.msra.mxu0 0.0
        %1885 = vmatprep.subr.mxu0 0.0
        %1886 = vmatpush1.msra.mxu0 0.0
        %1887 = vmatprep.mubr.f32.mxu0 0.0
        %1888 = vmatmul.mubr.f32.gmra.mrb[0].mxu0 %v1681
        %v1889 = vpop.f32.mrb[0].mxu0
        %v1890 = vadd.f32 %v1820, %v1889
        %v1891 = vpop.f32.mrb[0].mxu0
        %1892 = vdwg.mxu0
        %v1893 = vmax.f32 %v1890, 0.0
        %1894 = vst.msk [vmem:[#allocation6] sm:$0x1] %vm1483, %v1893
        %v1895 = vld [vmem:[#allocation6] sm:$0x1]
        %v1896 = vld [vmem:[#allocation21] sm:$0xff]
        %v1897 = vld [vmem:[#allocation21 + $0x8] sm:$0xff]
        %v1898 = vld [vmem:[#allocation21 + $0x10] sm:$0xff]
        %v1899 = vld [vmem:[#allocation21 + $0x18] sm:$0xff]
        %v1900 = vld [vmem:[#allocation21 + $0x20] sm:$0xff]
        %v1901 = vld [vmem:[#allocation21 + $0x28] sm:$0xff]
        %v1902 = vld [vmem:[#allocation21 + $0x30] sm:$0xff]
        %v1903 = vld [vmem:[#allocation21 + $0x38] sm:$0xff]
        %v1904 = vld [vmem:[#allocation21 + $0x40] sm:$0xff]
        %v1905 = vld [vmem:[#allocation21 + $0x48] sm:$0xff]
        %v1906 = vld [vmem:[#allocation21 + $0x50] sm:$0xff]
        %v1907 = vld [vmem:[#allocation21 + $0x58] sm:$0xff]
        %v1908 = vld [vmem:[#allocation21 + $0x60] sm:$0xff]
        %v1909 = vld [vmem:[#allocation21 + $0x68] sm:$0xff]
        %v1910 = vld [vmem:[#allocation21 + $0x70] sm:$0xff]
        %v1911 = vld [vmem:[#allocation21 + $0x78] sm:$0xff]
        %v1912 = vld [vmem:[#allocation21 + $0x80] sm:$0xff]
        %v1913 = vld [vmem:[#allocation21 + $0x88] sm:$0xff]
        %v1914 = vld [vmem:[#allocation21 + $0x90] sm:$0xff]
        %v1915 = vld [vmem:[#allocation21 + $0x98] sm:$0xff]
        %v1916 = vld [vmem:[#allocation21 + $0xa0] sm:$0xff]
        %v1917 = vld [vmem:[#allocation21 + $0xa8] sm:$0xff]
        %v1918 = vld [vmem:[#allocation21 + $0xb0] sm:$0xff]
        %v1919 = vld [vmem:[#allocation21 + $0xb8] sm:$0xff]
        %v1920 = vld [vmem:[#allocation21 + $0xc0] sm:$0xff]
        %v1921 = vld [vmem:[#allocation21 + $0xc8] sm:$0xff]
        %v1922 = vld [vmem:[#allocation21 + $0xd0] sm:$0xff]
        %v1923 = vld [vmem:[#allocation21 + $0xd8] sm:$0xff]
        %v1924 = vld [vmem:[#allocation21 + $0xe0] sm:$0xff]
        %v1925 = vld [vmem:[#allocation21 + $0xe8] sm:$0xff]
        %v1926 = vld [vmem:[#allocation21 + $0xf0] sm:$0xff]
        %v1927 = vld [vmem:[#allocation21 + $0xf8] sm:$0xff]
        %v1928 = vld [vmem:[#allocation22] sm:$0xf]
        %v1930 = vlaneseq
        %v1931 = vshrl.u32 %v1930, 7
        %v1932 = vsub.s32 0, %v1931
        %v1933 = vrot.slane %v1928, %v1932
        %v1934 = vlaneseq
        %v1935 = vshrl.u32 %v1934, 7
        %v1936 = vsub.s32 1, %v1935
        %v1937 = vrot.slane %v1928, %v1936
        %v1938 = vlaneseq
        %v1939 = vshrl.u32 %v1938, 7
        %v1940 = vsub.s32 2, %v1939
        %v1941 = vrot.slane %v1928, %v1940
        %v1942 = vlaneseq
        %v1943 = vshrl.u32 %v1942, 7
        %v1944 = vsub.s32 3, %v1943
        %v1945 = vrot.slane %v1928, %v1944
        %v1951 = vsel %vm1481, %v1895, 0
        %1953 = vmatprep.subr.mxu0 %v1897
        %1954 = vmatpush1.msra.mxu0 %v1896
        %1955 = vmatprep.subr.mxu0 %v1901
        %1956 = vmatpush1.msra.mxu0 %v1900
        %1957 = vmatprep.subr.mxu0 %v1905
        %1958 = vmatpush1.msra.mxu0 %v1904
        %1959 = vmatprep.subr.mxu0 %v1909
        %1960 = vmatpush1.msra.mxu0 %v1908
        %1961 = vmatprep.subr.mxu0 %v1913
        %1962 = vmatpush1.msra.mxu0 %v1912
        %1963 = vmatprep.subr.mxu0 %v1917
        %1964 = vmatpush1.msra.mxu0 %v1916
        %1965 = vmatprep.subr.mxu0 %v1921
        %1966 = vmatpush1.msra.mxu0 %v1920
        %1967 = vmatprep.subr.mxu0 %v1925
        %1968 = vmatpush1.msra.mxu0 %v1924
        %1969 = vmatprep.subr.mxu0 0.0
        %1970 = vmatpush1.msra.mxu0 0.0
        %1971 = vmatprep.subr.mxu0 0.0
        %1972 = vmatpush1.msra.mxu0 0.0
        %1973 = vmatprep.subr.mxu0 0.0
        %1974 = vmatpush1.msra.mxu0 0.0
        %1975 = vmatprep.subr.mxu0 0.0
        %1976 = vmatpush1.msra.mxu0 0.0
        %1977 = vmatprep.subr.mxu0 0.0
        %1978 = vmatpush1.msra.mxu0 0.0
        %1979 = vmatprep.subr.mxu0 0.0
        %1980 = vmatpush1.msra.mxu0 0.0
        %1981 = vmatprep.subr.mxu0 0.0
        %1982 = vmatpush1.msra.mxu0 0.0
        %1983 = vmatprep.subr.mxu0 0.0
        %1984 = vmatpush1.msra.mxu0 0.0
        %1985 = vmatprep.subr.mxu0 0.0
        %1986 = vmatpush1.msra.mxu0 0.0
        %1987 = vmatprep.subr.mxu0 0.0
        %1988 = vmatpush1.msra.mxu0 0.0
        %1989 = vmatprep.subr.mxu0 0.0
        %1990 = vmatpush1.msra.mxu0 0.0
        %1991 = vmatprep.subr.mxu0 0.0
        %1992 = vmatpush1.msra.mxu0 0.0
        %1993 = vmatprep.subr.mxu0 0.0
        %1994 = vmatpush1.msra.mxu0 0.0
        %1995 = vmatprep.subr.mxu0 0.0
        %1996 = vmatpush1.msra.mxu0 0.0
        %1997 = vmatprep.subr.mxu0 0.0
        %1998 = vmatpush1.msra.mxu0 0.0
        %1999 = vmatprep.subr.mxu0 0.0
        %2000 = vmatpush1.msra.mxu0 0.0
        %2001 = vmatprep.subr.mxu0 0.0
        %2002 = vmatpush1.msra.mxu0 0.0
        %2003 = vmatprep.subr.mxu0 0.0
        %2004 = vmatpush1.msra.mxu0 0.0
        %2005 = vmatprep.subr.mxu0 0.0
        %2006 = vmatpush1.msra.mxu0 0.0
        %2007 = vmatprep.subr.mxu0 0.0
        %2008 = vmatpush1.msra.mxu0 0.0
        %2009 = vmatprep.subr.mxu0 0.0
        %2010 = vmatpush1.msra.mxu0 0.0
        %2011 = vmatprep.subr.mxu0 0.0
        %2012 = vmatpush1.msra.mxu0 0.0
        %2013 = vmatprep.subr.mxu0 0.0
        %2014 = vmatpush1.msra.mxu0 0.0
        %2015 = vmatprep.subr.mxu0 0.0
        %2016 = vmatpush1.msra.mxu0 0.0
        %2017 = vmatprep.mubr.f32.mxu0 0.0
        %2018 = vmatmul.mubr.f32.gmra.mrb[0].mxu0 %v1951
        %v2019 = vpop.f32.mrb[0].mxu0
        %v2020 = vadd.f32 %v1933, %v2019
        %v2021 = vpop.f32.mrb[0].mxu0
        %v2022 = vadd.f32 %v1937, %v2021
        %2023 = vdwg.mxu0
        %2024 = vmatprep.subr.mxu0 %v1899
        %2025 = vmatpush1.msra.mxu0 %v1898
        %2026 = vmatprep.subr.mxu0 %v1903
        %2027 = vmatpush1.msra.mxu0 %v1902
        %2028 = vmatprep.subr.mxu0 %v1907
        %2029 = vmatpush1.msra.mxu0 %v1906
        %2030 = vmatprep.subr.mxu0 %v1911
        %2031 = vmatpush1.msra.mxu0 %v1910
        %2032 = vmatprep.subr.mxu0 %v1915
        %2033 = vmatpush1.msra.mxu0 %v1914
        %2034 = vmatprep.subr.mxu0 %v1919
        %2035 = vmatpush1.msra.mxu0 %v1918
        %2036 = vmatprep.subr.mxu0 %v1923
        %2037 = vmatpush1.msra.mxu0 %v1922
        %2038 = vmatprep.subr.mxu0 %v1927
        %2039 = vmatpush1.msra.mxu0 %v1926
        %2040 = vmatprep.subr.mxu0 0.0
        %2041 = vmatpush1.msra.mxu0 0.0
        %2042 = vmatprep.subr.mxu0 0.0
        %2043 = vmatpush1.msra.mxu0 0.0
        %2044 = vmatprep.subr.mxu0 0.0
        %2045 = vmatpush1.msra.mxu0 0.0
        %2046 = vmatprep.subr.mxu0 0.0
        %2047 = vmatpush1.msra.mxu0 0.0
        %2048 = vmatprep.subr.mxu0 0.0
        %2049 = vmatpush1.msra.mxu0 0.0
        %2050 = vmatprep.subr.mxu0 0.0
        %2051 = vmatpush1.msra.mxu0 0.0
        %2052 = vmatprep.subr.mxu0 0.0
        %2053 = vmatpush1.msra.mxu0 0.0
        %2054 = vmatprep.subr.mxu0 0.0
        %2055 = vmatpush1.msra.mxu0 0.0
        %2056 = vmatprep.subr.mxu0 0.0
        %2057 = vmatpush1.msra.mxu0 0.0
        %2058 = vmatprep.subr.mxu0 0.0
        %2059 = vmatpush1.msra.mxu0 0.0
        %2060 = vmatprep.subr.mxu0 0.0
        %2061 = vmatpush1.msra.mxu0 0.0
        %2062 = vmatprep.subr.mxu0 0.0
        %2063 = vmatpush1.msra.mxu0 0.0
        %2064 = vmatprep.subr.mxu0 0.0
        %2065 = vmatpush1.msra.mxu0 0.0
        %2066 = vmatprep.subr.mxu0 0.0
        %2067 = vmatpush1.msra.mxu0 0.0
        %2068 = vmatprep.subr.mxu0 0.0
        %2069 = vmatpush1.msra.mxu0 0.0
        %2070 = vmatprep.subr.mxu0 0.0
        %2071 = vmatpush1.msra.mxu0 0.0
        %2072 = vmatprep.subr.mxu0 0.0
        %2073 = vmatpush1.msra.mxu0 0.0
        %2074 = vmatprep.subr.mxu0 0.0
        %2075 = vmatpush1.msra.mxu0 0.0
        %2076 = vmatprep.subr.mxu0 0.0
        %2077 = vmatpush1.msra.mxu0 0.0
        %2078 = vmatprep.subr.mxu0 0.0
        %2079 = vmatpush1.msra.mxu0 0.0
        %2080 = vmatprep.subr.mxu0 0.0
        %2081 = vmatpush1.msra.mxu0 0.0
        %2082 = vmatprep.subr.mxu0 0.0
        %2083 = vmatpush1.msra.mxu0 0.0
        %2084 = vmatprep.subr.mxu0 0.0
        %2085 = vmatpush1.msra.mxu0 0.0
        %2086 = vmatprep.subr.mxu0 0.0
        %2087 = vmatpush1.msra.mxu0 0.0
        %2088 = vmatprep.mubr.f32.mxu0 0.0
        %2089 = vmatmul.mubr.f32.gmra.mrb[0].mxu0 %v1951
        %v2090 = vpop.f32.mrb[0].mxu0
        %v2091 = vadd.f32 %v1941, %v2090
        %v2092 = vpop.f32.mrb[0].mxu0
        %v2093 = vadd.f32 %v1945, %v2092
        %2094 = vdwg.mxu0
        %v2095 = vmax.f32 %v2020, 0.0
        %v2096 = vmax.f32 %v2022, 0.0
        %v2097 = vmax.f32 %v2091, 0.0
        %v2098 = vmax.f32 %v2093, 0.0
        %v2099 = vld [vmem:[%s619] sm:$0x1]
        %v2100 = vld [vmem:[#allocation24] sm:$0xff]
        %v2101 = vld [vmem:[#allocation24 + $0x8] sm:$0xff]
        %v2102 = vld [vmem:[#allocation24 + $0x10] sm:$0xff]
        %v2103 = vld [vmem:[#allocation24 + $0x18] sm:$0xff]
        %v2104 = vld [vmem:[#allocation24 + $0x20] sm:$0xff]
        %v2105 = vld [vmem:[#allocation24 + $0x28] sm:$0xff]
        %v2106 = vld [vmem:[#allocation24 + $0x30] sm:$0xff]
        %v2107 = vld [vmem:[#allocation24 + $0x38] sm:$0xff]
        %v2108 = vld [vmem:[#allocation24 + $0x40] sm:$0xff]
        %v2109 = vld [vmem:[#allocation24 + $0x48] sm:$0xff]
        %v2110 = vld [vmem:[#allocation24 + $0x50] sm:$0xff]
        %v2111 = vld [vmem:[#allocation24 + $0x58] sm:$0xff]
        %v2112 = vld [vmem:[#allocation24 + $0x60] sm:$0xff]
        %v2113 = vld [vmem:[#allocation24 + $0x68] sm:$0xff]
        %v2114 = vld [vmem:[#allocation24 + $0x70] sm:$0xff]
        %v2115 = vld [vmem:[#allocation24 + $0x78] sm:$0xff]
        %v2116 = vld [vmem:[#allocation24 + $0x80] sm:$0xff]
        %v2117 = vld [vmem:[#allocation24 + $0x88] sm:$0xff]
        %v2118 = vld [vmem:[#allocation24 + $0x90] sm:$0xff]
        %v2119 = vld [vmem:[#allocation24 + $0x98] sm:$0xff]
        %v2120 = vld [vmem:[#allocation24 + $0xa0] sm:$0xff]
        %v2121 = vld [vmem:[#allocation24 + $0xa8] sm:$0xff]
        %v2122 = vld [vmem:[#allocation24 + $0xb0] sm:$0xff]
        %v2123 = vld [vmem:[#allocation24 + $0xb8] sm:$0xff]
        %v2124 = vld [vmem:[#allocation24 + $0xc0] sm:$0xff]
        %v2125 = vld [vmem:[#allocation24 + $0xc8] sm:$0xff]
        %v2126 = vld [vmem:[#allocation24 + $0xd0] sm:$0xff]
        %v2127 = vld [vmem:[#allocation24 + $0xd8] sm:$0xff]
        %v2128 = vld [vmem:[#allocation24 + $0xe0] sm:$0xff]
        %v2129 = vld [vmem:[#allocation24 + $0xe8] sm:$0xff]
        %v2130 = vld [vmem:[#allocation24 + $0xf0] sm:$0xff]
        %v2131 = vld [vmem:[#allocation24 + $0xf8] sm:$0xff]
        %v2132 = vld [vmem:[#allocation24 + $0x100] sm:$0xff]
        %v2133 = vld [vmem:[#allocation24 + $0x108] sm:$0xff]
        %v2134 = vld [vmem:[#allocation24 + $0x110] sm:$0xff]
        %v2135 = vld [vmem:[#allocation24 + $0x118] sm:$0xff]
        %v2136 = vld [vmem:[#allocation24 + $0x120] sm:$0xff]
        %v2137 = vld [vmem:[#allocation24 + $0x128] sm:$0xff]
        %v2138 = vld [vmem:[#allocation24 + $0x130] sm:$0xff]
        %v2139 = vld [vmem:[#allocation24 + $0x138] sm:$0xff]
        %v2140 = vld [vmem:[#allocation24 + $0x140] sm:$0xff]
        %v2141 = vld [vmem:[#allocation24 + $0x148] sm:$0xff]
        %v2142 = vld [vmem:[#allocation24 + $0x150] sm:$0xff]
        %v2143 = vld [vmem:[#allocation24 + $0x158] sm:$0xff]
        %v2144 = vld [vmem:[#allocation24 + $0x160] sm:$0xff]
        %v2145 = vld [vmem:[#allocation24 + $0x168] sm:$0xff]
        %v2146 = vld [vmem:[#allocation24 + $0x170] sm:$0xff]
        %v2147 = vld [vmem:[#allocation24 + $0x178] sm:$0xff]
        %v2148 = vld [vmem:[#allocation24 + $0x180] sm:$0xff]
        %v2149 = vld [vmem:[#allocation24 + $0x188] sm:$0xff]
        %v2150 = vld [vmem:[#allocation24 + $0x190] sm:$0xff]
        %v2151 = vld [vmem:[#allocation24 + $0x198] sm:$0xff]
        %v2152 = vld [vmem:[#allocation24 + $0x1a0] sm:$0xff]
        %v2153 = vld [vmem:[#allocation24 + $0x1a8] sm:$0xff]
        %v2154 = vld [vmem:[#allocation24 + $0x1b0] sm:$0xff]
        %v2155 = vld [vmem:[#allocation24 + $0x1b8] sm:$0xff]
        %v2156 = vld [vmem:[#allocation24 + $0x1c0] sm:$0xff]
        %v2157 = vld [vmem:[#allocation24 + $0x1c8] sm:$0xff]
        %v2158 = vld [vmem:[#allocation24 + $0x1d0] sm:$0xff]
        %v2159 = vld [vmem:[#allocation24 + $0x1d8] sm:$0xff]
        %v2160 = vld [vmem:[#allocation24 + $0x1e0] sm:$0xff]
        %v2161 = vld [vmem:[#allocation24 + $0x1e8] sm:$0xff]
        %v2162 = vld [vmem:[#allocation24 + $0x1f0] sm:$0xff]
        %v2163 = vld [vmem:[#allocation24 + $0x1f8] sm:$0xff]
        %v2164 = vld [vmem:[#allocation25] sm:$0x7]
        %vm2165 = vcmask 23552
        %v2167 = vsel %vm2165, %v2099, 0
        %vm2169 = vcmask 1042432
        %v2171 = vsel %vm2169, %v2164, 0
        %2173 = vmatprep.subr.mxu0 0.0
        %2174 = vmatpush1.msra.mxu0 %v2171
        %2175 = vmatprep.subr.mxu0 0.0
        %2176 = vmatpush1.msra.mxu0 0.0
        %2177 = vmatprep.subr.mxu0 0.0
        %2178 = vmatpush1.msra.mxu0 0.0
        %2179 = vmatprep.subr.mxu0 0.0
        %2180 = vmatpush1.msra.mxu0 0.0
        %2181 = vmatprep.subr.mxu0 0.0
        %2182 = vmatpush1.msra.mxu0 0.0
        %2183 = vmatprep.subr.mxu0 0.0
        %2184 = vmatpush1.msra.mxu0 0.0
        %2185 = vmatprep.subr.mxu0 0.0
        %2186 = vmatpush1.msra.mxu0 0.0
        %2187 = vmatprep.subr.mxu0 0.0
        %2188 = vmatpush1.msra.mxu0 0.0
        %2189 = vmatprep.subr.mxu0 0.0
        %2190 = vmatpush1.msra.mxu0 0.0
        %2191 = vmatprep.subr.mxu0 0.0
        %2192 = vmatpush1.msra.mxu0 0.0
        %2193 = vmatprep.subr.mxu0 0.0
        %2194 = vmatpush1.msra.mxu0 0.0
        %2195 = vmatprep.subr.mxu0 0.0
        %2196 = vmatpush1.msra.mxu0 0.0
        %2197 = vmatprep.subr.mxu0 0.0
        %2198 = vmatpush1.msra.mxu0 0.0
        %2199 = vmatprep.subr.mxu0 0.0
        %2200 = vmatpush1.msra.mxu0 0.0
        %2201 = vmatprep.subr.mxu0 0.0
        %2202 = vmatpush1.msra.mxu0 0.0
        %2203 = vmatprep.subr.mxu0 0.0
        %2204 = vmatpush1.msra.mxu0 0.0
        %2205 = vmatprep.subr.mxu0 0.0
        %2206 = vmatpush1.msra.mxu0 0.0
        %2207 = vmatprep.subr.mxu0 0.0
        %2208 = vmatpush1.msra.mxu0 0.0
        %2209 = vmatprep.subr.mxu0 0.0
        %2210 = vmatpush1.msra.mxu0 0.0
        %2211 = vmatprep.subr.mxu0 0.0
        %2212 = vmatpush1.msra.mxu0 0.0
        %2213 = vmatprep.subr.mxu0 0.0
        %2214 = vmatpush1.msra.mxu0 0.0
        %2215 = vmatprep.subr.mxu0 0.0
        %2216 = vmatpush1.msra.mxu0 0.0
        %2217 = vmatprep.subr.mxu0 0.0
        %2218 = vmatpush1.msra.mxu0 0.0
        %2219 = vmatprep.subr.mxu0 0.0
        %2220 = vmatpush1.msra.mxu0 0.0
        %2221 = vmatprep.subr.mxu0 0.0
        %2222 = vmatpush1.msra.mxu0 0.0
        %2223 = vmatprep.subr.mxu0 0.0
        %2224 = vmatpush1.msra.mxu0 0.0
        %2225 = vmatprep.subr.mxu0 0.0
        %2226 = vmatpush1.msra.mxu0 0.0
        %2227 = vmatprep.subr.mxu0 0.0
        %2228 = vmatpush1.msra.mxu0 0.0
        %2229 = vmatprep.subr.mxu0 0.0
        %2230 = vmatpush1.msra.mxu0 0.0
        %2231 = vmatprep.subr.mxu0 0.0
        %2232 = vmatpush1.msra.mxu0 0.0
        %2233 = vmatprep.subr.mxu0 0.0
        %2234 = vmatpush1.msra.mxu0 0.0
        %2235 = vmatprep.subr.mxu0 0.0
        %2236 = vmatpush1.msra.mxu0 0.0
        %2237 = vmatprep.mubr.f32.mxu0 0.0
        %2238 = vmatmul.mubr.f32.gmra.mrb[0].mxu0 %v2167
        %v2239 = vpop.f32.mrb[0].mxu0
        %v2240 = vadd.f32 0.0, %v2239
        %v2241 = vpop.f32.mrb[0].mxu0
        %2242 = vdwg.mxu0
        %2243 = vmatprep.subr.mxu0 0.0
        %2244 = vmatpush1.msra.mxu0 %v2100
        %2245 = vmatprep.subr.mxu0 0.0
        %2246 = vmatpush1.msra.mxu0 %v2101
        %2247 = vmatprep.subr.mxu0 0.0
        %2248 = vmatpush1.msra.mxu0 %v2102
        %2249 = vmatprep.subr.mxu0 0.0
        %2250 = vmatpush1.msra.mxu0 %v2103
        %2251 = vmatprep.subr.mxu0 0.0
        %2252 = vmatpush1.msra.mxu0 %v2104
        %2253 = vmatprep.subr.mxu0 0.0
        %2254 = vmatpush1.msra.mxu0 %v2105
        %2255 = vmatprep.subr.mxu0 0.0
        %2256 = vmatpush1.msra.mxu0 %v2106
        %2257 = vmatprep.subr.mxu0 0.0
        %2258 = vmatpush1.msra.mxu0 %v2107
        %2259 = vmatprep.subr.mxu0 0.0
        %2260 = vmatpush1.msra.mxu0 %v2108
        %2261 = vmatprep.subr.mxu0 0.0
        %2262 = vmatpush1.msra.mxu0 %v2109
        %2263 = vmatprep.subr.mxu0 0.0
        %2264 = vmatpush1.msra.mxu0 %v2110
        %2265 = vmatprep.subr.mxu0 0.0
        %2266 = vmatpush1.msra.mxu0 %v2111
        %2267 = vmatprep.subr.mxu0 0.0
        %2268 = vmatpush1.msra.mxu0 %v2112
        %2269 = vmatprep.subr.mxu0 0.0
        %2270 = vmatpush1.msra.mxu0 %v2113
        %2271 = vmatprep.subr.mxu0 0.0
        %2272 = vmatpush1.msra.mxu0 %v2114
        %2273 = vmatprep.subr.mxu0 0.0
        %2274 = vmatpush1.msra.mxu0 %v2115
        %2275 = vmatprep.subr.mxu0 0.0
        %2276 = vmatpush1.msra.mxu0 %v2116
        %2277 = vmatprep.subr.mxu0 0.0
        %2278 = vmatpush1.msra.mxu0 %v2117
        %2279 = vmatprep.subr.mxu0 0.0
        %2280 = vmatpush1.msra.mxu0 %v2118
        %2281 = vmatprep.subr.mxu0 0.0
        %2282 = vmatpush1.msra.mxu0 %v2119
        %2283 = vmatprep.subr.mxu0 0.0
        %2284 = vmatpush1.msra.mxu0 %v2120
        %2285 = vmatprep.subr.mxu0 0.0
        %2286 = vmatpush1.msra.mxu0 %v2121
        %2287 = vmatprep.subr.mxu0 0.0
        %2288 = vmatpush1.msra.mxu0 %v2122
        %2289 = vmatprep.subr.mxu0 0.0
        %2290 = vmatpush1.msra.mxu0 %v2123
        %2291 = vmatprep.subr.mxu0 0.0
        %2292 = vmatpush1.msra.mxu0 %v2124
        %2293 = vmatprep.subr.mxu0 0.0
        %2294 = vmatpush1.msra.mxu0 %v2125
        %2295 = vmatprep.subr.mxu0 0.0
        %2296 = vmatpush1.msra.mxu0 %v2126
        %2297 = vmatprep.subr.mxu0 0.0
        %2298 = vmatpush1.msra.mxu0 %v2127
        %2299 = vmatprep.subr.mxu0 0.0
        %2300 = vmatpush1.msra.mxu0 %v2128
        %2301 = vmatprep.subr.mxu0 0.0
        %2302 = vmatpush1.msra.mxu0 %v2129
        %2303 = vmatprep.subr.mxu0 0.0
        %2304 = vmatpush1.msra.mxu0 %v2130
        %2305 = vmatprep.subr.mxu0 0.0
        %2306 = vmatpush1.msra.mxu0 %v2131
        %2307 = vmatprep.mubr.f32.mxu0 %v2096
        %2308 = vmatmul.mubr.f32.gmra.mrb[0].mxu0 %v2095
        %v2309 = vpop.f32.mrb[0].mxu0
        %v2310 = vadd.f32 %v2240, %v2309
        %v2311 = vpop.f32.mrb[0].mxu0
        %2312 = vdwg.mxu0
        %2313 = vmatprep.subr.mxu0 0.0
        %2314 = vmatpush1.msra.mxu0 %v2132
        %2315 = vmatprep.subr.mxu0 0.0
        %2316 = vmatpush1.msra.mxu0 %v2133
        %2317 = vmatprep.subr.mxu0 0.0
        %2318 = vmatpush1.msra.mxu0 %v2134
        %2319 = vmatprep.subr.mxu0 0.0
        %2320 = vmatpush1.msra.mxu0 %v2135
        %2321 = vmatprep.subr.mxu0 0.0
        %2322 = vmatpush1.msra.mxu0 %v2136
        %2323 = vmatprep.subr.mxu0 0.0
        %2324 = vmatpush1.msra.mxu0 %v2137
        %2325 = vmatprep.subr.mxu0 0.0
        %2326 = vmatpush1.msra.mxu0 %v2138
        %2327 = vmatprep.subr.mxu0 0.0
        %2328 = vmatpush1.msra.mxu0 %v2139
        %2329 = vmatprep.subr.mxu0 0.0
        %2330 = vmatpush1.msra.mxu0 %v2140
        %2331 = vmatprep.subr.mxu0 0.0
        %2332 = vmatpush1.msra.mxu0 %v2141
        %2333 = vmatprep.subr.mxu0 0.0
        %2334 = vmatpush1.msra.mxu0 %v2142
        %2335 = vmatprep.subr.mxu0 0.0
        %2336 = vmatpush1.msra.mxu0 %v2143
        %2337 = vmatprep.subr.mxu0 0.0
        %2338 = vmatpush1.msra.mxu0 %v2144
        %2339 = vmatprep.subr.mxu0 0.0
        %2340 = vmatpush1.msra.mxu0 %v2145
        %2341 = vmatprep.subr.mxu0 0.0
        %2342 = vmatpush1.msra.mxu0 %v2146
        %2343 = vmatprep.subr.mxu0 0.0
        %2344 = vmatpush1.msra.mxu0 %v2147
        %2345 = vmatprep.subr.mxu0 0.0
        %2346 = vmatpush1.msra.mxu0 %v2148
        %2347 = vmatprep.subr.mxu0 0.0
        %2348 = vmatpush1.msra.mxu0 %v2149
        %2349 = vmatprep.subr.mxu0 0.0
        %2350 = vmatpush1.msra.mxu0 %v2150
        %2351 = vmatprep.subr.mxu0 0.0
        %2352 = vmatpush1.msra.mxu0 %v2151
        %2353 = vmatprep.subr.mxu0 0.0
        %2354 = vmatpush1.msra.mxu0 %v2152
        %2355 = vmatprep.subr.mxu0 0.0
        %2356 = vmatpush1.msra.mxu0 %v2153
        %2357 = vmatprep.subr.mxu0 0.0
        %2358 = vmatpush1.msra.mxu0 %v2154
        %2359 = vmatprep.subr.mxu0 0.0
        %2360 = vmatpush1.msra.mxu0 %v2155
        %2361 = vmatprep.subr.mxu0 0.0
        %2362 = vmatpush1.msra.mxu0 %v2156
        %2363 = vmatprep.subr.mxu0 0.0
        %2364 = vmatpush1.msra.mxu0 %v2157
        %2365 = vmatprep.subr.mxu0 0.0
        %2366 = vmatpush1.msra.mxu0 %v2158
        %2367 = vmatprep.subr.mxu0 0.0
        %2368 = vmatpush1.msra.mxu0 %v2159
        %2369 = vmatprep.subr.mxu0 0.0
        %2370 = vmatpush1.msra.mxu0 %v2160
        %2371 = vmatprep.subr.mxu0 0.0
        %2372 = vmatpush1.msra.mxu0 %v2161
        %2373 = vmatprep.subr.mxu0 0.0
        %2374 = vmatpush1.msra.mxu0 %v2162
        %2375 = vmatprep.subr.mxu0 0.0
        %2376 = vmatpush1.msra.mxu0 %v2163
        %2377 = vmatprep.mubr.f32.mxu0 %v2098
        %2378 = vmatmul.mubr.f32.gmra.mrb[0].mxu0 %v2097
        %v2379 = vpop.f32.mrb[0].mxu0
        %v2380 = vadd.f32 %v2310, %v2379
        %v2381 = vpop.f32.mrb[0].mxu0
        %2382 = vdwg.mxu0
        %v2383 = vld [vmem:[#allocation27] sm:$0x1]
        %v2384 = vadd.f32 %v2380, %v2383
        %v2385 = vmax.f32 %v2384, 0.0
        %v2386 = vld [vmem:[#allocation28] sm:$0xff]
        %v2387 = vld [vmem:[#allocation28 + $0x8] sm:$0xff]
        %v2388 = vld [vmem:[#allocation30] sm:$0x1]
        %vm2389 = vcmask 130048
        %v2391 = vsel %vm2389, %v2385, 0
        %2393 = vmatprep.subr.mxu0 0.0
        %2394 = vmatpush1.msra.mxu0 %v2386
        %2395 = vmatprep.subr.mxu0 0.0
        %2396 = vmatpush1.msra.mxu0 %v2387
        %2397 = vmatprep.subr.mxu0 0.0
        %2398 = vmatpush1.msra.mxu0 0.0
        %2399 = vmatprep.subr.mxu0 0.0
        %2400 = vmatpush1.msra.mxu0 0.0
        %2401 = vmatprep.subr.mxu0 0.0
        %2402 = vmatpush1.msra.mxu0 0.0
        %2403 = vmatprep.subr.mxu0 0.0
        %2404 = vmatpush1.msra.mxu0 0.0
        %2405 = vmatprep.subr.mxu0 0.0
        %2406 = vmatpush1.msra.mxu0 0.0
        %2407 = vmatprep.subr.mxu0 0.0
        %2408 = vmatpush1.msra.mxu0 0.0
        %2409 = vmatprep.subr.mxu0 0.0
        %2410 = vmatpush1.msra.mxu0 0.0
        %2411 = vmatprep.subr.mxu0 0.0
        %2412 = vmatpush1.msra.mxu0 0.0
        %2413 = vmatprep.subr.mxu0 0.0
        %2414 = vmatpush1.msra.mxu0 0.0
        %2415 = vmatprep.subr.mxu0 0.0
        %2416 = vmatpush1.msra.mxu0 0.0
        %2417 = vmatprep.subr.mxu0 0.0
        %2418 = vmatpush1.msra.mxu0 0.0
        %2419 = vmatprep.subr.mxu0 0.0
        %2420 = vmatpush1.msra.mxu0 0.0
        %2421 = vmatprep.subr.mxu0 0.0
        %2422 = vmatpush1.msra.mxu0 0.0
        %2423 = vmatprep.subr.mxu0 0.0
        %2424 = vmatpush1.msra.mxu0 0.0
        %2425 = vmatprep.subr.mxu0 0.0
        %2426 = vmatpush1.msra.mxu0 0.0
        %2427 = vmatprep.subr.mxu0 0.0
        %2428 = vmatpush1.msra.mxu0 0.0
        %2429 = vmatprep.subr.mxu0 0.0
        %2430 = vmatpush1.msra.mxu0 0.0
        %2431 = vmatprep.subr.mxu0 0.0
        %2432 = vmatpush1.msra.mxu0 0.0
        %2433 = vmatprep.subr.mxu0 0.0
        %2434 = vmatpush1.msra.mxu0 0.0
        %2435 = vmatprep.subr.mxu0 0.0
        %2436 = vmatpush1.msra.mxu0 0.0
        %2437 = vmatprep.subr.mxu0 0.0
        %2438 = vmatpush1.msra.mxu0 0.0
        %2439 = vmatprep.subr.mxu0 0.0
        %2440 = vmatpush1.msra.mxu0 0.0
        %2441 = vmatprep.subr.mxu0 0.0
        %2442 = vmatpush1.msra.mxu0 0.0
        %2443 = vmatprep.subr.mxu0 0.0
        %2444 = vmatpush1.msra.mxu0 0.0
        %2445 = vmatprep.subr.mxu0 0.0
        %2446 = vmatpush1.msra.mxu0 0.0
        %2447 = vmatprep.subr.mxu0 0.0
        %2448 = vmatpush1.msra.mxu0 0.0
        %2449 = vmatprep.subr.mxu0 0.0
        %2450 = vmatpush1.msra.mxu0 0.0
        %2451 = vmatprep.subr.mxu0 0.0
        %2452 = vmatpush1.msra.mxu0 0.0
        %2453 = vmatprep.subr.mxu0 0.0
        %2454 = vmatpush1.msra.mxu0 0.0
        %2455 = vmatprep.subr.mxu0 0.0
        %2456 = vmatpush1.msra.mxu0 0.0
        %2457 = vmatprep.mubr.f32.mxu0 0.0
        %2458 = vmatmul.mubr.f32.gmra.mrb[0].mxu0 %v2391
        %v2459 = vpop.f32.mrb[0].mxu0
        %v2460 = vadd.f32 %v2388, %v2459
        %v2461 = vpop.f32.mrb[0].mxu0
        %2462 = vdwg.mxu0
        %vm2463 = vcmask 40960
        %2464 = vst.msk [vmem:[%s720] sm:$0x1] %vm2463, %v2460
        %s2465 = sand.u32 %s374, 1
        %s2466 = scalar_lea.sflag [#allocation9], %s2465
        %s2467 = sand.u32 %s374, 1
        %s2468 = scalar_lea.vmem [#allocation31], %s2467
        // Predicated region
        $region141: #{forward.1} parent=79 // pred_check
          %p2469 = pneg %p384
        $region142: #{forward.1} parent=79 // pred_check_branch
          %2471 = sbr.rel (%p2469) target = $region144
        $region143: #{forward.1} parent=79 // pred_region
          %s2473 = ssub.s32 16, 16
          %2474 = vsyncadd %s2466, %s2473
          %s2475 = smul.addr %s41, 16
          %s2476 = scalar_lea.hbm %s15, %s2475
          %s2478 = sshll.u32 %s2468, 4
          %s2479 = int_to_ptr.vmem [resolvable:$true] %s2478
          %2481 = dma.vmem_to_hbm [thread:$0]  %s2479, 16, %s2476, %s2466
        $region144: #{forward.1} parent=79 // pred_fallthru
          _
      $region80: #{forward.1} parent=5 // pred_fallthru
        _
      %p2482 = scmp.le.s32.totalorder 2, %s36
      // Predicated region
      $region145: #{forward.1} parent=5 // pred_check
        %p2483 = pneg %p2482
      $region146: #{forward.1} parent=5 // pred_check_branch
        %2485 = sbr.rel (%p2483) target = $region148
      $region147: #{forward.1} parent=5 // pred_region
        %s2486 = ssub.s32 %s36, 2
        // Predicated region
        $region149: #{forward.1} parent=147 // pred_check
          %p2487 = pneg %p390
        $region150: #{forward.1} parent=147 // pred_check_branch
          %2489 = sbr.rel (%p2487) target = $region152
        $region151: #{forward.1} parent=147 // pred_region
          %s2490 = sand.u32 %s375, 1
          %s2491 = scalar_lea.sflag [#allocation9], %s2490
          %s2492 = sand.u32 %s375, 1
          %s2493 = scalar_lea.vmem [#allocation31], %s2492
          %2494 = dma.done %s2491, 16
        $region152: #{forward.1} parent=147 // pred_fallthru
          _
      $region148: #{forward.1} parent=5 // pred_fallthru
        _
    $region6: #{forward.1} parent=1 // loop_footer
      %s40 = sadd.s32 1, %s36
    $region7: #{forward.1} parent=1 // loop_footer_branch
      %35 = sbr.rel target = $region3
    $region8: #{forward.1} parent=1 // loop_exit
      _
    %2495 = vsyncpa [#allocation8], 1
    %s2496 = scalar_lea.sflag [#allocation8], 1
    %2497 = vsyncpa %s2496, 1
    %2498 = vsyncpa [#allocation11], 1
    %s2499 = scalar_lea.sflag [#allocation11], 1
    %2500 = vsyncpa %s2499, 1
    %2501 = vsyncpa [#allocation14], 1
    %2502 = vsyncpa [#allocation17], 1
    %2503 = vsyncpa [#allocation20], 1
    %2504 = vsyncpa [#allocation23], 1
    %2505 = vsyncpa [#allocation26], 1
    %2506 = vsyncpa [#allocation29], 1
    %2507 = vsyncpa [#allocation9], 1
    %s2508 = scalar_lea.sflag [#allocation9], 1
    %2509 = vsyncpa %s2508, 1

</llo_original>
